<compile_context>
chip_gen: v7x
topology: tpu7x:2x2x1
jax: 0.10.0
libtpu: 0.0.40
codegen_flags: <defaults>
</compile_context>

<pallas_src>
import functools

import jax
import jax.numpy as jnp
from jax import lax
from jax.experimental import pallas as pl
from jax.experimental.pallas import tpu as pltpu


# ---------------------------------------------------------------------------
# Pallas kernel: one grid step = (one batch element, one residual block)
# ---------------------------------------------------------------------------
def conv3d_stack_kernel(x_ref, w1_ref, s1_ref, t1_ref,
                        w2_ref, s2_ref, t2_ref,
                        w3_ref, s3_ref, t3_ref,
                        out_ref, carry_ref, pad_ref,
                        *, D, H, W, C2):
    """Shapes seen by the kernel (blocks):

    x_ref:   (1, D*H, W*C1)            f32   input activations (lane-grouped NDHWC)
    w1_ref:  (1, W*C1, W*C2)           bf16  block-diag 1x1x1 conv weight
    w2_ref:  (1, 3, 3, (W+2)*C2, W*C2) bf16  kw-banded 3x3x3 conv weight per (kd, kh)
    w3_ref:  (1, W*C2, W*C1)           bf16  block-diag 1x1x1 conv weight
    s*/t*:   (1, 1, lanes)             f32   folded BN scale / shift (tiled over W)
    out_ref: (1, D*H, W*C1)            f32
    carry_ref: (D*H, W*C1)             f32   activation carried across the layer axis
    pad_ref: (D+2, H+2, (W+2)*C2)      f32   zero-padded conv2 input
    """
    l = pl.program_id(1)
    n_layers = pl.num_programs(1)

    DH = D * H
    WC2 = W * C2
    PWC2 = (W + 2) * C2

    @pl.when(l == 0)
    def _():
        # Load this batch element's activations into the layer carry and zero the
        # padded scratch ONCE per batch tile (halo rows/lanes are never written again).
        carry_ref[...] = x_ref[0]
        pad_ref[...] = jnp.zeros((D + 2, H + 2, PWC2), jnp.float32)

    x_g = carry_ref[...]                                     # (DH, W*C1) f32

    # ---- conv1 (1x1x1, block-diag) + folded BN1 + ReLU ----------------------
    h1 = jnp.dot(x_g.astype(jnp.bfloat16), w1_ref[0],
                 preferred_element_type=jnp.float32)          # (DH, W*C2)
    h1 = jnp.maximum(h1 * s1_ref[0] + t1_ref[0], 0.0)

    # ---- conv2 (3x3x3, stride 1, pad 1) --------------------------------------
    # Interior store is lane-aligned: lanes [0, W*C2) hold the W interior groups,
    # lanes [W*C2, (W+2)*C2) are the (always-zero) left/right W-halo groups.
    pad_ref[1:D + 1, 1:H + 1, 0:WC2] = h1.reshape(D, H, WC2)

    acc = jnp.zeros((DH, WC2), jnp.float32)
    for kd in range(3):
        for kh in range(3):
            slab = pad_ref[kd:kd + D, kh:kh + H, :]           # (D, H, (W+2)*C2)
            acc = acc + jnp.dot(
                slab.reshape(DH, PWC2).astype(jnp.bfloat16),
                w2_ref[0, kd, kh],
                preferred_element_type=jnp.float32)
    h2 = jnp.maximum(acc * s2_ref[0] + t2_ref[0], 0.0)        # (DH, W*C2)

    # ---- conv3 (1x1x1, block-diag) + folded BN3 + residual + ReLU ------------
    h3 = jnp.dot(h2.astype(jnp.bfloat16), w3_ref[0],
                 preferred_element_type=jnp.float32)          # (DH, W*C1)
    out = jnp.maximum(h3 * s3_ref[0] + t3_ref[0] + x_g, 0.0)

    carry_ref[...] = out

    @pl.when(l == n_layers - 1)
    def _():
        out_ref[0] = out.astype(out_ref.dtype)


# ---------------------------------------------------------------------------
# wrapper
# ---------------------------------------------------------------------------
def my_conv3d_forward(x_ncdhw, stacked):
    """myConv3d.forward. Input/output are NCDHW (like PyTorch)."""
    N, C1, D, H, W = x_ncdhw.shape
    L = stacked["w1"].shape[0]
    WC1 = W * C1
    WC2 = stacked["s1"].shape[-1]
    C2 = WC2 // W
    PWC2 = (W + 2) * C2
    DH = D * H

    # NCDHW -> NDHWC -> lane-grouped (N, D*H, W*C1)
    x_g = jnp.transpose(x_ncdhw, (0, 2, 3, 4, 1)).reshape(N, DH, WC1)

    kernel = functools.partial(conv3d_stack_kernel, D=D, H=H, W=W, C2=C2)

    out = pl.pallas_call(
        kernel,
        out_shape=jax.ShapeDtypeStruct((N, DH, WC1), jnp.float32),
        grid_spec=pltpu.PrefetchScalarGridSpec(
            num_scalar_prefetch=0,
            grid=(N, L),
            in_specs=[
                pl.BlockSpec((1, DH, WC1), lambda n, l: (n, 0, 0)),          # x
                pl.BlockSpec((1, WC1, WC2), lambda n, l: (l, 0, 0)),         # w1 blkdiag
                pl.BlockSpec((1, 1, WC2), lambda n, l: (l, 0, 0)),           # s1
                pl.BlockSpec((1, 1, WC2), lambda n, l: (l, 0, 0)),           # t1
                pl.BlockSpec((1, 3, 3, PWC2, WC2),
                             lambda n, l: (l, 0, 0, 0, 0)),                  # w2 banded
                pl.BlockSpec((1, 1, WC2), lambda n, l: (l, 0, 0)),           # s2
                pl.BlockSpec((1, 1, WC2), lambda n, l: (l, 0, 0)),           # t2
                pl.BlockSpec((1, WC2, WC1), lambda n, l: (l, 0, 0)),         # w3 blkdiag
                pl.BlockSpec((1, 1, WC1), lambda n, l: (l, 0, 0)),           # s3
                pl.BlockSpec((1, 1, WC1), lambda n, l: (l, 0, 0)),           # t3
            ],
            out_specs=pl.BlockSpec((1, DH, WC1), lambda n, l: (n, 0, 0)),
            scratch_shapes=[
                pltpu.VMEM((DH, WC1), jnp.float32),                  # layer carry
                pltpu.VMEM((D + 2, H + 2, PWC2), jnp.float32),       # padded conv2 input
            ],
        ),
        compiler_params=pltpu.CompilerParams(
            dimension_semantics=("parallel", "arbitrary"),
            vmem_limit_bytes=32 * 1024 * 1024,
        ),
    )(x_g, stacked["w1"], stacked["s1"], stacked["t1"],
      stacked["w2"], stacked["s2"], stacked["t2"],
      stacked["w3"], stacked["s3"], stacked["t3"])

    # lane-grouped -> NDHWC -> NCDHW
    return jnp.transpose(out.reshape(N, D, H, W, C1), (0, 4, 1, 2, 3))


# ---------------------------------------------------------------------------
# wrapper-side weight preparation (block-diag / banded, bf16, stacked over layers)
# ---------------------------------------------------------------------------
def _kw_band_selectors(W):
    """E[kw, g, w] = 1 where lane-group g holds input position q = w + kw - 1.

    Groups 0..W-1 are the interior W positions, group W is the left halo (q = -1),
    group W+1 is the right halo (q = W). Halo groups are always zero in the scratch.
    """
    E = jnp.zeros((3, W + 2, W), jnp.float32)
    for kw in range(3):
        for w in range(W):
            q = w + kw - 1
            g = W if q < 0 else (W + 1 if q >= W else q)
            E = E.at[kw, g, w].set(1.0)
    return E


def pack_stack_params(block_params, W):
    C1, C2 = block_params[0]["w1"].shape
    eyeW = jnp.eye(W, dtype=jnp.float32)
    E = _kw_band_selectors(W)

    w1b, w2b, w3b = [], [], []
    s1, t1, s2, t2, s3, t3 = [], [], [], [], [], []
    for p in block_params:
        w1b.append(jnp.kron(eyeW, p["w1"]).astype(jnp.bfloat16))      # (W*C1, W*C2)
        w3b.append(jnp.kron(eyeW, p["w3"]).astype(jnp.bfloat16))      # (W*C2, W*C1)
        band = jnp.einsum("kgw,xykio->xygiwo", E, p["w2"])            # (3,3,W+2,C2,W,C2)
        w2b.append(band.reshape(3, 3, (W + 2) * C2, W * C2).astype(jnp.bfloat16))
        s1.append(jnp.tile(p["s1"], (1, W)));  t1.append(jnp.tile(p["t1"], (1, W)))
        s2.append(jnp.tile(p["s2"], (1, W)));  t2.append(jnp.tile(p["t2"], (1, W)))
        s3.append(jnp.tile(p["s3"], (1, W)));  t3.append(jnp.tile(p["t3"], (1, W)))

    return dict(w1=jnp.stack(w1b), w2=jnp.stack(w2b), w3=jnp.stack(w3b),
                s1=jnp.stack(s1), t1=jnp.stack(t1),
                s2=jnp.stack(s2), t2=jnp.stack(t2),
                s3=jnp.stack(s3), t3=jnp.stack(t3))


# ---------------------------------------------------------------------------
# deterministic synthetic parameter construction (folds conv bias + eval BN)
# ---------------------------------------------------------------------------
def _fold_bn(conv_bias, gamma, beta, mean, var, eps=1e-5):
    scale = gamma / jnp.sqrt(var + eps)
    shift = beta - mean * scale + conv_bias * scale
    return scale.reshape(1, -1), shift.reshape(1, -1)


def make_block_params(key, C1, C2):
    ks = jax.random.split(key, 18)

    def nrm(k, shape, s=0.1):
        return s * jax.random.normal(k, shape, jnp.float32)

    w1 = nrm(ks[0], (C1, C2)); b1 = nrm(ks[1], (C2,))
    g1 = 1.0 + nrm(ks[2], (C2,)); be1 = nrm(ks[3], (C2,))
    m1 = nrm(ks[4], (C2,)); v1 = 0.5 + jnp.abs(nrm(ks[5], (C2,)))

    w2 = nrm(ks[6], (3, 3, 3, C2, C2)); b2 = nrm(ks[7], (C2,))
    g2 = 1.0 + nrm(ks[8], (C2,)); be2 = nrm(ks[9], (C2,))
    m2 = nrm(ks[10], (C2,)); v2 = 0.5 + jnp.abs(nrm(ks[11], (C2,)))

    w3 = nrm(ks[12], (C2, C1)); b3 = nrm(ks[13], (C1,))
    g3 = 1.0 + nrm(ks[14], (C1,)); be3 = nrm(ks[15], (C1,))
    m3 = nrm(ks[16], (C1,)); v3 = 0.5 + jnp.abs(nrm(ks[17], (C1,)))

    s1, t1 = _fold_bn(b1, g1, be1, m1, v1)
    s2, t2 = _fold_bn(b2, g2, be2, m2, v2)
    s3, t3 = _fold_bn(b3, g3, be3, m3, v3)
    return dict(w1=w1, s1=s1, t1=t1, w2=w2, s2=s2, t2=t2, w3=w3, s3=s3, t3=t3)


# ---------------------------------------------------------------------------
# pure-JAX reference (same bf16 rounding points as the kernel, f32 accumulation)
# ---------------------------------------------------------------------------
def _bf(a):
    return a.astype(jnp.bfloat16).astype(jnp.float32)


def _ref_block(x, p):
    h = jnp.einsum("ndhwc,co->ndhwo", _bf(x), _bf(p["w1"]))
    h = jnp.maximum(h * p["s1"][0] + p["t1"][0], 0.0)
    h = lax.conv_general_dilated(
        _bf(h), _bf(p["w2"]), window_strides=(1, 1, 1), padding=((1, 1),) * 3,
        dimension_numbers=("NDHWC", "DHWIO", "NDHWC"))
    h = jnp.maximum(h * p["s2"][0] + p["t2"][0], 0.0)
    h = jnp.einsum("ndhwc,co->ndhwo", _bf(h), _bf(p["w3"]))
    h = h * p["s3"][0] + p["t3"][0]
    return jnp.maximum(h + x, 0.0)


def _ref_forward(x_ncdhw, block_params):
    x = jnp.transpose(x_ncdhw, (0, 2, 3, 4, 1))
    for p in block_params:
        x = _ref_block(x, p)
    return jnp.transpose(x, (0, 4, 1, 2, 3))


if __name__ == "__main__":
    C1, C2, layers = 8, 16, 3
    N, D, H, W = 2, 8, 8, 8

    key = jax.random.PRNGKey(0)
    key, xkey = jax.random.split(key)
    x = jax.random.normal(xkey, (N, C1, D, H, W), jnp.float32)   # NCDHW, like PyTorch

    block_keys = jax.random.split(key, layers)
    block_params = [make_block_params(block_keys[i], C1, C2) for i in range(layers)]
    stacked = pack_stack_params(block_params, W)

    out = jax.block_until_ready(my_conv3d_forward(x, stacked))
    ref = jax.block_until_ready(_ref_forward(x, block_params))

    assert out.shape == x.shape
    err = float(jnp.max(jnp.abs(out - ref)))
    assert jnp.allclose(out, ref, atol=2e-3, rtol=2e-3), err

    print("KERNEL_OK")
</pallas_src>

<mosaic_0001>
module attributes {stable_mosaic.version = 11 : i64} {
  func.func @conv3d_stack_kernel(%arg0: i32, %arg1: i32, %arg2: memref<1x64x64xf32, #tpu.memory_space<vmem>>, %arg3: memref<1x64x128xbf16, #tpu.memory_space<vmem>>, %arg4: memref<1x1x128xf32, #tpu.memory_space<vmem>>, %arg5: memref<1x1x128xf32, #tpu.memory_space<vmem>>, %arg6: memref<1x3x3x160x128xbf16, #tpu.memory_space<vmem>>, %arg7: memref<1x1x128xf32, #tpu.memory_space<vmem>>, %arg8: memref<1x1x128xf32, #tpu.memory_space<vmem>>, %arg9: memref<1x128x64xbf16, #tpu.memory_space<vmem>>, %arg10: memref<1x1x64xf32, #tpu.memory_space<vmem>>, %arg11: memref<1x1x64xf32, #tpu.memory_space<vmem>>, %arg12: memref<1x64x64xf32, #tpu.memory_space<vmem>>, %arg13: memref<64x64xf32, #tpu.memory_space<vmem>>, %arg14: memref<10x10x160xf32, #tpu.memory_space<vmem>>) attributes {dimension_semantics = [#tpu.dimension_semantics<parallel>, #tpu.dimension_semantics<arbitrary>], iteration_bounds = array<i64: 2, 3>, scalar_prefetch = 0 : i64, scratch_operands = 2 : i64, tpu.core_type = #tpu.core_type<tc>, window_params = [{transform_indices = @transform_0, window_bounds = array<i64: 1, 64, 64>}, {transform_indices = @transform_1, window_bounds = array<i64: 1, 64, 128>}, {transform_indices = @transform_2, window_bounds = array<i64: 1, 1, 128>}, {transform_indices = @transform_3, window_bounds = array<i64: 1, 1, 128>}, {transform_indices = @transform_4, window_bounds = array<i64: 1, 3, 3, 160, 128>}, {transform_indices = @transform_5, window_bounds = array<i64: 1, 1, 128>}, {transform_indices = @transform_6, window_bounds = array<i64: 1, 1, 128>}, {transform_indices = @transform_7, window_bounds = array<i64: 1, 128, 64>}, {transform_indices = @transform_8, window_bounds = array<i64: 1, 1, 64>}, {transform_indices = @transform_9, window_bounds = array<i64: 1, 1, 64>}, {transform_indices = @transform_10, window_bounds = array<i64: 1, 64, 64>}]} {
    %c0_i32 = arith.constant 0 : i32
    %0 = arith.cmpi eq, %arg1, %c0_i32 : i32
    %1 = arith.extui %0 : i1 to i32
    %c0_i32_0 = arith.constant 0 : i32
    %2 = arith.cmpi ne, %1, %c0_i32_0 : i32
    scf.if %2 {
      %c0_116 = arith.constant 0 : index
      %c0_117 = arith.constant 0 : index
      %c0_118 = arith.constant 0 : index
      %113 = vector.load %arg2[%c0_116, %c0_117, %c0_118] : memref<1x64x64xf32, #tpu.memory_space<vmem>>, vector<1x64x64xf32>
      %114 = vector.shape_cast %113 : vector<1x64x64xf32> to vector<64x64xf32>
      %c0_119 = arith.constant 0 : index
      %c0_120 = arith.constant 0 : index
      %115 = vector.load %arg13[%c0_119, %c0_120] : memref<64x64xf32, #tpu.memory_space<vmem>>, vector<64x64xf32>
      tpu.vector_store %arg13[%c0_119, %c0_120], %114 {strides = array<i32>} : memref<64x64xf32, #tpu.memory_space<vmem>>, vector<64x64xf32>,
      %cst_121 = arith.constant 0.000000e+00 : f32
      %116 = vector.broadcast %cst_121 : f32 to vector<10x10x160xf32>
      %c0_122 = arith.constant 0 : index
      %c0_123 = arith.constant 0 : index
      %c0_124 = arith.constant 0 : index
      %117 = vector.load %arg14[%c0_122, %c0_123, %c0_124] : memref<10x10x160xf32, #tpu.memory_space<vmem>>, vector<10x10x160xf32>
      tpu.vector_store %arg14[%c0_122, %c0_123, %c0_124], %116 {strides = array<i32>} : memref<10x10x160xf32, #tpu.memory_space<vmem>>, vector<10x10x160xf32>,
    } else {
    }
    %c0 = arith.constant 0 : index
    %c0_1 = arith.constant 0 : index
    %3 = vector.load %arg13[%c0, %c0_1] : memref<64x64xf32, #tpu.memory_space<vmem>>, vector<64x64xf32>
    %4 = arith.truncf %3 : vector<64x64xf32> to vector<64x64xbf16>
    %c0_2 = arith.constant 0 : index
    %c0_3 = arith.constant 0 : index
    %c0_4 = arith.constant 0 : index
    %5 = vector.load %arg3[%c0_2, %c0_3, %c0_4] : memref<1x64x128xbf16, #tpu.memory_space<vmem>>, vector<1x64x128xbf16>
    %6 = vector.shape_cast %5 : vector<1x64x128xbf16> to vector<64x128xbf16>
    %cst = arith.constant dense<0.000000e+00> : vector<64x128xf32>
    %7 = tpu.matmul %4, %6, %cst {dimension_numbers = #tpu.dot_dimension_numbers<[1], [0], [0], [1], [0, 0, 1, 1], [], []>} : vector<64x64xbf16>, vector<64x128xbf16>, vector<64x128xf32> -> vector<64x128xf32>
    %c0_5 = arith.constant 0 : index
    %c0_6 = arith.constant 0 : index
    %c0_7 = arith.constant 0 : index
    %8 = vector.load %arg4[%c0_5, %c0_6, %c0_7] : memref<1x1x128xf32, #tpu.memory_space<vmem>>, vector<1x1x128xf32>
    %9 = vector.shape_cast %8 : vector<1x1x128xf32> to vector<1x128xf32>
    %10 = vector.broadcast %9 : vector<1x128xf32> to vector<64x128xf32>
    %11 = arith.mulf %7, %10 : vector<64x128xf32>
    %c0_8 = arith.constant 0 : index
    %c0_9 = arith.constant 0 : index
    %c0_10 = arith.constant 0 : index
    %12 = vector.load %arg5[%c0_8, %c0_9, %c0_10] : memref<1x1x128xf32, #tpu.memory_space<vmem>>, vector<1x1x128xf32>
    %13 = vector.shape_cast %12 : vector<1x1x128xf32> to vector<1x128xf32>
    %14 = vector.broadcast %13 : vector<1x128xf32> to vector<64x128xf32>
    %15 = arith.addf %11, %14 : vector<64x128xf32>
    %cst_11 = arith.constant 0.000000e+00 : f32
    %16 = vector.broadcast %cst_11 : f32 to vector<64x128xf32>
    %17 = arith.maximumf %15, %16 : vector<64x128xf32>
    %18 = vector.shape_cast %17 : vector<64x128xf32> to vector<8x8x128xf32>
    %c1 = arith.constant 1 : index
    %c1_12 = arith.constant 1 : index
    %c0_13 = arith.constant 0 : index
    %19 = vector.load %arg14[%c1, %c1_12, %c0_13] : memref<10x10x160xf32, #tpu.memory_space<vmem>>, vector<8x8x128xf32>
    tpu.vector_store %arg14[%c1, %c1_12, %c0_13], %18 {strides = array<i32>} : memref<10x10x160xf32, #tpu.memory_space<vmem>>, vector<8x8x128xf32>,
    %cst_14 = arith.constant 0.000000e+00 : f32
    %20 = vector.broadcast %cst_14 : f32 to vector<64x128xf32>
    %c0_15 = arith.constant 0 : index
    %c0_16 = arith.constant 0 : index
    %c0_17 = arith.constant 0 : index
    %21 = vector.load %arg14[%c0_15, %c0_16, %c0_17] : memref<10x10x160xf32, #tpu.memory_space<vmem>>, vector<8x8x160xf32>
    %22 = vector.shape_cast %21 : vector<8x8x160xf32> to vector<64x160xf32>
    %23 = arith.truncf %22 : vector<64x160xf32> to vector<64x160xbf16>
    %c0_18 = arith.constant 0 : index
    %c0_19 = arith.constant 0 : index
    %c0_20 = arith.constant 0 : index
    %c0_21 = arith.constant 0 : index
    %c0_22 = arith.constant 0 : index
    %24 = vector.load %arg6[%c0_18, %c0_19, %c0_20, %c0_21, %c0_22] : memref<1x3x3x160x128xbf16, #tpu.memory_space<vmem>>, vector<1x1x1x160x128xbf16>
    %25 = vector.shape_cast %24 : vector<1x1x1x160x128xbf16> to vector<160x128xbf16>
    %cst_23 = arith.constant dense<0.000000e+00> : vector<64x128xf32>
    %26 = tpu.matmul %23, %25, %cst_23 {dimension_numbers = #tpu.dot_dimension_numbers<[1], [0], [0], [1], [0, 0, 1, 1], [], []>} : vector<64x160xbf16>, vector<160x128xbf16>, vector<64x128xf32> -> vector<64x128xf32>
    %27 = arith.addf %20, %26 : vector<64x128xf32>
    %c0_24 = arith.constant 0 : index
    %c1_25 = arith.constant 1 : index
    %c0_26 = arith.constant 0 : index
    %28 = vector.load %arg14[%c0_24, %c1_25, %c0_26] : memref<10x10x160xf32, #tpu.memory_space<vmem>>, vector<8x8x160xf32>
    %29 = vector.shape_cast %28 : vector<8x8x160xf32> to vector<64x160xf32>
    %30 = arith.truncf %29 : vector<64x160xf32> to vector<64x160xbf16>
    %c0_27 = arith.constant 0 : index
    %c0_28 = arith.constant 0 : index
    %c1_29 = arith.constant 1 : index
    %c0_30 = arith.constant 0 : index
    %c0_31 = arith.constant 0 : index
    %31 = vector.load %arg6[%c0_27, %c0_28, %c1_29, %c0_30, %c0_31] : memref<1x3x3x160x128xbf16, #tpu.memory_space<vmem>>, vector<1x1x1x160x128xbf16>
    %32 = vector.shape_cast %31 : vector<1x1x1x160x128xbf16> to vector<160x128xbf16>
    %cst_32 = arith.constant dense<0.000000e+00> : vector<64x128xf32>
    %33 = tpu.matmul %30, %32, %cst_32 {dimension_numbers = #tpu.dot_dimension_numbers<[1], [0], [0], [1], [0, 0, 1, 1], [], []>} : vector<64x160xbf16>, vector<160x128xbf16>, vector<64x128xf32> -> vector<64x128xf32>
    %34 = arith.addf %27, %33 : vector<64x128xf32>
    %c0_33 = arith.constant 0 : index
    %c2 = arith.constant 2 : index
    %c0_34 = arith.constant 0 : index
    %35 = vector.load %arg14[%c0_33, %c2, %c0_34] : memref<10x10x160xf32, #tpu.memory_space<vmem>>, vector<8x8x160xf32>
    %36 = vector.shape_cast %35 : vector<8x8x160xf32> to vector<64x160xf32>
    %37 = arith.truncf %36 : vector<64x160xf32> to vector<64x160xbf16>
    %c0_35 = arith.constant 0 : index
    %c0_36 = arith.constant 0 : index
    %c2_37 = arith.constant 2 : index
    %c0_38 = arith.constant 0 : index
    %c0_39 = arith.constant 0 : index
    %38 = vector.load %arg6[%c0_35, %c0_36, %c2_37, %c0_38, %c0_39] : memref<1x3x3x160x128xbf16, #tpu.memory_space<vmem>>, vector<1x1x1x160x128xbf16>
    %39 = vector.shape_cast %38 : vector<1x1x1x160x128xbf16> to vector<160x128xbf16>
    %cst_40 = arith.constant dense<0.000000e+00> : vector<64x128xf32>
    %40 = tpu.matmul %37, %39, %cst_40 {dimension_numbers = #tpu.dot_dimension_numbers<[1], [0], [0], [1], [0, 0, 1, 1], [], []>} : vector<64x160xbf16>, vector<160x128xbf16>, vector<64x128xf32> -> vector<64x128xf32>
    %41 = arith.addf %34, %40 : vector<64x128xf32>
    %c1_41 = arith.constant 1 : index
    %c0_42 = arith.constant 0 : index
    %c0_43 = arith.constant 0 : index
    %42 = vector.load %arg14[%c1_41, %c0_42, %c0_43] : memref<10x10x160xf32, #tpu.memory_space<vmem>>, vector<8x8x160xf32>
    %43 = vector.shape_cast %42 : vector<8x8x160xf32> to vector<64x160xf32>
    %44 = arith.truncf %43 : vector<64x160xf32> to vector<64x160xbf16>
    %c0_44 = arith.constant 0 : index
    %c1_45 = arith.constant 1 : index
    %c0_46 = arith.constant 0 : index
    %c0_47 = arith.constant 0 : index
    %c0_48 = arith.constant 0 : index
    %45 = vector.load %arg6[%c0_44, %c1_45, %c0_46, %c0_47, %c0_48] : memref<1x3x3x160x128xbf16, #tpu.memory_space<vmem>>, vector<1x1x1x160x128xbf16>
    %46 = vector.shape_cast %45 : vector<1x1x1x160x128xbf16> to vector<160x128xbf16>
    %cst_49 = arith.constant dense<0.000000e+00> : vector<64x128xf32>
    %47 = tpu.matmul %44, %46, %cst_49 {dimension_numbers = #tpu.dot_dimension_numbers<[1], [0], [0], [1], [0, 0, 1, 1], [], []>} : vector<64x160xbf16>, vector<160x128xbf16>, vector<64x128xf32> -> vector<64x128xf32>
    %48 = arith.addf %41, %47 : vector<64x128xf32>
    %c1_50 = arith.constant 1 : index
    %c1_51 = arith.constant 1 : index
    %c0_52 = arith.constant 0 : index
    %49 = vector.load %arg14[%c1_50, %c1_51, %c0_52] : memref<10x10x160xf32, #tpu.memory_space<vmem>>, vector<8x8x160xf32>
    %50 = vector.shape_cast %49 : vector<8x8x160xf32> to vector<64x160xf32>
    %51 = arith.truncf %50 : vector<64x160xf32> to vector<64x160xbf16>
    %c0_53 = arith.constant 0 : index
    %c1_54 = arith.constant 1 : index
    %c1_55 = arith.constant 1 : index
    %c0_56 = arith.constant 0 : index
    %c0_57 = arith.constant 0 : index
    %52 = vector.load %arg6[%c0_53, %c1_54, %c1_55, %c0_56, %c0_57] : memref<1x3x3x160x128xbf16, #tpu.memory_space<vmem>>, vector<1x1x1x160x128xbf16>
    %53 = vector.shape_cast %52 : vector<1x1x1x160x128xbf16> to vector<160x128xbf16>
    %cst_58 = arith.constant dense<0.000000e+00> : vector<64x128xf32>
    %54 = tpu.matmul %51, %53, %cst_58 {dimension_numbers = #tpu.dot_dimension_numbers<[1], [0], [0], [1], [0, 0, 1, 1], [], []>} : vector<64x160xbf16>, vector<160x128xbf16>, vector<64x128xf32> -> vector<64x128xf32>
    %55 = arith.addf %48, %54 : vector<64x128xf32>
    %c1_59 = arith.constant 1 : index
    %c2_60 = arith.constant 2 : index
    %c0_61 = arith.constant 0 : index
    %56 = vector.load %arg14[%c1_59, %c2_60, %c0_61] : memref<10x10x160xf32, #tpu.memory_space<vmem>>, vector<8x8x160xf32>
    %57 = vector.shape_cast %56 : vector<8x8x160xf32> to vector<64x160xf32>
    %58 = arith.truncf %57 : vector<64x160xf32> to vector<64x160xbf16>
    %c0_62 = arith.constant 0 : index
    %c1_63 = arith.constant 1 : index
    %c2_64 = arith.constant 2 : index
    %c0_65 = arith.constant 0 : index
    %c0_66 = arith.constant 0 : index
    %59 = vector.load %arg6[%c0_62, %c1_63, %c2_64, %c0_65, %c0_66] : memref<1x3x3x160x128xbf16, #tpu.memory_space<vmem>>, vector<1x1x1x160x128xbf16>
    %60 = vector.shape_cast %59 : vector<1x1x1x160x128xbf16> to vector<160x128xbf16>
    %cst_67 = arith.constant dense<0.000000e+00> : vector<64x128xf32>
    %61 = tpu.matmul %58, %60, %cst_67 {dimension_numbers = #tpu.dot_dimension_numbers<[1], [0], [0], [1], [0, 0, 1, 1], [], []>} : vector<64x160xbf16>, vector<160x128xbf16>, vector<64x128xf32> -> vector<64x128xf32>
    %62 = arith.addf %55, %61 : vector<64x128xf32>
    %c2_68 = arith.constant 2 : index
    %c0_69 = arith.constant 0 : index
    %c0_70 = arith.constant 0 : index
    %63 = vector.load %arg14[%c2_68, %c0_69, %c0_70] : memref<10x10x160xf32, #tpu.memory_space<vmem>>, vector<8x8x160xf32>
    %64 = vector.shape_cast %63 : vector<8x8x160xf32> to vector<64x160xf32>
    %65 = arith.truncf %64 : vector<64x160xf32> to vector<64x160xbf16>
    %c0_71 = arith.constant 0 : index
    %c2_72 = arith.constant 2 : index
    %c0_73 = arith.constant 0 : index
    %c0_74 = arith.constant 0 : index
    %c0_75 = arith.constant 0 : index
    %66 = vector.load %arg6[%c0_71, %c2_72, %c0_73, %c0_74, %c0_75] : memref<1x3x3x160x128xbf16, #tpu.memory_space<vmem>>, vector<1x1x1x160x128xbf16>
    %67 = vector.shape_cast %66 : vector<1x1x1x160x128xbf16> to vector<160x128xbf16>
    %cst_76 = arith.constant dense<0.000000e+00> : vector<64x128xf32>
    %68 = tpu.matmul %65, %67, %cst_76 {dimension_numbers = #tpu.dot_dimension_numbers<[1], [0], [0], [1], [0, 0, 1, 1], [], []>} : vector<64x160xbf16>, vector<160x128xbf16>, vector<64x128xf32> -> vector<64x128xf32>
    %69 = arith.addf %62, %68 : vector<64x128xf32>
    %c2_77 = arith.constant 2 : index
    %c1_78 = arith.constant 1 : index
    %c0_79 = arith.constant 0 : index
    %70 = vector.load %arg14[%c2_77, %c1_78, %c0_79] : memref<10x10x160xf32, #tpu.memory_space<vmem>>, vector<8x8x160xf32>
    %71 = vector.shape_cast %70 : vector<8x8x160xf32> to vector<64x160xf32>
    %72 = arith.truncf %71 : vector<64x160xf32> to vector<64x160xbf16>
    %c0_80 = arith.constant 0 : index
    %c2_81 = arith.constant 2 : index
    %c1_82 = arith.constant 1 : index
    %c0_83 = arith.constant 0 : index
    %c0_84 = arith.constant 0 : index
    %73 = vector.load %arg6[%c0_80, %c2_81, %c1_82, %c0_83, %c0_84] : memref<1x3x3x160x128xbf16, #tpu.memory_space<vmem>>, vector<1x1x1x160x128xbf16>
    %74 = vector.shape_cast %73 : vector<1x1x1x160x128xbf16> to vector<160x128xbf16>
    %cst_85 = arith.constant dense<0.000000e+00> : vector<64x128xf32>
    %75 = tpu.matmul %72, %74, %cst_85 {dimension_numbers = #tpu.dot_dimension_numbers<[1], [0], [0], [1], [0, 0, 1, 1], [], []>} : vector<64x160xbf16>, vector<160x128xbf16>, vector<64x128xf32> -> vector<64x128xf32>
    %76 = arith.addf %69, %75 : vector<64x128xf32>
    %c2_86 = arith.constant 2 : index
    %c2_87 = arith.constant 2 : index
    %c0_88 = arith.constant 0 : index
    %77 = vector.load %arg14[%c2_86, %c2_87, %c0_88] : memref<10x10x160xf32, #tpu.memory_space<vmem>>, vector<8x8x160xf32>
    %78 = vector.shape_cast %77 : vector<8x8x160xf32> to vector<64x160xf32>
    %79 = arith.truncf %78 : vector<64x160xf32> to vector<64x160xbf16>
    %c0_89 = arith.constant 0 : index
    %c2_90 = arith.constant 2 : index
    %c2_91 = arith.constant 2 : index
    %c0_92 = arith.constant 0 : index
    %c0_93 = arith.constant 0 : index
    %80 = vector.load %arg6[%c0_89, %c2_90, %c2_91, %c0_92, %c0_93] : memref<1x3x3x160x128xbf16, #tpu.memory_space<vmem>>, vector<1x1x1x160x128xbf16>
    %81 = vector.shape_cast %80 : vector<1x1x1x160x128xbf16> to vector<160x128xbf16>
    %cst_94 = arith.constant dense<0.000000e+00> : vector<64x128xf32>
    %82 = tpu.matmul %79, %81, %cst_94 {dimension_numbers = #tpu.dot_dimension_numbers<[1], [0], [0], [1], [0, 0, 1, 1], [], []>} : vector<64x160xbf16>, vector<160x128xbf16>, vector<64x128xf32> -> vector<64x128xf32>
    %83 = arith.addf %76, %82 : vector<64x128xf32>
    %c0_95 = arith.constant 0 : index
    %c0_96 = arith.constant 0 : index
    %c0_97 = arith.constant 0 : index
    %84 = vector.load %arg7[%c0_95, %c0_96, %c0_97] : memref<1x1x128xf32, #tpu.memory_space<vmem>>, vector<1x1x128xf32>
    %85 = vector.shape_cast %84 : vector<1x1x128xf32> to vector<1x128xf32>
    %86 = vector.broadcast %85 : vector<1x128xf32> to vector<64x128xf32>
    %87 = arith.mulf %83, %86 : vector<64x128xf32>
    %c0_98 = arith.constant 0 : index
    %c0_99 = arith.constant 0 : index
    %c0_100 = arith.constant 0 : index
    %88 = vector.load %arg8[%c0_98, %c0_99, %c0_100] : memref<1x1x128xf32, #tpu.memory_space<vmem>>, vector<1x1x128xf32>
    %89 = vector.shape_cast %88 : vector<1x1x128xf32> to vector<1x128xf32>
    %90 = vector.broadcast %89 : vector<1x128xf32> to vector<64x128xf32>
    %91 = arith.addf %87, %90 : vector<64x128xf32>
    %cst_101 = arith.constant 0.000000e+00 : f32
    %92 = vector.broadcast %cst_101 : f32 to vector<64x128xf32>
    %93 = arith.maximumf %91, %92 : vector<64x128xf32>
    %94 = arith.truncf %93 : vector<64x128xf32> to vector<64x128xbf16>
    %c0_102 = arith.constant 0 : index
    %c0_103 = arith.constant 0 : index
    %c0_104 = arith.constant 0 : index
    %95 = vector.load %arg9[%c0_102, %c0_103, %c0_104] : memref<1x128x64xbf16, #tpu.memory_space<vmem>>, vector<1x128x64xbf16>
    %96 = vector.shape_cast %95 : vector<1x128x64xbf16> to vector<128x64xbf16>
    %cst_105 = arith.constant dense<0.000000e+00> : vector<64x64xf32>
    %97 = tpu.matmul %94, %96, %cst_105 {dimension_numbers = #tpu.dot_dimension_numbers<[1], [0], [0], [1], [0, 0, 1, 1], [], []>} : vector<64x128xbf16>, vector<128x64xbf16>, vector<64x64xf32> -> vector<64x64xf32>
    %c0_106 = arith.constant 0 : index
    %c0_107 = arith.constant 0 : index
    %c0_108 = arith.constant 0 : index
    %98 = vector.load %arg10[%c0_106, %c0_107, %c0_108] : memref<1x1x64xf32, #tpu.memory_space<vmem>>, vector<1x1x64xf32>
    %99 = vector.shape_cast %98 : vector<1x1x64xf32> to vector<1x64xf32>
    %100 = vector.broadcast %99 : vector<1x64xf32> to vector<64x64xf32>
    %101 = arith.mulf %97, %100 : vector<64x64xf32>
    %c0_109 = arith.constant 0 : index
    %c0_110 = arith.constant 0 : index
    %c0_111 = arith.constant 0 : index
    %102 = vector.load %arg11[%c0_109, %c0_110, %c0_111] : memref<1x1x64xf32, #tpu.memory_space<vmem>>, vector<1x1x64xf32>
    %103 = vector.shape_cast %102 : vector<1x1x64xf32> to vector<1x64xf32>
    %104 = vector.broadcast %103 : vector<1x64xf32> to vector<64x64xf32>
    %105 = arith.addf %101, %104 : vector<64x64xf32>
    %106 = arith.addf %105, %3 : vector<64x64xf32>
    %cst_112 = arith.constant 0.000000e+00 : f32
    %107 = vector.broadcast %cst_112 : f32 to vector<64x64xf32>
    %108 = arith.maximumf %106, %107 : vector<64x64xf32>
    %c0_113 = arith.constant 0 : index
    %c0_114 = arith.constant 0 : index
    %109 = vector.load %arg13[%c0_113, %c0_114] : memref<64x64xf32, #tpu.memory_space<vmem>>, vector<64x64xf32>
    tpu.vector_store %arg13[%c0_113, %c0_114], %108 {strides = array<i32>} : memref<64x64xf32, #tpu.memory_space<vmem>>, vector<64x64xf32>,
    %c2_i32 = arith.constant 2 : i32
    %110 = arith.cmpi eq, %arg1, %c2_i32 : i32
    %111 = arith.extui %110 : i1 to i32
    %c0_i32_115 = arith.constant 0 : i32
    %112 = arith.cmpi ne, %111, %c0_i32_115 : i32
    scf.if %112 {
      %c0_116 = arith.constant 0 : index
      %c0_117 = arith.constant 0 : index
      %c0_118 = arith.constant 0 : index
      %113 = vector.load %arg12[%c0_116, %c0_117, %c0_118] : memref<1x64x64xf32, #tpu.memory_space<vmem>>, vector<1x64x64xf32>
      %114 = vector.shape_cast %113 : vector<1x64x64xf32> to vector<64x64xf32>
      %115 = vector.shape_cast %108 : vector<64x64xf32> to vector<1x64x64xf32>
      tpu.vector_store %arg12[%c0_116, %c0_117, %c0_118], %115 {strides = array<i32>} : memref<1x64x64xf32, #tpu.memory_space<vmem>>, vector<1x64x64xf32>,
    } else {
    }
    return
  }
  func.func @transform_0(%arg0: i32, %arg1: i32) -> (i32, i32, i32) {
    %c0_i32 = arith.constant 0 : i32
    %c0_i32_0 = arith.constant 0 : i32
    %c0_i32_1 = arith.constant 0 : i32
    return %arg0, %c0_i32, %c0_i32_0 : i32, i32, i32
  }
  func.func @transform_1(%arg0: i32, %arg1: i32) -> (i32, i32, i32) {
    %c0_i32 = arith.constant 0 : i32
    %c0_i32_0 = arith.constant 0 : i32
    %c0_i32_1 = arith.constant 0 : i32
    return %arg1, %c0_i32, %c0_i32_0 : i32, i32, i32
  }
  func.func @transform_2(%arg0: i32, %arg1: i32) -> (i32, i32, i32) {
    %c0_i32 = arith.constant 0 : i32
    %c0_i32_0 = arith.constant 0 : i32
    %c0_i32_1 = arith.constant 0 : i32
    return %arg1, %c0_i32, %c0_i32_0 : i32, i32, i32
  }
  func.func @transform_3(%arg0: i32, %arg1: i32) -> (i32, i32, i32) {
    %c0_i32 = arith.constant 0 : i32
    %c0_i32_0 = arith.constant 0 : i32
    %c0_i32_1 = arith.constant 0 : i32
    return %arg1, %c0_i32, %c0_i32_0 : i32, i32, i32
  }
  func.func @transform_4(%arg0: i32, %arg1: i32) -> (i32, i32, i32, i32, i32) {
    %c0_i32 = arith.constant 0 : i32
    %c0_i32_0 = arith.constant 0 : i32
    %c0_i32_1 = arith.constant 0 : i32
    %c0_i32_2 = arith.constant 0 : i32
    %c0_i32_3 = arith.constant 0 : i32
    return %arg1, %c0_i32, %c0_i32_0, %c0_i32_1, %c0_i32_2 : i32, i32, i32, i32, i32
  }
  func.func @transform_5(%arg0: i32, %arg1: i32) -> (i32, i32, i32) {
    %c0_i32 = arith.constant 0 : i32
    %c0_i32_0 = arith.constant 0 : i32
    %c0_i32_1 = arith.constant 0 : i32
    return %arg1, %c0_i32, %c0_i32_0 : i32, i32, i32
  }
  func.func @transform_6(%arg0: i32, %arg1: i32) -> (i32, i32, i32) {
    %c0_i32 = arith.constant 0 : i32
    %c0_i32_0 = arith.constant 0 : i32
    %c0_i32_1 = arith.constant 0 : i32
    return %arg1, %c0_i32, %c0_i32_0 : i32, i32, i32
  }
  func.func @transform_7(%arg0: i32, %arg1: i32) -> (i32, i32, i32) {
    %c0_i32 = arith.constant 0 : i32
    %c0_i32_0 = arith.constant 0 : i32
    %c0_i32_1 = arith.constant 0 : i32
    return %arg1, %c0_i32, %c0_i32_0 : i32, i32, i32
  }
  func.func @transform_8(%arg0: i32, %arg1: i32) -> (i32, i32, i32) {
    %c0_i32 = arith.constant 0 : i32
    %c0_i32_0 = arith.constant 0 : i32
    %c0_i32_1 = arith.constant 0 : i32
    return %arg1, %c0_i32, %c0_i32_0 : i32, i32, i32
  }
  func.func @transform_9(%arg0: i32, %arg1: i32) -> (i32, i32, i32) {
    %c0_i32 = arith.constant 0 : i32
    %c0_i32_0 = arith.constant 0 : i32
    %c0_i32_1 = arith.constant 0 : i32
    return %arg1, %c0_i32, %c0_i32_0 : i32, i32, i32
  }
  func.func @transform_10(%arg0: i32, %arg1: i32) -> (i32, i32, i32) {
    %c0_i32 = arith.constant 0 : i32
    %c0_i32_0 = arith.constant 0 : i32
    %c0_i32_1 = arith.constant 0 : i32
    return %arg0, %c0_i32, %c0_i32_0 : i32, i32, i32
  }
}

</mosaic_0001>

<llo_original>
// kernel: tpu_custom_call.1
$region0: #{tpu_custom_call.1}
  #allocation0 [shape = 'u32[]', space=smem, size = 0x4, offset = 0x4, fixed_abs, tag = 'smem constant byte address 0x4 - core index']
  #allocation1 [shape = 'u32[144,128]{1,0:T(1,128)}', space=vmem, size = 0x12000, scoped, tag = 'internal scratch']
  #allocation2 [shape = 'f32[64,64]{1,0:T(8,128)}', space=vmem, size = 0x8000, scoped, tag = 'scratch operand']
  #allocation3 [shape = 'f32[10,10,160]{2,1,0:T(8,128)}', space=vmem, size = 0x28000, scoped, tag = 'scratch operand']
  %s0 = inlined_call_operand.hbm [shape: f32[2,64,64], index: 0, kind: input, shape index: {}]
  %s1 = inlined_call_operand.hbm [shape: bf16[3,64,128], index: 1, kind: input, shape index: {}]
  %s2 = inlined_call_operand.hbm [shape: f32[3,1,128], index: 2, kind: input, shape index: {}]
  %s3 = inlined_call_operand.hbm [shape: f32[3,1,128], index: 3, kind: input, shape index: {}]
  %s4 = inlined_call_operand.hbm [shape: bf16[3,3,3,160,128], index: 4, kind: input, shape index: {}]
  %s5 = inlined_call_operand.hbm [shape: f32[3,1,128], index: 5, kind: input, shape index: {}]
  %s6 = inlined_call_operand.hbm [shape: f32[3,1,128], index: 6, kind: input, shape index: {}]
  %s7 = inlined_call_operand.vmem [shape: bf16[3,128,64], index: 7, kind: input, shape index: {}]
  %s8 = inlined_call_operand.hbm [shape: f32[3,1,64], index: 8, kind: input, shape index: {}]
  %s9 = inlined_call_operand.hbm [shape: f32[3,1,64], index: 9, kind: input, shape index: {}]
  %s10 = inlined_call_operand.hbm [shape: f32[2,64,64], index: 10, kind: output, shape index: {}]
  %s11 = sld [smem:[#allocation0]]
  $region117: #{tpu_custom_call.1} parent=0
    _
  %s13 = ssub.s32 1, %s11
  %s14 = scalar_select 0, %s13, %s11
  $region1: #{tpu_custom_call.1} parent=0
    #allocation4 [shape = 'u8[65536]{0}', space=vmem, size = 0x10000, scoped, tag = 'input window, operand 0']
    #allocation5 [shape = 's32[2]{0}', space=sflag, size = 0x8, scoped, tag = 'scoped memory for tpu_custom_call.1']
    #allocation6 [shape = 's32[2]{0}', space=sflag, size = 0x8, scoped, tag = 'scoped memory for tpu_custom_call.1']
    #allocation7 [shape = 'u8[32768]{0}', space=vmem, size = 0x8000, scoped, tag = 'input window, operand 1']
    #allocation8 [shape = 's32[2]{0}', space=sflag, size = 0x8, scoped, tag = 'scoped memory for tpu_custom_call.1']
    #allocation9 [shape = 'u8[1024]{0}', space=vmem, size = 0x400, scoped, tag = 'input window, operand 2']
    #allocation10 [shape = 'u8[1024]{0}', space=vmem, size = 0x400, scoped, tag = 'input window, operand 3']
    #allocation11 [shape = 's32[2]{0}', space=sflag, size = 0x8, scoped, tag = 'scoped memory for tpu_custom_call.1']
    #allocation12 [shape = 'u8[737280]{0}', space=vmem, size = 0xb4000, scoped, tag = 'input window, operand 4']
    #allocation13 [shape = 'u8[1024]{0}', space=vmem, size = 0x400, scoped, tag = 'input window, operand 5']
    #allocation14 [shape = 's32[2]{0}', space=sflag, size = 0x8, scoped, tag = 'scoped memory for tpu_custom_call.1']
    #allocation15 [shape = 'u8[1024]{0}', space=vmem, size = 0x400, scoped, tag = 'input window, operand 6']
    #allocation16 [shape = 'u8[1024]{0}', space=vmem, size = 0x400, scoped, tag = 'input window, operand 8']
    #allocation17 [shape = 's32[2]{0}', space=sflag, size = 0x8, scoped, tag = 'scoped memory for tpu_custom_call.1']
    #allocation18 [shape = 'u8[1024]{0}', space=vmem, size = 0x400, scoped, tag = 'input window, operand 9']
    #allocation19 [shape = 'u8[65536]{0}', space=vmem, size = 0x10000, scoped, tag = 'output window, operand 0']
    %15 = vsyncpa [#allocation5], 0
    %s16 = scalar_lea.sflag [#allocation5], 1
    %17 = vsyncpa %s16, 0
    %18 = vsyncpa [#allocation8], 0
    %s19 = scalar_lea.sflag [#allocation8], 1
    %20 = vsyncpa %s19, 0
    %21 = vsyncpa [#allocation11], 0
    %s22 = scalar_lea.sflag [#allocation11], 1
    %23 = vsyncpa %s22, 0
    %24 = vsyncpa [#allocation14], 0
    %s25 = scalar_lea.sflag [#allocation14], 1
    %26 = vsyncpa %s25, 0
    %27 = vsyncpa [#allocation17], 0
    %s28 = scalar_lea.sflag [#allocation17], 1
    %29 = vsyncpa %s28, 0
    %30 = vsyncpa [#allocation6], 0
    %s31 = scalar_lea.sflag [#allocation6], 1
    %32 = vsyncpa %s31, 0
    loop: start=0, step=1, limit=8
    $region2: #{tpu_custom_call.1} parent=1 // loop_pre_header
      _
    $region3: #{tpu_custom_call.1} parent=1 // loop_header
      %s34 = sphi 0, %s38
      %p35 = scmp.ge.s32.totalorder %s34, 8
      %s41 = sphi 0, %s53
      %s42 = sphi 0, %s49
      %s43 = sphi 0, %s41
      %s44 = sphi 0, %s42
      %s45 = sphi 0, %s43
      %s46 = sphi 0, %s44
      %s56 = sphi 0, %s58
      %s59 = sphi 0, %s56
      %s60 = sphi 0, %s59
      %s76 = sphi 0, %s60
      %s82 = sphi 0, %s84
      %s85 = sphi 0, %s82
      %s86 = sphi 0, %s85
      %s102 = sphi 0, %s86
      %s108 = sphi 0, %s110
      %s111 = sphi 0, %s108
      %s112 = sphi 0, %s111
      %s128 = sphi 0, %s112
      %s134 = sphi 0, %s136
      %s137 = sphi 0, %s134
      %s138 = sphi 0, %s137
      %s154 = sphi 0, %s138
      %s160 = sphi 0, %s162
      %s163 = sphi 0, %s160
      %s164 = sphi 0, %s163
      %s180 = sphi 0, %s164
      %s186 = sphi 0, %s188
      %s189 = sphi 0, %s186
      %s190 = sphi 0, %s189
      %s206 = sphi 0, %s190
      %s212 = sphi 0, %s214
      %s215 = sphi 0, %s212
      %s216 = sphi 0, %s215
      %s232 = sphi 0, %s216
      %s238 = sphi 0, %s240
      %s241 = sphi 0, %s238
      %s242 = sphi 0, %s241
      %s258 = sphi 0, %s242
      %s264 = sphi 0, %s266
      %s267 = sphi 0, %s264
      %s268 = sphi 0, %s267
      %s284 = sphi 0, %s268
      %s290 = sphi 0, %s292
      %s293 = sphi 0, %s290
      %s294 = sphi 0, %s293
      %s310 = sphi 0, %s294
      %s316 = sphi 0, %s318
      %s319 = sphi 0, %s316
      %s320 = sphi 0, %s319
      %s336 = sphi 0, %s320
    $region4: #{tpu_custom_call.1} parent=1 // loop_header_branch
      %37 = sbr.rel (%p35) target = $region8
    $region5: #{tpu_custom_call.1} parent=1 // loop_body
      %s39 = ssub.s32 %s34, 1
      %s40 = ssub.s32 %s34, 2
      %s47 = sadd.s32 1, %s42
      %p48 = scmp.ge.s32.totalorder %s47, 3
      %s49 = scalar_select %p48, 0, %s47
      %s50 = sadd.s32 1, %s41
      %s51 = scalar_select %p48, %s50, %s41
      %p52 = scmp.ge.s32.totalorder %s51, 2
      %s53 = scalar_select %p52, 0, %s51
      %s54 = ssub.s32 %s41, %s53
      %p55 = scmp.eq.s32.totalorder %s54, 0
      %s57 = sadd.s32 %s56, 1
      %s58 = scalar_select %p55, %s56, %s57
      %p61 = pneg %p55
      %p62 = scmp.eq.s32.totalorder %s34, 5
      %p63 = por %p61, %p62
      %p64 = scmp.ne.s32.totalorder %s56, %s59
      %p65 = scmp.eq.s32.totalorder %s34, 0
      %p66 = por %p64, %p65
      %p67 = scmp.ne.s32.totalorder %s56, %s59
      %p68 = scmp.eq.s32.totalorder %s39, 5
      %p69 = por %p67, %p68
      %p70 = scmp.ne.s32.totalorder %s59, %s60
      %p71 = scmp.eq.s32.totalorder %s39, 0
      %p72 = por %p70, %p71
      %p73 = scmp.ne.s32.totalorder %s59, %s60
      %p74 = scmp.eq.s32.totalorder %s40, 5
      %p75 = por %p73, %p74
      %p77 = scmp.ne.s32.totalorder %s60, %s76
      %p78 = scmp.eq.s32.totalorder %s40, 0
      %p79 = por %p77, %p78
      %s80 = ssub.s32 %s42, %s49
      %p81 = scmp.eq.s32.totalorder %s80, 0
      %s83 = sadd.s32 %s82, 1
      %s84 = scalar_select %p81, %s82, %s83
      %p87 = pneg %p81
      %p88 = scmp.eq.s32.totalorder %s34, 5
      %p89 = por %p87, %p88
      %p90 = scmp.ne.s32.totalorder %s82, %s85
      %p91 = scmp.eq.s32.totalorder %s34, 0
      %p92 = por %p90, %p91
      %p93 = scmp.ne.s32.totalorder %s82, %s85
      %p94 = scmp.eq.s32.totalorder %s39, 5
      %p95 = por %p93, %p94
      %p96 = scmp.ne.s32.totalorder %s85, %s86
      %p97 = scmp.eq.s32.totalorder %s39, 0
      %p98 = por %p96, %p97
      %p99 = scmp.ne.s32.totalorder %s85, %s86
      %p100 = scmp.eq.s32.totalorder %s40, 5
      %p101 = por %p99, %p100
      %p103 = scmp.ne.s32.totalorder %s86, %s102
      %p104 = scmp.eq.s32.totalorder %s40, 0
      %p105 = por %p103, %p104
      %s106 = ssub.s32 %s42, %s49
      %p107 = scmp.eq.s32.totalorder %s106, 0
      %s109 = sadd.s32 %s108, 1
      %s110 = scalar_select %p107, %s108, %s109
      %p113 = pneg %p107
      %p114 = scmp.eq.s32.totalorder %s34, 5
      %p115 = por %p113, %p114
      %p116 = scmp.ne.s32.totalorder %s108, %s111
      %p117 = scmp.eq.s32.totalorder %s34, 0
      %p118 = por %p116, %p117
      %p119 = scmp.ne.s32.totalorder %s108, %s111
      %p120 = scmp.eq.s32.totalorder %s39, 5
      %p121 = por %p119, %p120
      %p122 = scmp.ne.s32.totalorder %s111, %s112
      %p123 = scmp.eq.s32.totalorder %s39, 0
      %p124 = por %p122, %p123
      %p125 = scmp.ne.s32.totalorder %s111, %s112
      %p126 = scmp.eq.s32.totalorder %s40, 5
      %p127 = por %p125, %p126
      %p129 = scmp.ne.s32.totalorder %s112, %s128
      %p130 = scmp.eq.s32.totalorder %s40, 0
      %p131 = por %p129, %p130
      %s132 = ssub.s32 %s42, %s49
      %p133 = scmp.eq.s32.totalorder %s132, 0
      %s135 = sadd.s32 %s134, 1
      %s136 = scalar_select %p133, %s134, %s135
      %p139 = pneg %p133
      %p140 = scmp.eq.s32.totalorder %s34, 5
      %p141 = por %p139, %p140
      %p142 = scmp.ne.s32.totalorder %s134, %s137
      %p143 = scmp.eq.s32.totalorder %s34, 0
      %p144 = por %p142, %p143
      %p145 = scmp.ne.s32.totalorder %s134, %s137
      %p146 = scmp.eq.s32.totalorder %s39, 5
      %p147 = por %p145, %p146
      %p148 = scmp.ne.s32.totalorder %s137, %s138
      %p149 = scmp.eq.s32.totalorder %s39, 0
      %p150 = por %p148, %p149
      %p151 = scmp.ne.s32.totalorder %s137, %s138
      %p152 = scmp.eq.s32.totalorder %s40, 5
      %p153 = por %p151, %p152
      %p155 = scmp.ne.s32.totalorder %s138, %s154
      %p156 = scmp.eq.s32.totalorder %s40, 0
      %p157 = por %p155, %p156
      %s158 = ssub.s32 %s42, %s49
      %p159 = scmp.eq.s32.totalorder %s158, 0
      %s161 = sadd.s32 %s160, 1
      %s162 = scalar_select %p159, %s160, %s161
      %p165 = pneg %p159
      %p166 = scmp.eq.s32.totalorder %s34, 5
      %p167 = por %p165, %p166
      %p168 = scmp.ne.s32.totalorder %s160, %s163
      %p169 = scmp.eq.s32.totalorder %s34, 0
      %p170 = por %p168, %p169
      %p171 = scmp.ne.s32.totalorder %s160, %s163
      %p172 = scmp.eq.s32.totalorder %s39, 5
      %p173 = por %p171, %p172
      %p174 = scmp.ne.s32.totalorder %s163, %s164
      %p175 = scmp.eq.s32.totalorder %s39, 0
      %p176 = por %p174, %p175
      %p177 = scmp.ne.s32.totalorder %s163, %s164
      %p178 = scmp.eq.s32.totalorder %s40, 5
      %p179 = por %p177, %p178
      %p181 = scmp.ne.s32.totalorder %s164, %s180
      %p182 = scmp.eq.s32.totalorder %s40, 0
      %p183 = por %p181, %p182
      %s184 = ssub.s32 %s42, %s49
      %p185 = scmp.eq.s32.totalorder %s184, 0
      %s187 = sadd.s32 %s186, 1
      %s188 = scalar_select %p185, %s186, %s187
      %p191 = pneg %p185
      %p192 = scmp.eq.s32.totalorder %s34, 5
      %p193 = por %p191, %p192
      %p194 = scmp.ne.s32.totalorder %s186, %s189
      %p195 = scmp.eq.s32.totalorder %s34, 0
      %p196 = por %p194, %p195
      %p197 = scmp.ne.s32.totalorder %s186, %s189
      %p198 = scmp.eq.s32.totalorder %s39, 5
      %p199 = por %p197, %p198
      %p200 = scmp.ne.s32.totalorder %s189, %s190
      %p201 = scmp.eq.s32.totalorder %s39, 0
      %p202 = por %p200, %p201
      %p203 = scmp.ne.s32.totalorder %s189, %s190
      %p204 = scmp.eq.s32.totalorder %s40, 5
      %p205 = por %p203, %p204
      %p207 = scmp.ne.s32.totalorder %s190, %s206
      %p208 = scmp.eq.s32.totalorder %s40, 0
      %p209 = por %p207, %p208
      %s210 = ssub.s32 %s42, %s49
      %p211 = scmp.eq.s32.totalorder %s210, 0
      %s213 = sadd.s32 %s212, 1
      %s214 = scalar_select %p211, %s212, %s213
      %p217 = pneg %p211
      %p218 = scmp.eq.s32.totalorder %s34, 5
      %p219 = por %p217, %p218
      %p220 = scmp.ne.s32.totalorder %s212, %s215
      %p221 = scmp.eq.s32.totalorder %s34, 0
      %p222 = por %p220, %p221
      %p223 = scmp.ne.s32.totalorder %s212, %s215
      %p224 = scmp.eq.s32.totalorder %s39, 5
      %p225 = por %p223, %p224
      %p226 = scmp.ne.s32.totalorder %s215, %s216
      %p227 = scmp.eq.s32.totalorder %s39, 0
      %p228 = por %p226, %p227
      %p229 = scmp.ne.s32.totalorder %s215, %s216
      %p230 = scmp.eq.s32.totalorder %s40, 5
      %p231 = por %p229, %p230
      %p233 = scmp.ne.s32.totalorder %s216, %s232
      %p234 = scmp.eq.s32.totalorder %s40, 0
      %p235 = por %p233, %p234
      %s236 = ssub.s32 %s42, %s49
      %p237 = scmp.eq.s32.totalorder %s236, 0
      %s239 = sadd.s32 %s238, 1
      %s240 = scalar_select %p237, %s238, %s239
      %p243 = pneg %p237
      %p244 = scmp.eq.s32.totalorder %s34, 5
      %p245 = por %p243, %p244
      %p246 = scmp.ne.s32.totalorder %s238, %s241
      %p247 = scmp.eq.s32.totalorder %s34, 0
      %p248 = por %p246, %p247
      %p249 = scmp.ne.s32.totalorder %s238, %s241
      %p250 = scmp.eq.s32.totalorder %s39, 5
      %p251 = por %p249, %p250
      %p252 = scmp.ne.s32.totalorder %s241, %s242
      %p253 = scmp.eq.s32.totalorder %s39, 0
      %p254 = por %p252, %p253
      %p255 = scmp.ne.s32.totalorder %s241, %s242
      %p256 = scmp.eq.s32.totalorder %s40, 5
      %p257 = por %p255, %p256
      %p259 = scmp.ne.s32.totalorder %s242, %s258
      %p260 = scmp.eq.s32.totalorder %s40, 0
      %p261 = por %p259, %p260
      %s262 = ssub.s32 %s42, %s49
      %p263 = scmp.eq.s32.totalorder %s262, 0
      %s265 = sadd.s32 %s264, 1
      %s266 = scalar_select %p263, %s264, %s265
      %p269 = pneg %p263
      %p270 = scmp.eq.s32.totalorder %s34, 5
      %p271 = por %p269, %p270
      %p272 = scmp.ne.s32.totalorder %s264, %s267
      %p273 = scmp.eq.s32.totalorder %s34, 0
      %p274 = por %p272, %p273
      %p275 = scmp.ne.s32.totalorder %s264, %s267
      %p276 = scmp.eq.s32.totalorder %s39, 5
      %p277 = por %p275, %p276
      %p278 = scmp.ne.s32.totalorder %s267, %s268
      %p279 = scmp.eq.s32.totalorder %s39, 0
      %p280 = por %p278, %p279
      %p281 = scmp.ne.s32.totalorder %s267, %s268
      %p282 = scmp.eq.s32.totalorder %s40, 5
      %p283 = por %p281, %p282
      %p285 = scmp.ne.s32.totalorder %s268, %s284
      %p286 = scmp.eq.s32.totalorder %s40, 0
      %p287 = por %p285, %p286
      %s288 = ssub.s32 %s42, %s49
      %p289 = scmp.eq.s32.totalorder %s288, 0
      %s291 = sadd.s32 %s290, 1
      %s292 = scalar_select %p289, %s290, %s291
      %p295 = pneg %p289
      %p296 = scmp.eq.s32.totalorder %s34, 5
      %p297 = por %p295, %p296
      %p298 = scmp.ne.s32.totalorder %s290, %s293
      %p299 = scmp.eq.s32.totalorder %s34, 0
      %p300 = por %p298, %p299
      %p301 = scmp.ne.s32.totalorder %s290, %s293
      %p302 = scmp.eq.s32.totalorder %s39, 5
      %p303 = por %p301, %p302
      %p304 = scmp.ne.s32.totalorder %s293, %s294
      %p305 = scmp.eq.s32.totalorder %s39, 0
      %p306 = por %p304, %p305
      %p307 = scmp.ne.s32.totalorder %s293, %s294
      %p308 = scmp.eq.s32.totalorder %s40, 5
      %p309 = por %p307, %p308
      %p311 = scmp.ne.s32.totalorder %s294, %s310
      %p312 = scmp.eq.s32.totalorder %s40, 0
      %p313 = por %p311, %p312
      %s314 = ssub.s32 %s41, %s53
      %p315 = scmp.eq.s32.totalorder %s314, 0
      %s317 = sadd.s32 %s316, 1
      %s318 = scalar_select %p315, %s316, %s317
      %p321 = pneg %p315
      %p322 = scmp.eq.s32.totalorder %s34, 5
      %p323 = por %p321, %p322
      %p324 = scmp.ne.s32.totalorder %s316, %s319
      %p325 = scmp.eq.s32.totalorder %s34, 0
      %p326 = por %p324, %p325
      %p327 = scmp.ne.s32.totalorder %s316, %s319
      %p328 = scmp.eq.s32.totalorder %s39, 5
      %p329 = por %p327, %p328
      %p330 = scmp.ne.s32.totalorder %s319, %s320
      %p331 = scmp.eq.s32.totalorder %s39, 0
      %p332 = por %p330, %p331
      %p333 = scmp.ne.s32.totalorder %s319, %s320
      %p334 = scmp.eq.s32.totalorder %s40, 5
      %p335 = por %p333, %p334
      %p337 = scmp.ne.s32.totalorder %s320, %s336
      %p338 = scmp.eq.s32.totalorder %s40, 0
      %p339 = por %p337, %p338
      %p340 = scmp.le.s32.totalorder 1, %s34
      %p341 = scmp.lt.s32.totalorder %s34, 7
      %p342 = pnand %p340, %p341
      %p343 = pneg %p342
      // Predicated region
      $region9: #{tpu_custom_call.1} parent=5 // pred_check
        _
      $region10: #{tpu_custom_call.1} parent=5 // pred_check_branch
        %345 = sbr.rel (%p342) target = $region12
      $region11: #{tpu_custom_call.1} parent=5 // pred_region
        %s346 = ssub.s32 %s34, 1
      $region12: #{tpu_custom_call.1} parent=5 // pred_fallthru
        _
      %p347 = scmp.lt.s32.totalorder %s34, 6
      // Predicated region
      $region13: #{tpu_custom_call.1} parent=5 // pred_check
        %p348 = pneg %p347
      $region14: #{tpu_custom_call.1} parent=5 // pred_check_branch
        %350 = sbr.rel (%p348) target = $region16
      $region15: #{tpu_custom_call.1} parent=5 // pred_region
        // Predicated region
        $region17: #{tpu_custom_call.1} parent=15 // pred_check
          %p351 = pneg %p66
        $region18: #{tpu_custom_call.1} parent=15 // pred_check_branch
          %353 = sbr.rel (%p351) target = $region20
        $region19: #{tpu_custom_call.1} parent=15 // pred_region
          %s354 = sand.u32 %s56, 1
          %s355 = scalar_lea.sflag [#allocation5], %s354
          %s356 = sand.u32 %s56, 1
          %s357 = smul.addr %s356, 64
          %s358 = scalar_lea.vmem [#allocation4], %s357
          %s360 = ssub.s32 1024, 1024
          %361 = vsyncadd %s355, %s360
          %s362 = smul.addr %s41, 8
          %s363 = smul.addr %s362, 128
          %s364 = scalar_lea.hbm %s0, %s363
          %s365 = sshll.u32 %s358, 4
          %s366 = int_to_ptr.vmem [resolvable:$true] %s365
          %371 = dma.hbm_to_vmem [thread:$0]  %s364, 1024, %s366, %s355, 128, 128, 8
        $region20: #{tpu_custom_call.1} parent=15 // pred_fallthru
          _
        // Predicated region
        $region21: #{tpu_custom_call.1} parent=15 // pred_check
          %p372 = pneg %p92
        $region22: #{tpu_custom_call.1} parent=15 // pred_check_branch
          %374 = sbr.rel (%p372) target = $region24
        $region23: #{tpu_custom_call.1} parent=15 // pred_region
          %s375 = sand.u32 %s34, 1
          %s376 = scalar_lea.sflag [#allocation8], %s375
          %s377 = sand.u32 %s82, 1
          %s378 = smul.addr %s377, 32
          %s379 = scalar_lea.vmem [#allocation7], %s378
          %s381 = ssub.s32 512, 512
          %382 = vsyncadd %s376, %s381
          %s383 = smul.addr %s42, 8
          %s384 = smul.addr %s383, 64
          %s385 = scalar_lea.hbm %s1, %s384
          %s386 = sshll.u32 %s379, 4
          %s387 = int_to_ptr.vmem [resolvable:$true] %s386
          %392 = dma.hbm_to_vmem [thread:$0]  %s385, 512, %s387, %s376, 64, 64, 4
        $region24: #{tpu_custom_call.1} parent=15 // pred_fallthru
          _
        // Predicated region
        $region25: #{tpu_custom_call.1} parent=15 // pred_check
          %p393 = pneg %p118
        $region26: #{tpu_custom_call.1} parent=15 // pred_check_branch
          %395 = sbr.rel (%p393) target = $region28
        $region27: #{tpu_custom_call.1} parent=15 // pred_region
          %s396 = sand.u32 %s34, 1
          %s397 = scalar_lea.sflag [#allocation8], %s396
          %s398 = sand.u32 %s108, 1
          %s399 = scalar_lea.vmem [#allocation9], %s398
          %s401 = ssub.s32 16, 16
          %402 = vsyncadd %s397, %s401
          %s403 = smul.addr %s42, 16
          %s404 = scalar_lea.hbm %s2, %s403
          %s406 = sshll.u32 %s399, 4
          %s407 = int_to_ptr.vmem [resolvable:$true] %s406
          %409 = dma.hbm_to_vmem [thread:$0]  %s404, 16, %s407, %s397
        $region28: #{tpu_custom_call.1} parent=15 // pred_fallthru
          _
        // Predicated region
        $region29: #{tpu_custom_call.1} parent=15 // pred_check
          %p410 = pneg %p144
        $region30: #{tpu_custom_call.1} parent=15 // pred_check_branch
          %412 = sbr.rel (%p410) target = $region32
        $region31: #{tpu_custom_call.1} parent=15 // pred_region
          %s413 = sand.u32 %s34, 1
          %s414 = scalar_lea.sflag [#allocation11], %s413
          %s415 = sand.u32 %s134, 1
          %s416 = scalar_lea.vmem [#allocation10], %s415
          %s418 = ssub.s32 16, 16
          %419 = vsyncadd %s414, %s418
          %s420 = smul.addr %s42, 16
          %s421 = scalar_lea.hbm %s3, %s420
          %s423 = sshll.u32 %s416, 4
          %s424 = int_to_ptr.vmem [resolvable:$true] %s423
          %426 = dma.hbm_to_vmem [thread:$0]  %s421, 16, %s424, %s414
        $region32: #{tpu_custom_call.1} parent=15 // pred_fallthru
          _
        // Predicated region
        $region33: #{tpu_custom_call.1} parent=15 // pred_check
          %p427 = pneg %p170
        $region34: #{tpu_custom_call.1} parent=15 // pred_check_branch
          %429 = sbr.rel (%p427) target = $region36
        $region35: #{tpu_custom_call.1} parent=15 // pred_region
          %s430 = sand.u32 %s34, 1
          %s431 = scalar_lea.sflag [#allocation11], %s430
          %s432 = sand.u32 %s160, 1
          %s433 = smul.addr %s432, 720
          %s434 = scalar_lea.vmem [#allocation12], %s433
          %s436 = ssub.s32 11520, 11520
          %437 = vsyncadd %s431, %s436
          %s438 = smul.addr %s42, 180
          %s439 = smul.addr %s438, 64
          %s440 = scalar_lea.hbm %s4, %s439
          %s441 = sshll.u32 %s434, 4
          %s442 = int_to_ptr.vmem [resolvable:$true] %s441
          %447 = dma.hbm_to_vmem [thread:$0]  %s440, 11520, %s442, %s431, 64, 64, 4
        $region36: #{tpu_custom_call.1} parent=15 // pred_fallthru
          _
        // Predicated region
        $region37: #{tpu_custom_call.1} parent=15 // pred_check
          %p448 = pneg %p196
        $region38: #{tpu_custom_call.1} parent=15 // pred_check_branch
          %450 = sbr.rel (%p448) target = $region40
        $region39: #{tpu_custom_call.1} parent=15 // pred_region
          %s451 = sand.u32 %s34, 1
          %s452 = scalar_lea.sflag [#allocation14], %s451
          %s453 = sand.u32 %s186, 1
          %s454 = scalar_lea.vmem [#allocation13], %s453
          %s456 = ssub.s32 16, 16
          %457 = vsyncadd %s452, %s456
          %s458 = smul.addr %s42, 16
          %s459 = scalar_lea.hbm %s5, %s458
          %s461 = sshll.u32 %s454, 4
          %s462 = int_to_ptr.vmem [resolvable:$true] %s461
          %464 = dma.hbm_to_vmem [thread:$0]  %s459, 16, %s462, %s452
        $region40: #{tpu_custom_call.1} parent=15 // pred_fallthru
          _
        // Predicated region
        $region41: #{tpu_custom_call.1} parent=15 // pred_check
          %p465 = pneg %p222
        $region42: #{tpu_custom_call.1} parent=15 // pred_check_branch
          %467 = sbr.rel (%p465) target = $region44
        $region43: #{tpu_custom_call.1} parent=15 // pred_region
          %s468 = sand.u32 %s34, 1
          %s469 = scalar_lea.sflag [#allocation14], %s468
          %s470 = sand.u32 %s212, 1
          %s471 = scalar_lea.vmem [#allocation15], %s470
          %s473 = ssub.s32 16, 16
          %474 = vsyncadd %s469, %s473
          %s475 = smul.addr %s42, 16
          %s476 = scalar_lea.hbm %s6, %s475
          %s478 = sshll.u32 %s471, 4
          %s479 = int_to_ptr.vmem [resolvable:$true] %s478
          %481 = dma.hbm_to_vmem [thread:$0]  %s476, 16, %s479, %s469
        $region44: #{tpu_custom_call.1} parent=15 // pred_fallthru
          _
        // Predicated region
        $region45: #{tpu_custom_call.1} parent=15 // pred_check
          %p482 = pneg %p248
        $region46: #{tpu_custom_call.1} parent=15 // pred_check_branch
          %484 = sbr.rel (%p482) target = $region48
        $region47: #{tpu_custom_call.1} parent=15 // pred_region
          %p485 = scmp.lt.s32.totalorder %s42, 2
          %s486 = scalar_select %p485, %s42, 2
          %s487 = smul.addr %s486, 16
          %s488 = smul.addr %s487, 4
          %s489 = scalar_lea.vmem %s7, %s488
        $region48: #{tpu_custom_call.1} parent=15 // pred_fallthru
          _
        // Predicated region
        $region49: #{tpu_custom_call.1} parent=15 // pred_check
          %p490 = pneg %p274
        $region50: #{tpu_custom_call.1} parent=15 // pred_check_branch
          %492 = sbr.rel (%p490) target = $region52
        $region51: #{tpu_custom_call.1} parent=15 // pred_region
          %s493 = sand.u32 %s34, 1
          %s494 = scalar_lea.sflag [#allocation17], %s493
          %s495 = sand.u32 %s264, 1
          %s496 = scalar_lea.vmem [#allocation16], %s495
          %s498 = ssub.s32 16, 16
          %499 = vsyncadd %s494, %s498
          %s500 = smul.addr %s42, 16
          %s501 = scalar_lea.hbm %s8, %s500
          %s503 = sshll.u32 %s496, 4
          %s504 = int_to_ptr.vmem [resolvable:$true] %s503
          %506 = dma.hbm_to_vmem [thread:$0]  %s501, 16, %s504, %s494
        $region52: #{tpu_custom_call.1} parent=15 // pred_fallthru
          _
        // Predicated region
        $region53: #{tpu_custom_call.1} parent=15 // pred_check
          %p507 = pneg %p300
        $region54: #{tpu_custom_call.1} parent=15 // pred_check_branch
          %509 = sbr.rel (%p507) target = $region56
        $region55: #{tpu_custom_call.1} parent=15 // pred_region
          %s510 = sand.u32 %s34, 1
          %s511 = scalar_lea.sflag [#allocation17], %s510
          %s512 = sand.u32 %s290, 1
          %s513 = scalar_lea.vmem [#allocation18], %s512
          %s515 = ssub.s32 16, 16
          %516 = vsyncadd %s511, %s515
          %s517 = smul.addr %s42, 16
          %s518 = scalar_lea.hbm %s9, %s517
          %s520 = sshll.u32 %s513, 4
          %s521 = int_to_ptr.vmem [resolvable:$true] %s520
          %523 = dma.hbm_to_vmem [thread:$0]  %s518, 16, %s521, %s511
        $region56: #{tpu_custom_call.1} parent=15 // pred_fallthru
          _
      $region16: #{tpu_custom_call.1} parent=5 // pred_fallthru
        _
      %p524 = scmp.le.s32.totalorder 1, %s34
      %p525 = scmp.lt.s32.totalorder %s34, 7
      %p526 = pnand %p524, %p525
      %p527 = pneg %p526
      // Predicated region
      $region57: #{tpu_custom_call.1} parent=5 // pred_check
        _
      $region58: #{tpu_custom_call.1} parent=5 // pred_check_branch
        %529 = sbr.rel (%p526) target = $region60
      $region59: #{tpu_custom_call.1} parent=5 // pred_region
        %s530 = ssub.s32 %s34, 1
        %s531 = sand.u32 %s59, 1
        %s532 = scalar_lea.sflag [#allocation5], %s531
        %s533 = sand.u32 %s59, 1
        %s534 = smul.addr %s533, 64
        %s535 = scalar_lea.vmem [#allocation4], %s534
        // Predicated region
        $region61: #{tpu_custom_call.1} parent=59 // pred_check
          %p536 = pneg %p72
        $region62: #{tpu_custom_call.1} parent=59 // pred_check_branch
          %538 = sbr.rel (%p536) target = $region64
        $region63: #{tpu_custom_call.1} parent=59 // pred_region
          %539 = dma.done %s532, 1024
        $region64: #{tpu_custom_call.1} parent=59 // pred_fallthru
          _
        %s540 = sand.u32 %s39, 1
        %s541 = scalar_lea.sflag [#allocation8], %s540
        %s542 = sand.u32 %s85, 1
        %s543 = smul.addr %s542, 32
        %s544 = scalar_lea.vmem [#allocation7], %s543
        // Predicated region
        $region65: #{tpu_custom_call.1} parent=59 // pred_check
          %p545 = pneg %p98
        $region66: #{tpu_custom_call.1} parent=59 // pred_check_branch
          %547 = sbr.rel (%p545) target = $region68
        $region67: #{tpu_custom_call.1} parent=59 // pred_region
          %548 = dma.done %s541, 512
        $region68: #{tpu_custom_call.1} parent=59 // pred_fallthru
          _
        %s549 = sand.u32 %s39, 1
        %s550 = scalar_lea.sflag [#allocation8], %s549
        %s551 = sand.u32 %s111, 1
        %s552 = scalar_lea.vmem [#allocation9], %s551
        // Predicated region
        $region69: #{tpu_custom_call.1} parent=59 // pred_check
          %p553 = pneg %p124
        $region70: #{tpu_custom_call.1} parent=59 // pred_check_branch
          %555 = sbr.rel (%p553) target = $region72
        $region71: #{tpu_custom_call.1} parent=59 // pred_region
          %556 = dma.done %s550, 16
        $region72: #{tpu_custom_call.1} parent=59 // pred_fallthru
          _
        %s557 = sand.u32 %s39, 1
        %s558 = scalar_lea.sflag [#allocation11], %s557
        %s559 = sand.u32 %s137, 1
        %s560 = scalar_lea.vmem [#allocation10], %s559
        // Predicated region
        $region73: #{tpu_custom_call.1} parent=59 // pred_check
          %p561 = pneg %p150
        $region74: #{tpu_custom_call.1} parent=59 // pred_check_branch
          %563 = sbr.rel (%p561) target = $region76
        $region75: #{tpu_custom_call.1} parent=59 // pred_region
          %564 = dma.done %s558, 16
        $region76: #{tpu_custom_call.1} parent=59 // pred_fallthru
          _
        %s565 = sand.u32 %s39, 1
        %s566 = scalar_lea.sflag [#allocation11], %s565
        %s567 = sand.u32 %s163, 1
        %s568 = smul.addr %s567, 720
        %s569 = scalar_lea.vmem [#allocation12], %s568
        // Predicated region
        $region77: #{tpu_custom_call.1} parent=59 // pred_check
          %p570 = pneg %p176
        $region78: #{tpu_custom_call.1} parent=59 // pred_check_branch
          %572 = sbr.rel (%p570) target = $region80
        $region79: #{tpu_custom_call.1} parent=59 // pred_region
          %573 = dma.done %s566, 11520
        $region80: #{tpu_custom_call.1} parent=59 // pred_fallthru
          _
        %s574 = sand.u32 %s39, 1
        %s575 = scalar_lea.sflag [#allocation14], %s574
        %s576 = sand.u32 %s189, 1
        %s577 = scalar_lea.vmem [#allocation13], %s576
        // Predicated region
        $region81: #{tpu_custom_call.1} parent=59 // pred_check
          %p578 = pneg %p202
        $region82: #{tpu_custom_call.1} parent=59 // pred_check_branch
          %580 = sbr.rel (%p578) target = $region84
        $region83: #{tpu_custom_call.1} parent=59 // pred_region
          %581 = dma.done %s575, 16
        $region84: #{tpu_custom_call.1} parent=59 // pred_fallthru
          _
        %s582 = sand.u32 %s39, 1
        %s583 = scalar_lea.sflag [#allocation14], %s582
        %s584 = sand.u32 %s215, 1
        %s585 = scalar_lea.vmem [#allocation15], %s584
        // Predicated region
        $region85: #{tpu_custom_call.1} parent=59 // pred_check
          %p586 = pneg %p228
        $region86: #{tpu_custom_call.1} parent=59 // pred_check_branch
          %588 = sbr.rel (%p586) target = $region88
        $region87: #{tpu_custom_call.1} parent=59 // pred_region
          %589 = dma.done %s583, 16
        $region88: #{tpu_custom_call.1} parent=59 // pred_fallthru
          _
        %s590 = sand.u32 %s39, 1
        %s591 = scalar_lea.sflag [#allocation17], %s590
        %s592 = sand.u32 %s267, 1
        %s593 = scalar_lea.vmem [#allocation16], %s592
        // Predicated region
        $region89: #{tpu_custom_call.1} parent=59 // pred_check
          %p594 = pneg %p280
        $region90: #{tpu_custom_call.1} parent=59 // pred_check_branch
          %596 = sbr.rel (%p594) target = $region92
        $region91: #{tpu_custom_call.1} parent=59 // pred_region
          %597 = dma.done %s591, 16
        $region92: #{tpu_custom_call.1} parent=59 // pred_fallthru
          _
        %s598 = sand.u32 %s39, 1
        %s599 = scalar_lea.sflag [#allocation17], %s598
        %s600 = sand.u32 %s293, 1
        %s601 = scalar_lea.vmem [#allocation18], %s600
        // Predicated region
        $region93: #{tpu_custom_call.1} parent=59 // pred_check
          %p602 = pneg %p306
        $region94: #{tpu_custom_call.1} parent=59 // pred_check_branch
          %604 = sbr.rel (%p602) target = $region96
        $region95: #{tpu_custom_call.1} parent=59 // pred_region
          %605 = dma.done %s599, 16
        $region96: #{tpu_custom_call.1} parent=59 // pred_fallthru
          _
        %s606 = sand.u32 %s59, 1
        %s607 = scalar_lea.sflag [#allocation5], %s606
        %s608 = sand.u32 %s59, 1
        %s609 = smul.addr %s608, 64
        %s610 = scalar_lea.vmem [#allocation4], %s609
        %p611 = pneg %p72
        %p612 = pneg %p69
        %s613 = sand.u32 %s39, 1
        %s614 = scalar_lea.sflag [#allocation8], %s613
        %s615 = sand.u32 %s85, 1
        %s616 = smul.addr %s615, 32
        %s617 = scalar_lea.vmem [#allocation7], %s616
        %p618 = pneg %p98
        %p619 = pneg %p95
        %s620 = sand.u32 %s39, 1
        %s621 = scalar_lea.sflag [#allocation8], %s620
        %s622 = sand.u32 %s111, 1
        %s623 = scalar_lea.vmem [#allocation9], %s622
        %p624 = pneg %p124
        %p625 = pneg %p121
        %s626 = sand.u32 %s39, 1
        %s627 = scalar_lea.sflag [#allocation11], %s626
        %s628 = sand.u32 %s137, 1
        %s629 = scalar_lea.vmem [#allocation10], %s628
        %p630 = pneg %p150
        %p631 = pneg %p147
        %s632 = sand.u32 %s39, 1
        %s633 = scalar_lea.sflag [#allocation11], %s632
        %s634 = sand.u32 %s163, 1
        %s635 = smul.addr %s634, 720
        %s636 = scalar_lea.vmem [#allocation12], %s635
        %p637 = pneg %p176
        %p638 = pneg %p173
        %s639 = sand.u32 %s39, 1
        %s640 = scalar_lea.sflag [#allocation14], %s639
        %s641 = sand.u32 %s189, 1
        %s642 = scalar_lea.vmem [#allocation13], %s641
        %p643 = pneg %p202
        %p644 = pneg %p199
        %s645 = sand.u32 %s39, 1
        %s646 = scalar_lea.sflag [#allocation14], %s645
        %s647 = sand.u32 %s215, 1
        %s648 = scalar_lea.vmem [#allocation15], %s647
        %p649 = pneg %p228
        %p650 = pneg %p225
        %p651 = scmp.lt.s32.totalorder %s44, 2
        %s652 = scalar_select %p651, %s44, 2
        %s653 = smul.addr %s652, 16
        %s654 = smul.addr %s653, 4
        %s655 = scalar_lea.vmem %s7, %s654
        %p656 = pneg %p254
        %p657 = pneg %p251
        %s658 = sand.u32 %s39, 1
        %s659 = scalar_lea.sflag [#allocation17], %s658
        %s660 = sand.u32 %s267, 1
        %s661 = scalar_lea.vmem [#allocation16], %s660
        %p662 = pneg %p280
        %p663 = pneg %p277
        %s664 = sand.u32 %s39, 1
        %s665 = scalar_lea.sflag [#allocation17], %s664
        %s666 = sand.u32 %s293, 1
        %s667 = scalar_lea.vmem [#allocation18], %s666
        %p668 = pneg %p306
        %p669 = pneg %p303
        %p670 = pneg %p332
        %p671 = pneg %p329
        %s672 = sand.u32 %s319, 1
        %s673 = scalar_lea.sflag [#allocation6], %s672
        %s674 = sand.u32 %s319, 1
        %s675 = smul.addr %s674, 64
        %s676 = scalar_lea.vmem [#allocation19], %s675
        %p677 = scmp.lt.s32.totalorder %s44, 2
        %s678 = scalar_select %p677, %s44, 2
        %s679 = smul.addr %s678, 16
        %s680 = smul.addr %s679, 4
        %s681 = scalar_lea.vmem %s7, %s680
        %p683 = scmp.eq.s32.totalorder %s44, 0
        // Predicated region
        $region97: #{tpu_custom_call.1} parent=59 // pred_check
          %p684 = pneg %p683
        $region98: #{tpu_custom_call.1} parent=59 // pred_check_branch
          %686 = sbr.rel (%p684) target = $region100
        $region99: #{tpu_custom_call.1} parent=59 // pred_region
          %v687 = vld [vmem:[%s535] sm:$0xff]
          %v688 = vld [vmem:[%s535 + $0x8] sm:$0xff]
          %v689 = vld [vmem:[%s535 + $0x10] sm:$0xff]
          %v690 = vld [vmem:[%s535 + $0x18] sm:$0xff]
          %v691 = vld [vmem:[%s535 + $0x20] sm:$0xff]
          %v692 = vld [vmem:[%s535 + $0x28] sm:$0xff]
          %v693 = vld [vmem:[%s535 + $0x30] sm:$0xff]
          %v694 = vld [vmem:[%s535 + $0x38] sm:$0xff]
          %vm695 = vcmask 523264
          %696 = vst.msk [vmem:[#allocation2] sm:$0xff] %vm695, %v687
          %697 = vst.msk [vmem:[#allocation2 + $0x8] sm:$0xff] %vm695, %v688
          %698 = vst.msk [vmem:[#allocation2 + $0x10] sm:$0xff] %vm695, %v689
          %699 = vst.msk [vmem:[#allocation2 + $0x18] sm:$0xff] %vm695, %v690
          %700 = vst.msk [vmem:[#allocation2 + $0x20] sm:$0xff] %vm695, %v691
          %701 = vst.msk [vmem:[#allocation2 + $0x28] sm:$0xff] %vm695, %v692
          %702 = vst.msk [vmem:[#allocation2 + $0x30] sm:$0xff] %vm695, %v693
          %703 = vst.msk [vmem:[#allocation2 + $0x38] sm:$0xff] %vm695, %v694
          %704 = vst [vmem:[#allocation3] sm:$0xff] 0.0
          %vm705 = vcmask 261120
          %706 = vst.msk [vmem:[#allocation3 + $0x8] sm:$0xff] %vm705, 0.0
          %707 = vst [vmem:[#allocation3 + $0x10] sm:$0x3] 0.0
          %vm708 = vcmask 254976
          %709 = vst.msk [vmem:[#allocation3 + $0x18] sm:$0x3] %vm708, 0.0
          %710 = vst [vmem:[#allocation3 + $0x20] sm:$0xff] 0.0
          %711 = vst.msk [vmem:[#allocation3 + $0x28] sm:$0xff] %vm705, 0.0
          %712 = vst [vmem:[#allocation3 + $0x30] sm:$0x3] 0.0
          %713 = vst.msk [vmem:[#allocation3 + $0x38] sm:$0x3] %vm708, 0.0
          %714 = vst [vmem:[#allocation3 + $0x40] sm:$0xff] 0.0
          %715 = vst.msk [vmem:[#allocation3 + $0x48] sm:$0xff] %vm705, 0.0
          %716 = vst [vmem:[#allocation3 + $0x50] sm:$0x3] 0.0
          %717 = vst.msk [vmem:[#allocation3 + $0x58] sm:$0x3] %vm708, 0.0
          %718 = vst [vmem:[#allocation3 + $0x60] sm:$0xff] 0.0
          %719 = vst.msk [vmem:[#allocation3 + $0x68] sm:$0xff] %vm705, 0.0
          %720 = vst [vmem:[#allocation3 + $0x70] sm:$0x3] 0.0
          %721 = vst.msk [vmem:[#allocation3 + $0x78] sm:$0x3] %vm708, 0.0
          %722 = vst [vmem:[#allocation3 + $0x80] sm:$0xff] 0.0
          %723 = vst.msk [vmem:[#allocation3 + $0x88] sm:$0xff] %vm705, 0.0
          %724 = vst [vmem:[#allocation3 + $0x90] sm:$0x3] 0.0
          %725 = vst.msk [vmem:[#allocation3 + $0x98] sm:$0x3] %vm708, 0.0
          %726 = vst [vmem:[#allocation3 + $0xa0] sm:$0xff] 0.0
          %727 = vst.msk [vmem:[#allocation3 + $0xa8] sm:$0xff] %vm705, 0.0
          %728 = vst [vmem:[#allocation3 + $0xb0] sm:$0x3] 0.0
          %729 = vst.msk [vmem:[#allocation3 + $0xb8] sm:$0x3] %vm708, 0.0
          %730 = vst [vmem:[#allocation3 + $0xc0] sm:$0xff] 0.0
          %731 = vst.msk [vmem:[#allocation3 + $0xc8] sm:$0xff] %vm705, 0.0
          %732 = vst [vmem:[#allocation3 + $0xd0] sm:$0x3] 0.0
          %733 = vst.msk [vmem:[#allocation3 + $0xd8] sm:$0x3] %vm708, 0.0
          %734 = vst [vmem:[#allocation3 + $0xe0] sm:$0xff] 0.0
          %735 = vst.msk [vmem:[#allocation3 + $0xe8] sm:$0xff] %vm705, 0.0
          %736 = vst [vmem:[#allocation3 + $0xf0] sm:$0x3] 0.0
          %737 = vst.msk [vmem:[#allocation3 + $0xf8] sm:$0x3] %vm708, 0.0
          %738 = vst [vmem:[#allocation3 + $0x100] sm:$0xff] 0.0
          %739 = vst.msk [vmem:[#allocation3 + $0x108] sm:$0xff] %vm705, 0.0
          %740 = vst [vmem:[#allocation3 + $0x110] sm:$0x3] 0.0
          %741 = vst.msk [vmem:[#allocation3 + $0x118] sm:$0x3] %vm708, 0.0
          %742 = vst [vmem:[#allocation3 + $0x120] sm:$0xff] 0.0
          %743 = vst.msk [vmem:[#allocation3 + $0x128] sm:$0xff] %vm705, 0.0
          %744 = vst [vmem:[#allocation3 + $0x130] sm:$0x3] 0.0
          %745 = vst.msk [vmem:[#allocation3 + $0x138] sm:$0x3] %vm708, 0.0
        $region100: #{tpu_custom_call.1} parent=59 // pred_fallthru
          _
        %v746 = vld [vmem:[#allocation2] sm:$0xff]
        %v747 = vld [vmem:[#allocation2 + $0x8] sm:$0xff]
        %v748 = vld [vmem:[#allocation2 + $0x10] sm:$0xff]
        %v749 = vld [vmem:[#allocation2 + $0x18] sm:$0xff]
        %v750 = vld [vmem:[#allocation2 + $0x20] sm:$0xff]
        %v751 = vld [vmem:[#allocation2 + $0x28] sm:$0xff]
        %v752 = vld [vmem:[#allocation2 + $0x30] sm:$0xff]
        %v753 = vld [vmem:[#allocation2 + $0x38] sm:$0xff]
        %v754 = vpack.c.bf16 %v747, %v746
        %v755 = vpack.c.bf16 %v749, %v748
        %v756 = vpack.c.bf16 %v751, %v750
        %v757 = vpack.c.bf16 %v753, %v752
        %v758 = vld [vmem:[%s544] sm:$0xf]
        %v759 = vld [vmem:[%s544 + $0x4] sm:$0xf]
        %v760 = vld [vmem:[%s544 + $0x8] sm:$0xf]
        %v761 = vld [vmem:[%s544 + $0xc] sm:$0xf]
        %v762 = vld [vmem:[%s544 + $0x10] sm:$0xf]
        %v763 = vld [vmem:[%s544 + $0x14] sm:$0xf]
        %v764 = vld [vmem:[%s544 + $0x18] sm:$0xf]
        %v765 = vld [vmem:[%s544 + $0x1c] sm:$0xf]
        %v774 = vunpack.c.l.b16 %v758
        %v775 = vunpack.c.l.b16 %v759
        %v776 = vunpack.c.l.b16 %v760
        %v777 = vunpack.c.l.b16 %v761
        %v778 = vunpack.c.l.b16 %v762
        %v779 = vunpack.c.l.b16 %v763
        %v780 = vunpack.c.l.b16 %v764
        %v781 = vunpack.c.l.b16 %v765
        %v782 = vpack.c.b16 %v775, %v774
        %v783 = vpack.c.b16 %v777, %v776
        %v784 = vpack.c.b16 %v779, %v778
        %v785 = vpack.c.b16 %v781, %v780
        %vm790 = vcmask 523264
        %v792 = vsel %vm790, %v754, 0
        %v795 = vsel %vm790, %v755, 0
        %v798 = vsel %vm790, %v756, 0
        %v801 = vsel %vm790, %v757, 0
        %803 = vmatprep.subr.bf16.mxu0 0
        %804 = vmatpush1.bf16.msra.mxu0 %v782
        %805 = vmatprep.subr.bf16.mxu0 0
        %806 = vmatpush1.bf16.msra.mxu0 %v783
        %807 = vmatprep.subr.bf16.mxu0 0
        %808 = vmatpush1.bf16.msra.mxu0 %v784
        %809 = vmatprep.subr.bf16.mxu0 0
        %810 = vmatpush1.bf16.msra.mxu0 %v785
        %811 = vmatprep.subr.bf16.mxu0 0
        %812 = vmatpush1.bf16.msra.mxu0 0
        %813 = vmatprep.subr.bf16.mxu0 0
        %814 = vmatpush1.bf16.msra.mxu0 0
        %815 = vmatprep.subr.bf16.mxu0 0
        %816 = vmatpush1.bf16.msra.mxu0 0
        %817 = vmatprep.subr.bf16.mxu0 0
        %818 = vmatpush1.bf16.msra.mxu0 0
        %819 = vmatprep.subr.bf16.mxu0 0
        %820 = vmatpush1.bf16.msra.mxu0 0
        %821 = vmatprep.subr.bf16.mxu0 0
        %822 = vmatpush1.bf16.msra.mxu0 0
        %823 = vmatprep.subr.bf16.mxu0 0
        %824 = vmatpush1.bf16.msra.mxu0 0
        %825 = vmatprep.subr.bf16.mxu0 0
        %826 = vmatpush1.bf16.msra.mxu0 0
        %827 = vmatprep.subr.bf16.mxu0 0
        %828 = vmatpush1.bf16.msra.mxu0 0
        %829 = vmatprep.subr.bf16.mxu0 0
        %830 = vmatpush1.bf16.msra.mxu0 0
        %831 = vmatprep.subr.bf16.mxu0 0
        %832 = vmatpush1.bf16.msra.mxu0 0
        %833 = vmatprep.subr.bf16.mxu0 0
        %834 = vmatpush1.bf16.msra.mxu0 0
        %835 = vmatprep.mubr.bf16.mxu0 0
        %836 = vmatmul.mubr.bf16.gmra.mrb[0].mxu0 %v792
        %v837 = vpop.f32.mrb[0].mxu0
        %v838 = vadd.f32 0.0, %v837
        %v839 = vpop.f32.mrb[0].mxu0
        %v840 = vpop.f32.mrb[0].mxu0
        %v841 = vadd.f32 0.0, %v840
        %v842 = vpop.f32.mrb[0].mxu0
        %843 = vmatprep.mubr.bf16.mxu0 0
        %844 = vmatmul.mubr.bf16.gmra.mrb[0].mxu0 %v795
        %v845 = vpop.f32.mrb[0].mxu0
        %v846 = vadd.f32 0.0, %v845
        %v847 = vpop.f32.mrb[0].mxu0
        %v848 = vpop.f32.mrb[0].mxu0
        %v849 = vadd.f32 0.0, %v848
        %v850 = vpop.f32.mrb[0].mxu0
        %851 = vmatprep.mubr.bf16.mxu0 0
        %852 = vmatmul.mubr.bf16.gmra.mrb[0].mxu0 %v798
        %v853 = vpop.f32.mrb[0].mxu0
        %v854 = vadd.f32 0.0, %v853
        %v855 = vpop.f32.mrb[0].mxu0
        %v856 = vpop.f32.mrb[0].mxu0
        %v857 = vadd.f32 0.0, %v856
        %v858 = vpop.f32.mrb[0].mxu0
        %859 = vmatprep.mubr.bf16.mxu0 0
        %860 = vmatmul.mubr.bf16.gmra.mrb[0].mxu0 %v801
        %v861 = vpop.f32.mrb[0].mxu0
        %v862 = vadd.f32 0.0, %v861
        %v863 = vpop.f32.mrb[0].mxu0
        %v864 = vpop.f32.mrb[0].mxu0
        %v865 = vadd.f32 0.0, %v864
        %v866 = vpop.f32.mrb[0].mxu0
        %867 = vdwg.mxu0
        %v868 = vld [vmem:[%s552] sm:$0x1]
        %v870 = vlaneseq
        %v871 = vshrl.u32 %v870, 7
        %v872 = vsub.s32 0, %v871
        %v873 = vrot.slane %v868, %v872
        %v875 = vmul.f32 %v838, %v873
        %v876 = vmul.f32 %v841, %v873
        %v877 = vmul.f32 %v846, %v873
        %v878 = vmul.f32 %v849, %v873
        %v879 = vmul.f32 %v854, %v873
        %v880 = vmul.f32 %v857, %v873
        %v881 = vmul.f32 %v862, %v873
        %v882 = vmul.f32 %v865, %v873
        %v883 = vld [vmem:[%s560] sm:$0x1]
        %v885 = vlaneseq
        %v886 = vshrl.u32 %v885, 7
        %v887 = vsub.s32 0, %v886
        %v888 = vrot.slane %v883, %v887
        %v890 = vadd.f32 %v875, %v888
        %v891 = vadd.f32 %v876, %v888
        %v892 = vadd.f32 %v877, %v888
        %v893 = vadd.f32 %v878, %v888
        %v894 = vadd.f32 %v879, %v888
        %v895 = vadd.f32 %v880, %v888
        %v896 = vadd.f32 %v881, %v888
        %v897 = vadd.f32 %v882, %v888
        %v898 = vmax.f32 %v890, 0.0
        %v899 = vmax.f32 %v891, 0.0
        %v900 = vmax.f32 %v892, 0.0
        %v901 = vmax.f32 %v893, 0.0
        %v902 = vmax.f32 %v894, 0.0
        %v903 = vmax.f32 %v895, 0.0
        %v904 = vmax.f32 %v896, 0.0
        %v905 = vmax.f32 %v897, 0.0
        %v914 = vrot.slane %v898, 7
        %v915 = vrot.slane %v899, 7
        %v916 = vrot.slane %v900, 7
        %v917 = vrot.slane %v901, 7
        %v918 = vrot.slane %v902, 7
        %v919 = vrot.slane %v903, 7
        %v920 = vrot.slane %v904, 7
        %v921 = vrot.slane %v905, 7
        %s930 = scalar_lea.vmem [#allocation3], 32
        %931 = vst [vmem:[%s930] sm:$0xfe] %v914
        %932 = vst [vmem:[%s930 + $0x10] sm:$0x1] %v914
        %933 = vst [vmem:[%s930 + $0x20] sm:$0xfe] %v915
        %934 = vst [vmem:[%s930 + $0x30] sm:$0x1] %v915
        %935 = vst [vmem:[%s930 + $0x40] sm:$0xfe] %v916
        %936 = vst [vmem:[%s930 + $0x50] sm:$0x1] %v916
        %937 = vst [vmem:[%s930 + $0x60] sm:$0xfe] %v917
        %938 = vst [vmem:[%s930 + $0x70] sm:$0x1] %v917
        %939 = vst [vmem:[%s930 + $0x80] sm:$0xfe] %v918
        %940 = vst [vmem:[%s930 + $0x90] sm:$0x1] %v918
        %941 = vst [vmem:[%s930 + $0xa0] sm:$0xfe] %v919
        %942 = vst [vmem:[%s930 + $0xb0] sm:$0x1] %v919
        %943 = vst [vmem:[%s930 + $0xc0] sm:$0xfe] %v920
        %944 = vst [vmem:[%s930 + $0xd0] sm:$0x1] %v920
        %945 = vst [vmem:[%s930 + $0xe0] sm:$0xfe] %v921
        %946 = vst [vmem:[%s930 + $0xf0] sm:$0x1] %v921
        %v947 = vld [vmem:[#allocation3] sm:$0xff]
        %v948 = vld [vmem:[#allocation3 + $0x8] sm:$0xff]
        %v949 = vld [vmem:[#allocation3 + $0x20] sm:$0xff]
        %v950 = vld [vmem:[#allocation3 + $0x28] sm:$0xff]
        %v951 = vld [vmem:[#allocation3 + $0x40] sm:$0xff]
        %v952 = vld [vmem:[#allocation3 + $0x48] sm:$0xff]
        %v953 = vld [vmem:[#allocation3 + $0x60] sm:$0xff]
        %v954 = vld [vmem:[#allocation3 + $0x68] sm:$0xff]
        %v955 = vld [vmem:[#allocation3 + $0x80] sm:$0xff]
        %v956 = vld [vmem:[#allocation3 + $0x88] sm:$0xff]
        %v957 = vld [vmem:[#allocation3 + $0xa0] sm:$0xff]
        %v958 = vld [vmem:[#allocation3 + $0xa8] sm:$0xff]
        %v959 = vld [vmem:[#allocation3 + $0xc0] sm:$0xff]
        %v960 = vld [vmem:[#allocation3 + $0xc8] sm:$0xff]
        %v961 = vld [vmem:[#allocation3 + $0xe0] sm:$0xff]
        %v962 = vld [vmem:[#allocation3 + $0xe8] sm:$0xff]
        %v963 = vpack.c.bf16 %v949, %v947
        %v964 = vpack.c.bf16 %v950, %v948
        %v965 = vpack.c.bf16 %v953, %v951
        %v966 = vpack.c.bf16 %v954, %v952
        %v967 = vpack.c.bf16 %v957, %v955
        %v968 = vpack.c.bf16 %v958, %v956
        %v969 = vpack.c.bf16 %v961, %v959
        %v970 = vpack.c.bf16 %v962, %v960
        %v971 = vld [vmem:[%s569] sm:$0xf]
        %v972 = vld [vmem:[%s569 + $0x4] sm:$0xf]
        %v973 = vld [vmem:[%s569 + $0x8] sm:$0xf]
        %v974 = vld [vmem:[%s569 + $0xc] sm:$0xf]
        %v975 = vld [vmem:[%s569 + $0x10] sm:$0xf]
        %v976 = vld [vmem:[%s569 + $0x14] sm:$0xf]
        %v977 = vld [vmem:[%s569 + $0x18] sm:$0xf]
        %v978 = vld [vmem:[%s569 + $0x1c] sm:$0xf]
        %v979 = vld [vmem:[%s569 + $0x20] sm:$0xf]
        %v980 = vld [vmem:[%s569 + $0x24] sm:$0xf]
        %v981 = vld [vmem:[%s569 + $0x28] sm:$0xf]
        %v982 = vld [vmem:[%s569 + $0x2c] sm:$0xf]
        %v983 = vld [vmem:[%s569 + $0x30] sm:$0xf]
        %v984 = vld [vmem:[%s569 + $0x34] sm:$0xf]
        %v985 = vld [vmem:[%s569 + $0x38] sm:$0xf]
        %v986 = vld [vmem:[%s569 + $0x3c] sm:$0xf]
        %v987 = vld [vmem:[%s569 + $0x40] sm:$0xf]
        %v988 = vld [vmem:[%s569 + $0x44] sm:$0xf]
        %v989 = vld [vmem:[%s569 + $0x48] sm:$0xf]
        %v990 = vld [vmem:[%s569 + $0x4c] sm:$0xf]
        %v991 = vld [vmem:[#allocation3] sm:$0xfe]
        %v992 = vld [vmem:[#allocation3 + $0x8] sm:$0xfe]
        %v993 = vld [vmem:[#allocation3 + $0x10] sm:$0x1]
        %v994 = vld [vmem:[#allocation3 + $0x18] sm:$0x1]
        %v995 = vld [vmem:[#allocation3 + $0x20] sm:$0xfe]
        %v996 = vld [vmem:[#allocation3 + $0x28] sm:$0xfe]
        %v997 = vld [vmem:[#allocation3 + $0x30] sm:$0x1]
        %v998 = vld [vmem:[#allocation3 + $0x38] sm:$0x1]
        %v999 = vld [vmem:[#allocation3 + $0x40] sm:$0xfe]
        %v1000 = vld [vmem:[#allocation3 + $0x48] sm:$0xfe]
        %v1001 = vld [vmem:[#allocation3 + $0x50] sm:$0x1]
        %v1002 = vld [vmem:[#allocation3 + $0x58] sm:$0x1]
        %v1003 = vld [vmem:[#allocation3 + $0x60] sm:$0xfe]
        %v1004 = vld [vmem:[#allocation3 + $0x68] sm:$0xfe]
        %v1005 = vld [vmem:[#allocation3 + $0x70] sm:$0x1]
        %v1006 = vld [vmem:[#allocation3 + $0x78] sm:$0x1]
        %v1007 = vld [vmem:[#allocation3 + $0x80] sm:$0xfe]
        %v1008 = vld [vmem:[#allocation3 + $0x88] sm:$0xfe]
        %v1009 = vld [vmem:[#allocation3 + $0x90] sm:$0x1]
        %v1010 = vld [vmem:[#allocation3 + $0x98] sm:$0x1]
        %v1011 = vld [vmem:[#allocation3 + $0xa0] sm:$0xfe]
        %v1012 = vld [vmem:[#allocation3 + $0xa8] sm:$0xfe]
        %v1013 = vld [vmem:[#allocation3 + $0xb0] sm:$0x1]
        %v1014 = vld [vmem:[#allocation3 + $0xb8] sm:$0x1]
        %v1015 = vld [vmem:[#allocation3 + $0xc0] sm:$0xfe]
        %v1016 = vld [vmem:[#allocation3 + $0xc8] sm:$0xfe]
        %v1017 = vld [vmem:[#allocation3 + $0xd0] sm:$0x1]
        %v1018 = vld [vmem:[#allocation3 + $0xd8] sm:$0x1]
        %v1019 = vld [vmem:[#allocation3 + $0xe0] sm:$0xfe]
        %v1020 = vld [vmem:[#allocation3 + $0xe8] sm:$0xfe]
        %v1021 = vld [vmem:[#allocation3 + $0xf0] sm:$0x1]
        %v1022 = vld [vmem:[#allocation3 + $0xf8] sm:$0x1]
        %vm1055 = vcmask 1046528
        %v1056 = vrot.slane %v991, 1
        %v1057 = vrot.slane %v993, 1
        %v1058 = vsel %vm1055, %v1056, %v1057
        %v1059 = vrot.slane %v992, 1
        %v1060 = vrot.slane %v994, 1
        %v1061 = vsel %vm1055, %v1059, %v1060
        %v1062 = vrot.slane %v995, 1
        %v1063 = vrot.slane %v997, 1
        %v1064 = vsel %vm1055, %v1062, %v1063
        %v1065 = vrot.slane %v996, 1
        %v1066 = vrot.slane %v998, 1
        %v1067 = vsel %vm1055, %v1065, %v1066
        %v1068 = vrot.slane %v999, 1
        %v1069 = vrot.slane %v1001, 1
        %v1070 = vsel %vm1055, %v1068, %v1069
        %v1071 = vrot.slane %v1000, 1
        %v1072 = vrot.slane %v1002, 1
        %v1073 = vsel %vm1055, %v1071, %v1072
        %v1074 = vrot.slane %v1003, 1
        %v1075 = vrot.slane %v1005, 1
        %v1076 = vsel %vm1055, %v1074, %v1075
        %v1077 = vrot.slane %v1004, 1
        %v1078 = vrot.slane %v1006, 1
        %v1079 = vsel %vm1055, %v1077, %v1078
        %v1080 = vrot.slane %v1007, 1
        %v1081 = vrot.slane %v1009, 1
        %v1082 = vsel %vm1055, %v1080, %v1081
        %v1083 = vrot.slane %v1008, 1
        %v1084 = vrot.slane %v1010, 1
        %v1085 = vsel %vm1055, %v1083, %v1084
        %v1086 = vrot.slane %v1011, 1
        %v1087 = vrot.slane %v1013, 1
        %v1088 = vsel %vm1055, %v1086, %v1087
        %v1089 = vrot.slane %v1012, 1
        %v1090 = vrot.slane %v1014, 1
        %v1091 = vsel %vm1055, %v1089, %v1090
        %v1092 = vrot.slane %v1015, 1
        %v1093 = vrot.slane %v1017, 1
        %v1094 = vsel %vm1055, %v1092, %v1093
        %v1095 = vrot.slane %v1016, 1
        %v1096 = vrot.slane %v1018, 1
        %v1097 = vsel %vm1055, %v1095, %v1096
        %v1098 = vrot.slane %v1019, 1
        %v1099 = vrot.slane %v1021, 1
        %v1100 = vsel %vm1055, %v1098, %v1099
        %v1101 = vrot.slane %v1020, 1
        %v1102 = vrot.slane %v1022, 1
        %v1103 = vsel %vm1055, %v1101, %v1102
        %v1120 = vpack.c.bf16 %v1064, %v1058
        %v1121 = vpack.c.bf16 %v1067, %v1061
        %v1122 = vpack.c.bf16 %v1076, %v1070
        %v1123 = vpack.c.bf16 %v1079, %v1073
        %v1124 = vpack.c.bf16 %v1088, %v1082
        %v1125 = vpack.c.bf16 %v1091, %v1085
        %v1126 = vpack.c.bf16 %v1100, %v1094
        %v1127 = vpack.c.bf16 %v1103, %v1097
        %s1128 = scalar_lea.vmem %s569, 80 [#allocation12]
        %v1129 = vld [vmem:[%s1128] sm:$0xf]
        %v1130 = vld [vmem:[%s1128 + $0x4] sm:$0xf]
        %v1131 = vld [vmem:[%s1128 + $0x8] sm:$0xf]
        %v1132 = vld [vmem:[%s1128 + $0xc] sm:$0xf]
        %v1133 = vld [vmem:[%s1128 + $0x10] sm:$0xf]
        %v1134 = vld [vmem:[%s1128 + $0x14] sm:$0xf]
        %v1135 = vld [vmem:[%s1128 + $0x18] sm:$0xf]
        %v1136 = vld [vmem:[%s1128 + $0x1c] sm:$0xf]
        %v1137 = vld [vmem:[%s1128 + $0x20] sm:$0xf]
        %v1138 = vld [vmem:[%s1128 + $0x24] sm:$0xf]
        %v1139 = vld [vmem:[%s1128 + $0x28] sm:$0xf]
        %v1140 = vld [vmem:[%s1128 + $0x2c] sm:$0xf]
        %v1141 = vld [vmem:[%s1128 + $0x30] sm:$0xf]
        %v1142 = vld [vmem:[%s1128 + $0x34] sm:$0xf]
        %v1143 = vld [vmem:[%s1128 + $0x38] sm:$0xf]
        %v1144 = vld [vmem:[%s1128 + $0x3c] sm:$0xf]
        %v1145 = vld [vmem:[%s1128 + $0x40] sm:$0xf]
        %v1146 = vld [vmem:[%s1128 + $0x44] sm:$0xf]
        %v1147 = vld [vmem:[%s1128 + $0x48] sm:$0xf]
        %v1148 = vld [vmem:[%s1128 + $0x4c] sm:$0xf]
        %v1169 = vunpack.c.l.b16 %v1129
        %v1170 = vunpack.c.l.b16 %v1130
        %v1171 = vunpack.c.l.b16 %v1131
        %v1172 = vunpack.c.l.b16 %v1132
        %v1173 = vunpack.c.l.b16 %v1133
        %v1174 = vunpack.c.l.b16 %v1134
        %v1175 = vunpack.c.l.b16 %v1135
        %v1176 = vunpack.c.l.b16 %v1136
        %v1177 = vunpack.c.l.b16 %v1137
        %v1178 = vunpack.c.l.b16 %v1138
        %v1179 = vunpack.c.l.b16 %v1139
        %v1180 = vunpack.c.l.b16 %v1140
        %v1181 = vunpack.c.l.b16 %v1141
        %v1182 = vunpack.c.l.b16 %v1142
        %v1183 = vunpack.c.l.b16 %v1143
        %v1184 = vunpack.c.l.b16 %v1144
        %v1185 = vunpack.c.l.b16 %v1145
        %v1186 = vunpack.c.l.b16 %v1146
        %v1187 = vunpack.c.l.b16 %v1147
        %v1188 = vunpack.c.l.b16 %v1148
        %v1189 = vpack.c.b16 %v1170, %v1169
        %v1190 = vpack.c.b16 %v1172, %v1171
        %v1191 = vpack.c.b16 %v1174, %v1173
        %v1192 = vpack.c.b16 %v1176, %v1175
        %v1193 = vpack.c.b16 %v1178, %v1177
        %v1194 = vpack.c.b16 %v1180, %v1179
        %v1195 = vpack.c.b16 %v1182, %v1181
        %v1196 = vpack.c.b16 %v1184, %v1183
        %v1197 = vpack.c.b16 %v1186, %v1185
        %v1198 = vpack.c.b16 %v1188, %v1187
        %vm1209 = vcmask 261120
        %v1211 = vsel %vm1209, %v1121, 0
        %v1214 = vsel %vm1209, %v1123, 0
        %v1217 = vsel %vm1209, %v1125, 0
        %v1220 = vsel %vm1209, %v1127, 0
        %1222 = vmatprep.subr.bf16.mxu0 0
        %1223 = vmatpush1.bf16.msra.mxu0 %v1189
        %1224 = vmatprep.subr.bf16.mxu0 0
        %1225 = vmatpush1.bf16.msra.mxu0 %v1190
        %1226 = vmatprep.subr.bf16.mxu0 0
        %1227 = vmatpush1.bf16.msra.mxu0 %v1191
        %1228 = vmatprep.subr.bf16.mxu0 0
        %1229 = vmatpush1.bf16.msra.mxu0 %v1192
        %1230 = vmatprep.subr.bf16.mxu0 0
        %1231 = vmatpush1.bf16.msra.mxu0 %v1193
        %1232 = vmatprep.subr.bf16.mxu0 0
        %1233 = vmatpush1.bf16.msra.mxu0 %v1194
        %1234 = vmatprep.subr.bf16.mxu0 0
        %1235 = vmatpush1.bf16.msra.mxu0 %v1195
        %1236 = vmatprep.subr.bf16.mxu0 0
        %1237 = vmatpush1.bf16.msra.mxu0 %v1196
        %1238 = vmatprep.subr.bf16.mxu0 0
        %1239 = vmatpush1.bf16.msra.mxu0 %v1197
        %1240 = vmatprep.subr.bf16.mxu0 0
        %1241 = vmatpush1.bf16.msra.mxu0 %v1198
        %1242 = vmatprep.subr.bf16.mxu0 0
        %1243 = vmatpush1.bf16.msra.mxu0 0
        %1244 = vmatprep.subr.bf16.mxu0 0
        %1245 = vmatpush1.bf16.msra.mxu0 0
        %1246 = vmatprep.subr.bf16.mxu0 0
        %1247 = vmatpush1.bf16.msra.mxu0 0
        %1248 = vmatprep.subr.bf16.mxu0 0
        %1249 = vmatpush1.bf16.msra.mxu0 0
        %1250 = vmatprep.subr.bf16.mxu0 0
        %1251 = vmatpush1.bf16.msra.mxu0 0
        %1252 = vmatprep.subr.bf16.mxu0 0
        %1253 = vmatpush1.bf16.msra.mxu0 0
        %1254 = vmatprep.mubr.bf16.mxu0 %v1211
        %1255 = vmatmul.mubr.bf16.gmra.mrb[0].mxu0 %v1120
        %v1256 = vpop.f32.mrb[0].mxu0
        %v1257 = vadd.f32 0.0, %v1256
        %v1258 = vpop.f32.mrb[0].mxu0
        %v1259 = vpop.f32.mrb[0].mxu0
        %v1260 = vadd.f32 0.0, %v1259
        %v1261 = vpop.f32.mrb[0].mxu0
        %1262 = vmatprep.mubr.bf16.mxu0 %v1214
        %1263 = vmatmul.mubr.bf16.gmra.mrb[0].mxu0 %v1122
        %v1264 = vpop.f32.mrb[0].mxu0
        %v1265 = vadd.f32 0.0, %v1264
        %v1266 = vpop.f32.mrb[0].mxu0
        %v1267 = vpop.f32.mrb[0].mxu0
        %v1268 = vadd.f32 0.0, %v1267
        %v1269 = vpop.f32.mrb[0].mxu0
        %1270 = vmatprep.mubr.bf16.mxu0 %v1217
        %1271 = vmatmul.mubr.bf16.gmra.mrb[0].mxu0 %v1124
        %v1272 = vpop.f32.mrb[0].mxu0
        %v1273 = vadd.f32 0.0, %v1272
        %v1274 = vpop.f32.mrb[0].mxu0
        %v1275 = vpop.f32.mrb[0].mxu0
        %v1276 = vadd.f32 0.0, %v1275
        %v1277 = vpop.f32.mrb[0].mxu0
        %1278 = vmatprep.mubr.bf16.mxu0 %v1220
        %1279 = vmatmul.mubr.bf16.gmra.mrb[0].mxu0 %v1126
        %v1280 = vpop.f32.mrb[0].mxu0
        %v1281 = vadd.f32 0.0, %v1280
        %v1282 = vpop.f32.mrb[0].mxu0
        %v1283 = vpop.f32.mrb[0].mxu0
        %v1284 = vadd.f32 0.0, %v1283
        %v1285 = vpop.f32.mrb[0].mxu0
        %1286 = vdwg.mxu0
        %v1307 = vunpack.c.l.b16 %v971
        %v1308 = vunpack.c.l.b16 %v972
        %v1309 = vunpack.c.l.b16 %v973
        %v1310 = vunpack.c.l.b16 %v974
        %v1311 = vunpack.c.l.b16 %v975
        %v1312 = vunpack.c.l.b16 %v976
        %v1313 = vunpack.c.l.b16 %v977
        %v1314 = vunpack.c.l.b16 %v978
        %v1315 = vunpack.c.l.b16 %v979
        %v1316 = vunpack.c.l.b16 %v980
        %v1317 = vunpack.c.l.b16 %v981
        %v1318 = vunpack.c.l.b16 %v982
        %v1319 = vunpack.c.l.b16 %v983
        %v1320 = vunpack.c.l.b16 %v984
        %v1321 = vunpack.c.l.b16 %v985
        %v1322 = vunpack.c.l.b16 %v986
        %v1323 = vunpack.c.l.b16 %v987
        %v1324 = vunpack.c.l.b16 %v988
        %v1325 = vunpack.c.l.b16 %v989
        %v1326 = vunpack.c.l.b16 %v990
        %v1327 = vpack.c.b16 %v1308, %v1307
        %v1328 = vpack.c.b16 %v1310, %v1309
        %v1329 = vpack.c.b16 %v1312, %v1311
        %v1330 = vpack.c.b16 %v1314, %v1313
        %v1331 = vpack.c.b16 %v1316, %v1315
        %v1332 = vpack.c.b16 %v1318, %v1317
        %v1333 = vpack.c.b16 %v1320, %v1319
        %v1334 = vpack.c.b16 %v1322, %v1321
        %v1335 = vpack.c.b16 %v1324, %v1323
        %v1336 = vpack.c.b16 %v1326, %v1325
        %v1348 = vsel %vm1209, %v964, 0
        %v1351 = vsel %vm1209, %v966, 0
        %v1354 = vsel %vm1209, %v968, 0
        %v1357 = vsel %vm1209, %v970, 0
        %1359 = vmatprep.subr.bf16.mxu0 0
        %1360 = vmatpush1.bf16.msra.mxu0 %v1327
        %1361 = vmatprep.subr.bf16.mxu0 0
        %1362 = vmatpush1.bf16.msra.mxu0 %v1328
        %1363 = vmatprep.subr.bf16.mxu0 0
        %1364 = vmatpush1.bf16.msra.mxu0 %v1329
        %1365 = vmatprep.subr.bf16.mxu0 0
        %1366 = vmatpush1.bf16.msra.mxu0 %v1330
        %1367 = vmatprep.subr.bf16.mxu0 0
        %1368 = vmatpush1.bf16.msra.mxu0 %v1331
        %1369 = vmatprep.subr.bf16.mxu0 0
        %1370 = vmatpush1.bf16.msra.mxu0 %v1332
        %1371 = vmatprep.subr.bf16.mxu0 0
        %1372 = vmatpush1.bf16.msra.mxu0 %v1333
        %1373 = vmatprep.subr.bf16.mxu0 0
        %1374 = vmatpush1.bf16.msra.mxu0 %v1334
        %1375 = vmatprep.subr.bf16.mxu0 0
        %1376 = vmatpush1.bf16.msra.mxu0 %v1335
        %1377 = vmatprep.subr.bf16.mxu0 0
        %1378 = vmatpush1.bf16.msra.mxu0 %v1336
        %1379 = vmatprep.subr.bf16.mxu0 0
        %1380 = vmatpush1.bf16.msra.mxu0 0
        %1381 = vmatprep.subr.bf16.mxu0 0
        %1382 = vmatpush1.bf16.msra.mxu0 0
        %1383 = vmatprep.subr.bf16.mxu0 0
        %1384 = vmatpush1.bf16.msra.mxu0 0
        %1385 = vmatprep.subr.bf16.mxu0 0
        %1386 = vmatpush1.bf16.msra.mxu0 0
        %1387 = vmatprep.subr.bf16.mxu0 0
        %1388 = vmatpush1.bf16.msra.mxu0 0
        %1389 = vmatprep.subr.bf16.mxu0 0
        %1390 = vmatpush1.bf16.msra.mxu0 0
        %1391 = vmatprep.mubr.bf16.mxu0 %v1348
        %1392 = vmatmul.mubr.bf16.gmra.mrb[0].mxu0 %v963
        %v1393 = vpop.f32.mrb[0].mxu0
        %v1394 = vadd.f32 %v1257, %v1393
        %v1395 = vpop.f32.mrb[0].mxu0
        %v1396 = vpop.f32.mrb[0].mxu0
        %v1397 = vadd.f32 %v1260, %v1396
        %v1398 = vpop.f32.mrb[0].mxu0
        %1399 = vmatprep.mubr.bf16.mxu0 %v1351
        %1400 = vmatmul.mubr.bf16.gmra.mrb[0].mxu0 %v965
        %v1401 = vpop.f32.mrb[0].mxu0
        %v1402 = vadd.f32 %v1265, %v1401
        %v1403 = vpop.f32.mrb[0].mxu0
        %v1404 = vpop.f32.mrb[0].mxu0
        %v1405 = vadd.f32 %v1268, %v1404
        %v1406 = vpop.f32.mrb[0].mxu0
        %1407 = vmatprep.mubr.bf16.mxu0 %v1354
        %1408 = vmatmul.mubr.bf16.gmra.mrb[0].mxu0 %v967
        %v1409 = vpop.f32.mrb[0].mxu0
        %v1410 = vadd.f32 %v1273, %v1409
        %v1411 = vpop.f32.mrb[0].mxu0
        %v1412 = vpop.f32.mrb[0].mxu0
        %v1413 = vadd.f32 %v1276, %v1412
        %v1414 = vpop.f32.mrb[0].mxu0
        %1415 = vmatprep.mubr.bf16.mxu0 %v1357
        %1416 = vmatmul.mubr.bf16.gmra.mrb[0].mxu0 %v969
        %v1417 = vpop.f32.mrb[0].mxu0
        %v1418 = vadd.f32 %v1281, %v1417
        %v1419 = vpop.f32.mrb[0].mxu0
        %v1420 = vpop.f32.mrb[0].mxu0
        %v1421 = vadd.f32 %v1284, %v1420
        %v1422 = vpop.f32.mrb[0].mxu0
        %1423 = vdwg.mxu0
        %v1424 = vld [vmem:[#allocation3] sm:$0xfc]
        %v1425 = vld [vmem:[#allocation3 + $0x8] sm:$0xfc]
        %v1426 = vld [vmem:[#allocation3 + $0x10] sm:$0x3]
        %v1427 = vld [vmem:[#allocation3 + $0x18] sm:$0x3]
        %v1428 = vld [vmem:[#allocation3 + $0x20] sm:$0xfc]
        %v1429 = vld [vmem:[#allocation3 + $0x28] sm:$0xfc]
        %v1430 = vld [vmem:[#allocation3 + $0x30] sm:$0x3]
        %v1431 = vld [vmem:[#allocation3 + $0x38] sm:$0x3]
        %v1432 = vld [vmem:[#allocation3 + $0x40] sm:$0xfc]
        %v1433 = vld [vmem:[#allocation3 + $0x48] sm:$0xfc]
        %v1434 = vld [vmem:[#allocation3 + $0x50] sm:$0x3]
        %v1435 = vld [vmem:[#allocation3 + $0x58] sm:$0x3]
        %v1436 = vld [vmem:[#allocation3 + $0x60] sm:$0xfc]
        %v1437 = vld [vmem:[#allocation3 + $0x68] sm:$0xfc]
        %v1438 = vld [vmem:[#allocation3 + $0x70] sm:$0x3]
        %v1439 = vld [vmem:[#allocation3 + $0x78] sm:$0x3]
        %v1440 = vld [vmem:[#allocation3 + $0x80] sm:$0xfc]
        %v1441 = vld [vmem:[#allocation3 + $0x88] sm:$0xfc]
        %v1442 = vld [vmem:[#allocation3 + $0x90] sm:$0x3]
        %v1443 = vld [vmem:[#allocation3 + $0x98] sm:$0x3]
        %v1444 = vld [vmem:[#allocation3 + $0xa0] sm:$0xfc]
        %v1445 = vld [vmem:[#allocation3 + $0xa8] sm:$0xfc]
        %v1446 = vld [vmem:[#allocation3 + $0xb0] sm:$0x3]
        %v1447 = vld [vmem:[#allocation3 + $0xb8] sm:$0x3]
        %v1448 = vld [vmem:[#allocation3 + $0xc0] sm:$0xfc]
        %v1449 = vld [vmem:[#allocation3 + $0xc8] sm:$0xfc]
        %v1450 = vld [vmem:[#allocation3 + $0xd0] sm:$0x3]
        %v1451 = vld [vmem:[#allocation3 + $0xd8] sm:$0x3]
        %v1452 = vld [vmem:[#allocation3 + $0xe0] sm:$0xfc]
        %v1453 = vld [vmem:[#allocation3 + $0xe8] sm:$0xfc]
        %v1454 = vld [vmem:[#allocation3 + $0xf0] sm:$0x3]
        %v1455 = vld [vmem:[#allocation3 + $0xf8] sm:$0x3]
        %vm1488 = vcmask 1045504
        %v1489 = vrot.slane %v1424, 2
        %v1490 = vrot.slane %v1426, 2
        %v1491 = vsel %vm1488, %v1489, %v1490
        %v1492 = vrot.slane %v1425, 2
        %v1493 = vrot.slane %v1427, 2
        %v1494 = vsel %vm1488, %v1492, %v1493
        %v1495 = vrot.slane %v1428, 2
        %v1496 = vrot.slane %v1430, 2
        %v1497 = vsel %vm1488, %v1495, %v1496
        %v1498 = vrot.slane %v1429, 2
        %v1499 = vrot.slane %v1431, 2
        %v1500 = vsel %vm1488, %v1498, %v1499
        %v1501 = vrot.slane %v1432, 2
        %v1502 = vrot.slane %v1434, 2
        %v1503 = vsel %vm1488, %v1501, %v1502
        %v1504 = vrot.slane %v1433, 2
        %v1505 = vrot.slane %v1435, 2
        %v1506 = vsel %vm1488, %v1504, %v1505
        %v1507 = vrot.slane %v1436, 2
        %v1508 = vrot.slane %v1438, 2
        %v1509 = vsel %vm1488, %v1507, %v1508
        %v1510 = vrot.slane %v1437, 2
        %v1511 = vrot.slane %v1439, 2
        %v1512 = vsel %vm1488, %v1510, %v1511
        %v1513 = vrot.slane %v1440, 2
        %v1514 = vrot.slane %v1442, 2
        %v1515 = vsel %vm1488, %v1513, %v1514
        %v1516 = vrot.slane %v1441, 2
        %v1517 = vrot.slane %v1443, 2
        %v1518 = vsel %vm1488, %v1516, %v1517
        %v1519 = vrot.slane %v1444, 2
        %v1520 = vrot.slane %v1446, 2
        %v1521 = vsel %vm1488, %v1519, %v1520
        %v1522 = vrot.slane %v1445, 2
        %v1523 = vrot.slane %v1447, 2
        %v1524 = vsel %vm1488, %v1522, %v1523
        %v1525 = vrot.slane %v1448, 2
        %v1526 = vrot.slane %v1450, 2
        %v1527 = vsel %vm1488, %v1525, %v1526
        %v1528 = vrot.slane %v1449, 2
        %v1529 = vrot.slane %v1451, 2
        %v1530 = vsel %vm1488, %v1528, %v1529
        %v1531 = vrot.slane %v1452, 2
        %v1532 = vrot.slane %v1454, 2
        %v1533 = vsel %vm1488, %v1531, %v1532
        %v1534 = vrot.slane %v1453, 2
        %v1535 = vrot.slane %v1455, 2
        %v1536 = vsel %vm1488, %v1534, %v1535
        %v1553 = vpack.c.bf16 %v1497, %v1491
        %v1554 = vpack.c.bf16 %v1500, %v1494
        %v1555 = vpack.c.bf16 %v1509, %v1503
        %v1556 = vpack.c.bf16 %v1512, %v1506
        %v1557 = vpack.c.bf16 %v1521, %v1515
        %v1558 = vpack.c.bf16 %v1524, %v1518
        %v1559 = vpack.c.bf16 %v1533, %v1527
        %v1560 = vpack.c.bf16 %v1536, %v1530
        %s1561 = scalar_lea.vmem %s569, 160 [#allocation12]
        %v1562 = vld [vmem:[%s1561] sm:$0xf]
        %v1563 = vld [vmem:[%s1561 + $0x4] sm:$0xf]
        %v1564 = vld [vmem:[%s1561 + $0x8] sm:$0xf]
        %v1565 = vld [vmem:[%s1561 + $0xc] sm:$0xf]
        %v1566 = vld [vmem:[%s1561 + $0x10] sm:$0xf]
        %v1567 = vld [vmem:[%s1561 + $0x14] sm:$0xf]
        %v1568 = vld [vmem:[%s1561 + $0x18] sm:$0xf]
        %v1569 = vld [vmem:[%s1561 + $0x1c] sm:$0xf]
        %v1570 = vld [vmem:[%s1561 + $0x20] sm:$0xf]
        %v1571 = vld [vmem:[%s1561 + $0x24] sm:$0xf]
        %v1572 = vld [vmem:[%s1561 + $0x28] sm:$0xf]
        %v1573 = vld [vmem:[%s1561 + $0x2c] sm:$0xf]
        %v1574 = vld [vmem:[%s1561 + $0x30] sm:$0xf]
        %v1575 = vld [vmem:[%s1561 + $0x34] sm:$0xf]
        %v1576 = vld [vmem:[%s1561 + $0x38] sm:$0xf]
        %v1577 = vld [vmem:[%s1561 + $0x3c] sm:$0xf]
        %v1578 = vld [vmem:[%s1561 + $0x40] sm:$0xf]
        %v1579 = vld [vmem:[%s1561 + $0x44] sm:$0xf]
        %v1580 = vld [vmem:[%s1561 + $0x48] sm:$0xf]
        %v1581 = vld [vmem:[%s1561 + $0x4c] sm:$0xf]
        %v1602 = vunpack.c.l.b16 %v1562
        %v1603 = vunpack.c.l.b16 %v1563
        %v1604 = vunpack.c.l.b16 %v1564
        %v1605 = vunpack.c.l.b16 %v1565
        %v1606 = vunpack.c.l.b16 %v1566
        %v1607 = vunpack.c.l.b16 %v1567
        %v1608 = vunpack.c.l.b16 %v1568
        %v1609 = vunpack.c.l.b16 %v1569
        %v1610 = vunpack.c.l.b16 %v1570
        %v1611 = vunpack.c.l.b16 %v1571
        %v1612 = vunpack.c.l.b16 %v1572
        %v1613 = vunpack.c.l.b16 %v1573
        %v1614 = vunpack.c.l.b16 %v1574
        %v1615 = vunpack.c.l.b16 %v1575
        %v1616 = vunpack.c.l.b16 %v1576
        %v1617 = vunpack.c.l.b16 %v1577
        %v1618 = vunpack.c.l.b16 %v1578
        %v1619 = vunpack.c.l.b16 %v1579
        %v1620 = vunpack.c.l.b16 %v1580
        %v1621 = vunpack.c.l.b16 %v1581
        %v1622 = vpack.c.b16 %v1603, %v1602
        %v1623 = vpack.c.b16 %v1605, %v1604
        %v1624 = vpack.c.b16 %v1607, %v1606
        %v1625 = vpack.c.b16 %v1609, %v1608
        %v1626 = vpack.c.b16 %v1611, %v1610
        %v1627 = vpack.c.b16 %v1613, %v1612
        %v1628 = vpack.c.b16 %v1615, %v1614
        %v1629 = vpack.c.b16 %v1617, %v1616
        %v1630 = vpack.c.b16 %v1619, %v1618
        %v1631 = vpack.c.b16 %v1621, %v1620
        %v1643 = vsel %vm1209, %v1554, 0
        %v1646 = vsel %vm1209, %v1556, 0
        %v1649 = vsel %vm1209, %v1558, 0
        %v1652 = vsel %vm1209, %v1560, 0
        %1654 = vmatprep.subr.bf16.mxu0 0
        %1655 = vmatpush1.bf16.msra.mxu0 %v1622
        %1656 = vmatprep.subr.bf16.mxu0 0
        %1657 = vmatpush1.bf16.msra.mxu0 %v1623
        %1658 = vmatprep.subr.bf16.mxu0 0
        %1659 = vmatpush1.bf16.msra.mxu0 %v1624
        %1660 = vmatprep.subr.bf16.mxu0 0
        %1661 = vmatpush1.bf16.msra.mxu0 %v1625
        %1662 = vmatprep.subr.bf16.mxu0 0
        %1663 = vmatpush1.bf16.msra.mxu0 %v1626
        %1664 = vmatprep.subr.bf16.mxu0 0
        %1665 = vmatpush1.bf16.msra.mxu0 %v1627
        %1666 = vmatprep.subr.bf16.mxu0 0
        %1667 = vmatpush1.bf16.msra.mxu0 %v1628
        %1668 = vmatprep.subr.bf16.mxu0 0
        %1669 = vmatpush1.bf16.msra.mxu0 %v1629
        %1670 = vmatprep.subr.bf16.mxu0 0
        %1671 = vmatpush1.bf16.msra.mxu0 %v1630
        %1672 = vmatprep.subr.bf16.mxu0 0
        %1673 = vmatpush1.bf16.msra.mxu0 %v1631
        %1674 = vmatprep.subr.bf16.mxu0 0
        %1675 = vmatpush1.bf16.msra.mxu0 0
        %1676 = vmatprep.subr.bf16.mxu0 0
        %1677 = vmatpush1.bf16.msra.mxu0 0
        %1678 = vmatprep.subr.bf16.mxu0 0
        %1679 = vmatpush1.bf16.msra.mxu0 0
        %1680 = vmatprep.subr.bf16.mxu0 0
        %1681 = vmatpush1.bf16.msra.mxu0 0
        %1682 = vmatprep.subr.bf16.mxu0 0
        %1683 = vmatpush1.bf16.msra.mxu0 0
        %1684 = vmatprep.subr.bf16.mxu0 0
        %1685 = vmatpush1.bf16.msra.mxu0 0
        %1686 = vmatprep.mubr.bf16.mxu0 %v1643
        %1687 = vmatmul.mubr.bf16.gmra.mrb[0].mxu0 %v1553
        %v1688 = vpop.f32.mrb[0].mxu0
        %v1689 = vadd.f32 0.0, %v1688
        %v1690 = vpop.f32.mrb[0].mxu0
        %v1691 = vpop.f32.mrb[0].mxu0
        %v1692 = vadd.f32 0.0, %v1691
        %v1693 = vpop.f32.mrb[0].mxu0
        %1694 = vmatprep.mubr.bf16.mxu0 %v1646
        %1695 = vmatmul.mubr.bf16.gmra.mrb[0].mxu0 %v1555
        %v1696 = vpop.f32.mrb[0].mxu0
        %v1697 = vadd.f32 0.0, %v1696
        %v1698 = vpop.f32.mrb[0].mxu0
        %v1699 = vpop.f32.mrb[0].mxu0
        %v1700 = vadd.f32 0.0, %v1699
        %v1701 = vpop.f32.mrb[0].mxu0
        %1702 = vmatprep.mubr.bf16.mxu0 %v1649
        %1703 = vmatmul.mubr.bf16.gmra.mrb[0].mxu0 %v1557
        %v1704 = vpop.f32.mrb[0].mxu0
        %v1705 = vadd.f32 0.0, %v1704
        %v1706 = vpop.f32.mrb[0].mxu0
        %v1707 = vpop.f32.mrb[0].mxu0
        %v1708 = vadd.f32 0.0, %v1707
        %v1709 = vpop.f32.mrb[0].mxu0
        %1710 = vmatprep.mubr.bf16.mxu0 %v1652
        %1711 = vmatmul.mubr.bf16.gmra.mrb[0].mxu0 %v1559
        %v1712 = vpop.f32.mrb[0].mxu0
        %v1713 = vadd.f32 0.0, %v1712
        %v1714 = vpop.f32.mrb[0].mxu0
        %v1715 = vpop.f32.mrb[0].mxu0
        %v1716 = vadd.f32 0.0, %v1715
        %v1717 = vpop.f32.mrb[0].mxu0
        %1718 = vdwg.mxu0
        %v1719 = vadd.f32 %v1394, %v1689
        %v1720 = vadd.f32 %v1397, %v1692
        %v1721 = vadd.f32 %v1402, %v1697
        %v1722 = vadd.f32 %v1405, %v1700
        %v1723 = vadd.f32 %v1410, %v1705
        %v1724 = vadd.f32 %v1413, %v1708
        %v1725 = vadd.f32 %v1418, %v1713
        %v1726 = vadd.f32 %v1421, %v1716
        %v1727 = vld [vmem:[%s930] sm:$0xff]
        %v1728 = vld [vmem:[%s930 + $0x8] sm:$0xff]
        %v1729 = vld [vmem:[%s930 + $0x20] sm:$0xff]
        %v1730 = vld [vmem:[%s930 + $0x28] sm:$0xff]
        %v1731 = vld [vmem:[%s930 + $0x40] sm:$0xff]
        %v1732 = vld [vmem:[%s930 + $0x48] sm:$0xff]
        %v1733 = vld [vmem:[%s930 + $0x60] sm:$0xff]
        %v1734 = vld [vmem:[%s930 + $0x68] sm:$0xff]
        %v1735 = vld [vmem:[%s930 + $0x80] sm:$0xff]
        %v1736 = vld [vmem:[%s930 + $0x88] sm:$0xff]
        %v1737 = vld [vmem:[%s930 + $0xa0] sm:$0xff]
        %v1738 = vld [vmem:[%s930 + $0xa8] sm:$0xff]
        %v1739 = vld [vmem:[%s930 + $0xc0] sm:$0xff]
        %v1740 = vld [vmem:[%s930 + $0xc8] sm:$0xff]
        %v1741 = vld [vmem:[%s930 + $0xe0] sm:$0xff]
        %v1742 = vld [vmem:[%s930 + $0xe8] sm:$0xff]
        %v1743 = vpack.c.bf16 %v1729, %v1727
        %v1744 = vpack.c.bf16 %v1730, %v1728
        %v1745 = vpack.c.bf16 %v1733, %v1731
        %v1746 = vpack.c.bf16 %v1734, %v1732
        %v1747 = vpack.c.bf16 %v1737, %v1735
        %v1748 = vpack.c.bf16 %v1738, %v1736
        %v1749 = vpack.c.bf16 %v1741, %v1739
        %v1750 = vpack.c.bf16 %v1742, %v1740
        %s1751 = scalar_lea.vmem %s569, 240 [#allocation12]
        %v1752 = vld [vmem:[%s1751] sm:$0xf]
        %v1753 = vld [vmem:[%s1751 + $0x4] sm:$0xf]
        %v1754 = vld [vmem:[%s1751 + $0x8] sm:$0xf]
        %v1755 = vld [vmem:[%s1751 + $0xc] sm:$0xf]
        %v1756 = vld [vmem:[%s1751 + $0x10] sm:$0xf]
        %v1757 = vld [vmem:[%s1751 + $0x14] sm:$0xf]
        %v1758 = vld [vmem:[%s1751 + $0x18] sm:$0xf]
        %v1759 = vld [vmem:[%s1751 + $0x1c] sm:$0xf]
        %v1760 = vld [vmem:[%s1751 + $0x20] sm:$0xf]
        %v1761 = vld [vmem:[%s1751 + $0x24] sm:$0xf]
        %v1762 = vld [vmem:[%s1751 + $0x28] sm:$0xf]
        %v1763 = vld [vmem:[%s1751 + $0x2c] sm:$0xf]
        %v1764 = vld [vmem:[%s1751 + $0x30] sm:$0xf]
        %v1765 = vld [vmem:[%s1751 + $0x34] sm:$0xf]
        %v1766 = vld [vmem:[%s1751 + $0x38] sm:$0xf]
        %v1767 = vld [vmem:[%s1751 + $0x3c] sm:$0xf]
        %v1768 = vld [vmem:[%s1751 + $0x40] sm:$0xf]
        %v1769 = vld [vmem:[%s1751 + $0x44] sm:$0xf]
        %v1770 = vld [vmem:[%s1751 + $0x48] sm:$0xf]
        %v1771 = vld [vmem:[%s1751 + $0x4c] sm:$0xf]
        %v1792 = vunpack.c.l.b16 %v1752
        %v1793 = vunpack.c.l.b16 %v1753
        %v1794 = vunpack.c.l.b16 %v1754
        %v1795 = vunpack.c.l.b16 %v1755
        %v1796 = vunpack.c.l.b16 %v1756
        %v1797 = vunpack.c.l.b16 %v1757
        %v1798 = vunpack.c.l.b16 %v1758
        %v1799 = vunpack.c.l.b16 %v1759
        %v1800 = vunpack.c.l.b16 %v1760
        %v1801 = vunpack.c.l.b16 %v1761
        %v1802 = vunpack.c.l.b16 %v1762
        %v1803 = vunpack.c.l.b16 %v1763
        %v1804 = vunpack.c.l.b16 %v1764
        %v1805 = vunpack.c.l.b16 %v1765
        %v1806 = vunpack.c.l.b16 %v1766
        %v1807 = vunpack.c.l.b16 %v1767
        %v1808 = vunpack.c.l.b16 %v1768
        %v1809 = vunpack.c.l.b16 %v1769
        %v1810 = vunpack.c.l.b16 %v1770
        %v1811 = vunpack.c.l.b16 %v1771
        %v1812 = vpack.c.b16 %v1793, %v1792
        %v1813 = vpack.c.b16 %v1795, %v1794
        %v1814 = vpack.c.b16 %v1797, %v1796
        %v1815 = vpack.c.b16 %v1799, %v1798
        %v1816 = vpack.c.b16 %v1801, %v1800
        %v1817 = vpack.c.b16 %v1803, %v1802
        %v1818 = vpack.c.b16 %v1805, %v1804
        %v1819 = vpack.c.b16 %v1807, %v1806
        %v1820 = vpack.c.b16 %v1809, %v1808
        %v1821 = vpack.c.b16 %v1811, %v1810
        %v1833 = vsel %vm1209, %v1744, 0
        %v1836 = vsel %vm1209, %v1746, 0
        %v1839 = vsel %vm1209, %v1748, 0
        %v1842 = vsel %vm1209, %v1750, 0
        %1844 = vmatprep.subr.bf16.mxu0 0
        %1845 = vmatpush1.bf16.msra.mxu0 %v1812
        %1846 = vmatprep.subr.bf16.mxu0 0
        %1847 = vmatpush1.bf16.msra.mxu0 %v1813
        %1848 = vmatprep.subr.bf16.mxu0 0
        %1849 = vmatpush1.bf16.msra.mxu0 %v1814
        %1850 = vmatprep.subr.bf16.mxu0 0
        %1851 = vmatpush1.bf16.msra.mxu0 %v1815
        %1852 = vmatprep.subr.bf16.mxu0 0
        %1853 = vmatpush1.bf16.msra.mxu0 %v1816
        %1854 = vmatprep.subr.bf16.mxu0 0
        %1855 = vmatpush1.bf16.msra.mxu0 %v1817
        %1856 = vmatprep.subr.bf16.mxu0 0
        %1857 = vmatpush1.bf16.msra.mxu0 %v1818
        %1858 = vmatprep.subr.bf16.mxu0 0
        %1859 = vmatpush1.bf16.msra.mxu0 %v1819
        %1860 = vmatprep.subr.bf16.mxu0 0
        %1861 = vmatpush1.bf16.msra.mxu0 %v1820
        %1862 = vmatprep.subr.bf16.mxu0 0
        %1863 = vmatpush1.bf16.msra.mxu0 %v1821
        %1864 = vmatprep.subr.bf16.mxu0 0
        %1865 = vmatpush1.bf16.msra.mxu0 0
        %1866 = vmatprep.subr.bf16.mxu0 0
        %1867 = vmatpush1.bf16.msra.mxu0 0
        %1868 = vmatprep.subr.bf16.mxu0 0
        %1869 = vmatpush1.bf16.msra.mxu0 0
        %1870 = vmatprep.subr.bf16.mxu0 0
        %1871 = vmatpush1.bf16.msra.mxu0 0
        %1872 = vmatprep.subr.bf16.mxu0 0
        %1873 = vmatpush1.bf16.msra.mxu0 0
        %1874 = vmatprep.subr.bf16.mxu0 0
        %1875 = vmatpush1.bf16.msra.mxu0 0
        %1876 = vmatprep.mubr.bf16.mxu0 %v1833
        %1877 = vmatmul.mubr.bf16.gmra.mrb[0].mxu0 %v1743
        %v1878 = vpop.f32.mrb[0].mxu0
        %v1879 = vadd.f32 0.0, %v1878
        %v1880 = vpop.f32.mrb[0].mxu0
        %v1881 = vpop.f32.mrb[0].mxu0
        %v1882 = vadd.f32 0.0, %v1881
        %v1883 = vpop.f32.mrb[0].mxu0
        %1884 = vmatprep.mubr.bf16.mxu0 %v1836
        %1885 = vmatmul.mubr.bf16.gmra.mrb[0].mxu0 %v1745
        %v1886 = vpop.f32.mrb[0].mxu0
        %v1887 = vadd.f32 0.0, %v1886
        %v1888 = vpop.f32.mrb[0].mxu0
        %v1889 = vpop.f32.mrb[0].mxu0
        %v1890 = vadd.f32 0.0, %v1889
        %v1891 = vpop.f32.mrb[0].mxu0
        %1892 = vmatprep.mubr.bf16.mxu0 %v1839
        %1893 = vmatmul.mubr.bf16.gmra.mrb[0].mxu0 %v1747
        %v1894 = vpop.f32.mrb[0].mxu0
        %v1895 = vadd.f32 0.0, %v1894
        %v1896 = vpop.f32.mrb[0].mxu0
        %v1897 = vpop.f32.mrb[0].mxu0
        %v1898 = vadd.f32 0.0, %v1897
        %v1899 = vpop.f32.mrb[0].mxu0
        %1900 = vmatprep.mubr.bf16.mxu0 %v1842
        %1901 = vmatmul.mubr.bf16.gmra.mrb[0].mxu0 %v1749
        %v1902 = vpop.f32.mrb[0].mxu0
        %v1903 = vadd.f32 0.0, %v1902
        %v1904 = vpop.f32.mrb[0].mxu0
        %v1905 = vpop.f32.mrb[0].mxu0
        %v1906 = vadd.f32 0.0, %v1905
        %v1907 = vpop.f32.mrb[0].mxu0
        %1908 = vdwg.mxu0
        %v1909 = vadd.f32 %v1719, %v1879
        %v1910 = vadd.f32 %v1720, %v1882
        %v1911 = vadd.f32 %v1721, %v1887
        %v1912 = vadd.f32 %v1722, %v1890
        %v1913 = vadd.f32 %v1723, %v1895
        %v1914 = vadd.f32 %v1724, %v1898
        %v1915 = vadd.f32 %v1725, %v1903
        %v1916 = vadd.f32 %v1726, %v1906
        %v1917 = vld [vmem:[%s930] sm:$0xfe]
        %v1918 = vld [vmem:[%s930 + $0x8] sm:$0xfe]
        %v1919 = vld [vmem:[%s930 + $0x10] sm:$0x1]
        %v1920 = vld [vmem:[%s930 + $0x18] sm:$0x1]
        %v1921 = vld [vmem:[%s930 + $0x20] sm:$0xfe]
        %v1922 = vld [vmem:[%s930 + $0x28] sm:$0xfe]
        %v1923 = vld [vmem:[%s930 + $0x30] sm:$0x1]
        %v1924 = vld [vmem:[%s930 + $0x38] sm:$0x1]
        %v1925 = vld [vmem:[%s930 + $0x40] sm:$0xfe]
        %v1926 = vld [vmem:[%s930 + $0x48] sm:$0xfe]
        %v1927 = vld [vmem:[%s930 + $0x50] sm:$0x1]
        %v1928 = vld [vmem:[%s930 + $0x58] sm:$0x1]
        %v1929 = vld [vmem:[%s930 + $0x60] sm:$0xfe]
        %v1930 = vld [vmem:[%s930 + $0x68] sm:$0xfe]
        %v1931 = vld [vmem:[%s930 + $0x70] sm:$0x1]
        %v1932 = vld [vmem:[%s930 + $0x78] sm:$0x1]
        %v1933 = vld [vmem:[%s930 + $0x80] sm:$0xfe]
        %v1934 = vld [vmem:[%s930 + $0x88] sm:$0xfe]
        %v1935 = vld [vmem:[%s930 + $0x90] sm:$0x1]
        %v1936 = vld [vmem:[%s930 + $0x98] sm:$0x1]
        %v1937 = vld [vmem:[%s930 + $0xa0] sm:$0xfe]
        %v1938 = vld [vmem:[%s930 + $0xa8] sm:$0xfe]
        %v1939 = vld [vmem:[%s930 + $0xb0] sm:$0x1]
        %v1940 = vld [vmem:[%s930 + $0xb8] sm:$0x1]
        %v1941 = vld [vmem:[%s930 + $0xc0] sm:$0xfe]
        %v1942 = vld [vmem:[%s930 + $0xc8] sm:$0xfe]
        %v1943 = vld [vmem:[%s930 + $0xd0] sm:$0x1]
        %v1944 = vld [vmem:[%s930 + $0xd8] sm:$0x1]
        %v1945 = vld [vmem:[%s930 + $0xe0] sm:$0xfe]
        %v1946 = vld [vmem:[%s930 + $0xe8] sm:$0xfe]
        %v1947 = vld [vmem:[%s930 + $0xf0] sm:$0x1]
        %v1948 = vld [vmem:[%s930 + $0xf8] sm:$0x1]
        %v1981 = vrot.slane %v1917, 1
        %v1982 = vrot.slane %v1919, 1
        %v1983 = vsel %vm1055, %v1981, %v1982
        %v1984 = vrot.slane %v1918, 1
        %v1985 = vrot.slane %v1920, 1
        %v1986 = vsel %vm1055, %v1984, %v1985
        %v1987 = vrot.slane %v1921, 1
        %v1988 = vrot.slane %v1923, 1
        %v1989 = vsel %vm1055, %v1987, %v1988
        %v1990 = vrot.slane %v1922, 1
        %v1991 = vrot.slane %v1924, 1
        %v1992 = vsel %vm1055, %v1990, %v1991
        %v1993 = vrot.slane %v1925, 1
        %v1994 = vrot.slane %v1927, 1
        %v1995 = vsel %vm1055, %v1993, %v1994
        %v1996 = vrot.slane %v1926, 1
        %v1997 = vrot.slane %v1928, 1
        %v1998 = vsel %vm1055, %v1996, %v1997
        %v1999 = vrot.slane %v1929, 1
        %v2000 = vrot.slane %v1931, 1
        %v2001 = vsel %vm1055, %v1999, %v2000
        %v2002 = vrot.slane %v1930, 1
        %v2003 = vrot.slane %v1932, 1
        %v2004 = vsel %vm1055, %v2002, %v2003
        %v2005 = vrot.slane %v1933, 1
        %v2006 = vrot.slane %v1935, 1
        %v2007 = vsel %vm1055, %v2005, %v2006
        %v2008 = vrot.slane %v1934, 1
        %v2009 = vrot.slane %v1936, 1
        %v2010 = vsel %vm1055, %v2008, %v2009
        %v2011 = vrot.slane %v1937, 1
        %v2012 = vrot.slane %v1939, 1
        %v2013 = vsel %vm1055, %v2011, %v2012
        %v2014 = vrot.slane %v1938, 1
        %v2015 = vrot.slane %v1940, 1
        %v2016 = vsel %vm1055, %v2014, %v2015
        %v2017 = vrot.slane %v1941, 1
        %v2018 = vrot.slane %v1943, 1
        %v2019 = vsel %vm1055, %v2017, %v2018
        %v2020 = vrot.slane %v1942, 1
        %v2021 = vrot.slane %v1944, 1
        %v2022 = vsel %vm1055, %v2020, %v2021
        %v2023 = vrot.slane %v1945, 1
        %v2024 = vrot.slane %v1947, 1
        %v2025 = vsel %vm1055, %v2023, %v2024
        %v2026 = vrot.slane %v1946, 1
        %v2027 = vrot.slane %v1948, 1
        %v2028 = vsel %vm1055, %v2026, %v2027
        %v2045 = vpack.c.bf16 %v1989, %v1983
        %v2046 = vpack.c.bf16 %v1992, %v1986
        %v2047 = vpack.c.bf16 %v2001, %v1995
        %v2048 = vpack.c.bf16 %v2004, %v1998
        %v2049 = vpack.c.bf16 %v2013, %v2007
        %v2050 = vpack.c.bf16 %v2016, %v2010
        %v2051 = vpack.c.bf16 %v2025, %v2019
        %v2052 = vpack.c.bf16 %v2028, %v2022
        %s2053 = scalar_lea.vmem %s569, 320 [#allocation12]
        %v2054 = vld [vmem:[%s2053] sm:$0xf]
        %v2055 = vld [vmem:[%s2053 + $0x4] sm:$0xf]
        %v2056 = vld [vmem:[%s2053 + $0x8] sm:$0xf]
        %v2057 = vld [vmem:[%s2053 + $0xc] sm:$0xf]
        %v2058 = vld [vmem:[%s2053 + $0x10] sm:$0xf]
        %v2059 = vld [vmem:[%s2053 + $0x14] sm:$0xf]
        %v2060 = vld [vmem:[%s2053 + $0x18] sm:$0xf]
        %v2061 = vld [vmem:[%s2053 + $0x1c] sm:$0xf]
        %v2062 = vld [vmem:[%s2053 + $0x20] sm:$0xf]
        %v2063 = vld [vmem:[%s2053 + $0x24] sm:$0xf]
        %v2064 = vld [vmem:[%s2053 + $0x28] sm:$0xf]
        %v2065 = vld [vmem:[%s2053 + $0x2c] sm:$0xf]
        %v2066 = vld [vmem:[%s2053 + $0x30] sm:$0xf]
        %v2067 = vld [vmem:[%s2053 + $0x34] sm:$0xf]
        %v2068 = vld [vmem:[%s2053 + $0x38] sm:$0xf]
        %v2069 = vld [vmem:[%s2053 + $0x3c] sm:$0xf]
        %v2070 = vld [vmem:[%s2053 + $0x40] sm:$0xf]
        %v2071 = vld [vmem:[%s2053 + $0x44] sm:$0xf]
        %v2072 = vld [vmem:[%s2053 + $0x48] sm:$0xf]
        %v2073 = vld [vmem:[%s2053 + $0x4c] sm:$0xf]
        %v2094 = vunpack.c.l.b16 %v2054
        %v2095 = vunpack.c.l.b16 %v2055
        %v2096 = vunpack.c.l.b16 %v2056
        %v2097 = vunpack.c.l.b16 %v2057
        %v2098 = vunpack.c.l.b16 %v2058
        %v2099 = vunpack.c.l.b16 %v2059
        %v2100 = vunpack.c.l.b16 %v2060
        %v2101 = vunpack.c.l.b16 %v2061
        %v2102 = vunpack.c.l.b16 %v2062
        %v2103 = vunpack.c.l.b16 %v2063
        %v2104 = vunpack.c.l.b16 %v2064
        %v2105 = vunpack.c.l.b16 %v2065
        %v2106 = vunpack.c.l.b16 %v2066
        %v2107 = vunpack.c.l.b16 %v2067
        %v2108 = vunpack.c.l.b16 %v2068
        %v2109 = vunpack.c.l.b16 %v2069
        %v2110 = vunpack.c.l.b16 %v2070
        %v2111 = vunpack.c.l.b16 %v2071
        %v2112 = vunpack.c.l.b16 %v2072
        %v2113 = vunpack.c.l.b16 %v2073
        %v2114 = vpack.c.b16 %v2095, %v2094
        %v2115 = vpack.c.b16 %v2097, %v2096
        %v2116 = vpack.c.b16 %v2099, %v2098
        %v2117 = vpack.c.b16 %v2101, %v2100
        %v2118 = vpack.c.b16 %v2103, %v2102
        %v2119 = vpack.c.b16 %v2105, %v2104
        %v2120 = vpack.c.b16 %v2107, %v2106
        %v2121 = vpack.c.b16 %v2109, %v2108
        %v2122 = vpack.c.b16 %v2111, %v2110
        %v2123 = vpack.c.b16 %v2113, %v2112
        %v2135 = vsel %vm1209, %v2046, 0
        %v2138 = vsel %vm1209, %v2048, 0
        %v2141 = vsel %vm1209, %v2050, 0
        %v2144 = vsel %vm1209, %v2052, 0
        %2146 = vmatprep.subr.bf16.mxu0 0
        %2147 = vmatpush1.bf16.msra.mxu0 %v2114
        %2148 = vmatprep.subr.bf16.mxu0 0
        %2149 = vmatpush1.bf16.msra.mxu0 %v2115
        %2150 = vmatprep.subr.bf16.mxu0 0
        %2151 = vmatpush1.bf16.msra.mxu0 %v2116
        %2152 = vmatprep.subr.bf16.mxu0 0
        %2153 = vmatpush1.bf16.msra.mxu0 %v2117
        %2154 = vmatprep.subr.bf16.mxu0 0
        %2155 = vmatpush1.bf16.msra.mxu0 %v2118
        %2156 = vmatprep.subr.bf16.mxu0 0
        %2157 = vmatpush1.bf16.msra.mxu0 %v2119
        %2158 = vmatprep.subr.bf16.mxu0 0
        %2159 = vmatpush1.bf16.msra.mxu0 %v2120
        %2160 = vmatprep.subr.bf16.mxu0 0
        %2161 = vmatpush1.bf16.msra.mxu0 %v2121
        %2162 = vmatprep.subr.bf16.mxu0 0
        %2163 = vmatpush1.bf16.msra.mxu0 %v2122
        %2164 = vmatprep.subr.bf16.mxu0 0
        %2165 = vmatpush1.bf16.msra.mxu0 %v2123
        %2166 = vmatprep.subr.bf16.mxu0 0
        %2167 = vmatpush1.bf16.msra.mxu0 0
        %2168 = vmatprep.subr.bf16.mxu0 0
        %2169 = vmatpush1.bf16.msra.mxu0 0
        %2170 = vmatprep.subr.bf16.mxu0 0
        %2171 = vmatpush1.bf16.msra.mxu0 0
        %2172 = vmatprep.subr.bf16.mxu0 0
        %2173 = vmatpush1.bf16.msra.mxu0 0
        %2174 = vmatprep.subr.bf16.mxu0 0
        %2175 = vmatpush1.bf16.msra.mxu0 0
        %2176 = vmatprep.subr.bf16.mxu0 0
        %2177 = vmatpush1.bf16.msra.mxu0 0
        %2178 = vmatprep.mubr.bf16.mxu0 %v2135
        %2179 = vmatmul.mubr.bf16.gmra.mrb[0].mxu0 %v2045
        %v2180 = vpop.f32.mrb[0].mxu0
        %v2181 = vadd.f32 0.0, %v2180
        %v2182 = vpop.f32.mrb[0].mxu0
        %v2183 = vpop.f32.mrb[0].mxu0
        %v2184 = vadd.f32 0.0, %v2183
        %v2185 = vpop.f32.mrb[0].mxu0
        %2186 = vmatprep.mubr.bf16.mxu0 %v2138
        %2187 = vmatmul.mubr.bf16.gmra.mrb[0].mxu0 %v2047
        %v2188 = vpop.f32.mrb[0].mxu0
        %v2189 = vadd.f32 0.0, %v2188
        %v2190 = vpop.f32.mrb[0].mxu0
        %v2191 = vpop.f32.mrb[0].mxu0
        %v2192 = vadd.f32 0.0, %v2191
        %v2193 = vpop.f32.mrb[0].mxu0
        %2194 = vmatprep.mubr.bf16.mxu0 %v2141
        %2195 = vmatmul.mubr.bf16.gmra.mrb[0].mxu0 %v2049
        %v2196 = vpop.f32.mrb[0].mxu0
        %v2197 = vadd.f32 0.0, %v2196
        %v2198 = vpop.f32.mrb[0].mxu0
        %v2199 = vpop.f32.mrb[0].mxu0
        %v2200 = vadd.f32 0.0, %v2199
        %v2201 = vpop.f32.mrb[0].mxu0
        %2202 = vmatprep.mubr.bf16.mxu0 %v2144
        %2203 = vmatmul.mubr.bf16.gmra.mrb[0].mxu0 %v2051
        %v2204 = vpop.f32.mrb[0].mxu0
        %v2205 = vadd.f32 0.0, %v2204
        %v2206 = vpop.f32.mrb[0].mxu0
        %v2207 = vpop.f32.mrb[0].mxu0
        %v2208 = vadd.f32 0.0, %v2207
        %v2209 = vpop.f32.mrb[0].mxu0
        %2210 = vdwg.mxu0
        %v2211 = vadd.f32 %v1909, %v2181
        %v2212 = vadd.f32 %v1910, %v2184
        %v2213 = vadd.f32 %v1911, %v2189
        %v2214 = vadd.f32 %v1912, %v2192
        %v2215 = vadd.f32 %v1913, %v2197
        %v2216 = vadd.f32 %v1914, %v2200
        %v2217 = vadd.f32 %v1915, %v2205
        %v2218 = vadd.f32 %v1916, %v2208
        %v2219 = vld [vmem:[%s930] sm:$0xfc]
        %v2220 = vld [vmem:[%s930 + $0x8] sm:$0xfc]
        %v2221 = vld [vmem:[%s930 + $0x10] sm:$0x3]
        %v2222 = vld [vmem:[%s930 + $0x18] sm:$0x3]
        %v2223 = vld [vmem:[%s930 + $0x20] sm:$0xfc]
        %v2224 = vld [vmem:[%s930 + $0x28] sm:$0xfc]
        %v2225 = vld [vmem:[%s930 + $0x30] sm:$0x3]
        %v2226 = vld [vmem:[%s930 + $0x38] sm:$0x3]
        %v2227 = vld [vmem:[%s930 + $0x40] sm:$0xfc]
        %v2228 = vld [vmem:[%s930 + $0x48] sm:$0xfc]
        %v2229 = vld [vmem:[%s930 + $0x50] sm:$0x3]
        %v2230 = vld [vmem:[%s930 + $0x58] sm:$0x3]
        %v2231 = vld [vmem:[%s930 + $0x60] sm:$0xfc]
        %v2232 = vld [vmem:[%s930 + $0x68] sm:$0xfc]
        %v2233 = vld [vmem:[%s930 + $0x70] sm:$0x3]
        %v2234 = vld [vmem:[%s930 + $0x78] sm:$0x3]
        %v2235 = vld [vmem:[%s930 + $0x80] sm:$0xfc]
        %v2236 = vld [vmem:[%s930 + $0x88] sm:$0xfc]
        %v2237 = vld [vmem:[%s930 + $0x90] sm:$0x3]
        %v2238 = vld [vmem:[%s930 + $0x98] sm:$0x3]
        %v2239 = vld [vmem:[%s930 + $0xa0] sm:$0xfc]
        %v2240 = vld [vmem:[%s930 + $0xa8] sm:$0xfc]
        %v2241 = vld [vmem:[%s930 + $0xb0] sm:$0x3]
        %v2242 = vld [vmem:[%s930 + $0xb8] sm:$0x3]
        %v2243 = vld [vmem:[%s930 + $0xc0] sm:$0xfc]
        %v2244 = vld [vmem:[%s930 + $0xc8] sm:$0xfc]
        %v2245 = vld [vmem:[%s930 + $0xd0] sm:$0x3]
        %v2246 = vld [vmem:[%s930 + $0xd8] sm:$0x3]
        %v2247 = vld [vmem:[%s930 + $0xe0] sm:$0xfc]
        %v2248 = vld [vmem:[%s930 + $0xe8] sm:$0xfc]
        %v2249 = vld [vmem:[%s930 + $0xf0] sm:$0x3]
        %v2250 = vld [vmem:[%s930 + $0xf8] sm:$0x3]
        %v2283 = vrot.slane %v2219, 2
        %v2284 = vrot.slane %v2221, 2
        %v2285 = vsel %vm1488, %v2283, %v2284
        %v2286 = vrot.slane %v2220, 2
        %v2287 = vrot.slane %v2222, 2
        %v2288 = vsel %vm1488, %v2286, %v2287
        %v2289 = vrot.slane %v2223, 2
        %v2290 = vrot.slane %v2225, 2
        %v2291 = vsel %vm1488, %v2289, %v2290
        %v2292 = vrot.slane %v2224, 2
        %v2293 = vrot.slane %v2226, 2
        %v2294 = vsel %vm1488, %v2292, %v2293
        %v2295 = vrot.slane %v2227, 2
        %v2296 = vrot.slane %v2229, 2
        %v2297 = vsel %vm1488, %v2295, %v2296
        %v2298 = vrot.slane %v2228, 2
        %v2299 = vrot.slane %v2230, 2
        %v2300 = vsel %vm1488, %v2298, %v2299
        %v2301 = vrot.slane %v2231, 2
        %v2302 = vrot.slane %v2233, 2
        %v2303 = vsel %vm1488, %v2301, %v2302
        %v2304 = vrot.slane %v2232, 2
        %v2305 = vrot.slane %v2234, 2
        %v2306 = vsel %vm1488, %v2304, %v2305
        %v2307 = vrot.slane %v2235, 2
        %v2308 = vrot.slane %v2237, 2
        %v2309 = vsel %vm1488, %v2307, %v2308
        %v2310 = vrot.slane %v2236, 2
        %v2311 = vrot.slane %v2238, 2
        %v2312 = vsel %vm1488, %v2310, %v2311
        %v2313 = vrot.slane %v2239, 2
        %v2314 = vrot.slane %v2241, 2
        %v2315 = vsel %vm1488, %v2313, %v2314
        %v2316 = vrot.slane %v2240, 2
        %v2317 = vrot.slane %v2242, 2
        %v2318 = vsel %vm1488, %v2316, %v2317
        %v2319 = vrot.slane %v2243, 2
        %v2320 = vrot.slane %v2245, 2
        %v2321 = vsel %vm1488, %v2319, %v2320
        %v2322 = vrot.slane %v2244, 2
        %v2323 = vrot.slane %v2246, 2
        %v2324 = vsel %vm1488, %v2322, %v2323
        %v2325 = vrot.slane %v2247, 2
        %v2326 = vrot.slane %v2249, 2
        %v2327 = vsel %vm1488, %v2325, %v2326
        %v2328 = vrot.slane %v2248, 2
        %v2329 = vrot.slane %v2250, 2
        %v2330 = vsel %vm1488, %v2328, %v2329
        %v2347 = vpack.c.bf16 %v2291, %v2285
        %v2348 = vpack.c.bf16 %v2294, %v2288
        %v2349 = vpack.c.bf16 %v2303, %v2297
        %v2350 = vpack.c.bf16 %v2306, %v2300
        %v2351 = vpack.c.bf16 %v2315, %v2309
        %v2352 = vpack.c.bf16 %v2318, %v2312
        %v2353 = vpack.c.bf16 %v2327, %v2321
        %v2354 = vpack.c.bf16 %v2330, %v2324
        %s2355 = scalar_lea.vmem %s569, 400 [#allocation12]
        %v2356 = vld [vmem:[%s2355] sm:$0xf]
        %v2357 = vld [vmem:[%s2355 + $0x4] sm:$0xf]
        %v2358 = vld [vmem:[%s2355 + $0x8] sm:$0xf]
        %v2359 = vld [vmem:[%s2355 + $0xc] sm:$0xf]
        %v2360 = vld [vmem:[%s2355 + $0x10] sm:$0xf]
        %v2361 = vld [vmem:[%s2355 + $0x14] sm:$0xf]
        %v2362 = vld [vmem:[%s2355 + $0x18] sm:$0xf]
        %v2363 = vld [vmem:[%s2355 + $0x1c] sm:$0xf]
        %v2364 = vld [vmem:[%s2355 + $0x20] sm:$0xf]
        %v2365 = vld [vmem:[%s2355 + $0x24] sm:$0xf]
        %v2366 = vld [vmem:[%s2355 + $0x28] sm:$0xf]
        %v2367 = vld [vmem:[%s2355 + $0x2c] sm:$0xf]
        %v2368 = vld [vmem:[%s2355 + $0x30] sm:$0xf]
        %v2369 = vld [vmem:[%s2355 + $0x34] sm:$0xf]
        %v2370 = vld [vmem:[%s2355 + $0x38] sm:$0xf]
        %v2371 = vld [vmem:[%s2355 + $0x3c] sm:$0xf]
        %v2372 = vld [vmem:[%s2355 + $0x40] sm:$0xf]
        %v2373 = vld [vmem:[%s2355 + $0x44] sm:$0xf]
        %v2374 = vld [vmem:[%s2355 + $0x48] sm:$0xf]
        %v2375 = vld [vmem:[%s2355 + $0x4c] sm:$0xf]
        %v2396 = vunpack.c.l.b16 %v2356
        %v2397 = vunpack.c.l.b16 %v2357
        %v2398 = vunpack.c.l.b16 %v2358
        %v2399 = vunpack.c.l.b16 %v2359
        %v2400 = vunpack.c.l.b16 %v2360
        %v2401 = vunpack.c.l.b16 %v2361
        %v2402 = vunpack.c.l.b16 %v2362
        %v2403 = vunpack.c.l.b16 %v2363
        %v2404 = vunpack.c.l.b16 %v2364
        %v2405 = vunpack.c.l.b16 %v2365
        %v2406 = vunpack.c.l.b16 %v2366
        %v2407 = vunpack.c.l.b16 %v2367
        %v2408 = vunpack.c.l.b16 %v2368
        %v2409 = vunpack.c.l.b16 %v2369
        %v2410 = vunpack.c.l.b16 %v2370
        %v2411 = vunpack.c.l.b16 %v2371
        %v2412 = vunpack.c.l.b16 %v2372
        %v2413 = vunpack.c.l.b16 %v2373
        %v2414 = vunpack.c.l.b16 %v2374
        %v2415 = vunpack.c.l.b16 %v2375
        %v2416 = vpack.c.b16 %v2397, %v2396
        %v2417 = vpack.c.b16 %v2399, %v2398
        %v2418 = vpack.c.b16 %v2401, %v2400
        %v2419 = vpack.c.b16 %v2403, %v2402
        %v2420 = vpack.c.b16 %v2405, %v2404
        %v2421 = vpack.c.b16 %v2407, %v2406
        %v2422 = vpack.c.b16 %v2409, %v2408
        %v2423 = vpack.c.b16 %v2411, %v2410
        %v2424 = vpack.c.b16 %v2413, %v2412
        %v2425 = vpack.c.b16 %v2415, %v2414
        %v2437 = vsel %vm1209, %v2348, 0
        %v2440 = vsel %vm1209, %v2350, 0
        %v2443 = vsel %vm1209, %v2352, 0
        %v2446 = vsel %vm1209, %v2354, 0
        %2448 = vmatprep.subr.bf16.mxu0 0
        %2449 = vmatpush1.bf16.msra.mxu0 %v2416
        %2450 = vmatprep.subr.bf16.mxu0 0
        %2451 = vmatpush1.bf16.msra.mxu0 %v2417
        %2452 = vmatprep.subr.bf16.mxu0 0
        %2453 = vmatpush1.bf16.msra.mxu0 %v2418
        %2454 = vmatprep.subr.bf16.mxu0 0
        %2455 = vmatpush1.bf16.msra.mxu0 %v2419
        %2456 = vmatprep.subr.bf16.mxu0 0
        %2457 = vmatpush1.bf16.msra.mxu0 %v2420
        %2458 = vmatprep.subr.bf16.mxu0 0
        %2459 = vmatpush1.bf16.msra.mxu0 %v2421
        %2460 = vmatprep.subr.bf16.mxu0 0
        %2461 = vmatpush1.bf16.msra.mxu0 %v2422
        %2462 = vmatprep.subr.bf16.mxu0 0
        %2463 = vmatpush1.bf16.msra.mxu0 %v2423
        %2464 = vmatprep.subr.bf16.mxu0 0
        %2465 = vmatpush1.bf16.msra.mxu0 %v2424
        %2466 = vmatprep.subr.bf16.mxu0 0
        %2467 = vmatpush1.bf16.msra.mxu0 %v2425
        %2468 = vmatprep.subr.bf16.mxu0 0
        %2469 = vmatpush1.bf16.msra.mxu0 0
        %2470 = vmatprep.subr.bf16.mxu0 0
        %2471 = vmatpush1.bf16.msra.mxu0 0
        %2472 = vmatprep.subr.bf16.mxu0 0
        %2473 = vmatpush1.bf16.msra.mxu0 0
        %2474 = vmatprep.subr.bf16.mxu0 0
        %2475 = vmatpush1.bf16.msra.mxu0 0
        %2476 = vmatprep.subr.bf16.mxu0 0
        %2477 = vmatpush1.bf16.msra.mxu0 0
        %2478 = vmatprep.subr.bf16.mxu0 0
        %2479 = vmatpush1.bf16.msra.mxu0 0
        %2480 = vmatprep.mubr.bf16.mxu0 %v2437
        %2481 = vmatmul.mubr.bf16.gmra.mrb[0].mxu0 %v2347
        %v2482 = vpop.f32.mrb[0].mxu0
        %v2483 = vadd.f32 0.0, %v2482
        %v2484 = vpop.f32.mrb[0].mxu0
        %v2485 = vpop.f32.mrb[0].mxu0
        %v2486 = vadd.f32 0.0, %v2485
        %v2487 = vpop.f32.mrb[0].mxu0
        %2488 = vmatprep.mubr.bf16.mxu0 %v2440
        %2489 = vmatmul.mubr.bf16.gmra.mrb[0].mxu0 %v2349
        %v2490 = vpop.f32.mrb[0].mxu0
        %v2491 = vadd.f32 0.0, %v2490
        %v2492 = vpop.f32.mrb[0].mxu0
        %v2493 = vpop.f32.mrb[0].mxu0
        %v2494 = vadd.f32 0.0, %v2493
        %v2495 = vpop.f32.mrb[0].mxu0
        %2496 = vmatprep.mubr.bf16.mxu0 %v2443
        %2497 = vmatmul.mubr.bf16.gmra.mrb[0].mxu0 %v2351
        %v2498 = vpop.f32.mrb[0].mxu0
        %v2499 = vadd.f32 0.0, %v2498
        %v2500 = vpop.f32.mrb[0].mxu0
        %v2501 = vpop.f32.mrb[0].mxu0
        %v2502 = vadd.f32 0.0, %v2501
        %v2503 = vpop.f32.mrb[0].mxu0
        %2504 = vmatprep.mubr.bf16.mxu0 %v2446
        %2505 = vmatmul.mubr.bf16.gmra.mrb[0].mxu0 %v2353
        %v2506 = vpop.f32.mrb[0].mxu0
        %v2507 = vadd.f32 0.0, %v2506
        %v2508 = vpop.f32.mrb[0].mxu0
        %v2509 = vpop.f32.mrb[0].mxu0
        %v2510 = vadd.f32 0.0, %v2509
        %v2511 = vpop.f32.mrb[0].mxu0
        %2512 = vdwg.mxu0
        %v2513 = vadd.f32 %v2211, %v2483
        %v2514 = vadd.f32 %v2212, %v2486
        %v2515 = vadd.f32 %v2213, %v2491
        %v2516 = vadd.f32 %v2214, %v2494
        %v2517 = vadd.f32 %v2215, %v2499
        %v2518 = vadd.f32 %v2216, %v2502
        %v2519 = vadd.f32 %v2217, %v2507
        %v2520 = vadd.f32 %v2218, %v2510
        %s2521 = scalar_lea.vmem [#allocation3], 64
        %v2522 = vld [vmem:[%s2521] sm:$0xff]
        %v2523 = vld [vmem:[%s2521 + $0x8] sm:$0xff]
        %v2524 = vld [vmem:[%s2521 + $0x20] sm:$0xff]
        %v2525 = vld [vmem:[%s2521 + $0x28] sm:$0xff]
        %v2526 = vld [vmem:[%s2521 + $0x40] sm:$0xff]
        %v2527 = vld [vmem:[%s2521 + $0x48] sm:$0xff]
        %v2528 = vld [vmem:[%s2521 + $0x60] sm:$0xff]
        %v2529 = vld [vmem:[%s2521 + $0x68] sm:$0xff]
        %v2530 = vld [vmem:[%s2521 + $0x80] sm:$0xff]
        %v2531 = vld [vmem:[%s2521 + $0x88] sm:$0xff]
        %v2532 = vld [vmem:[%s2521 + $0xa0] sm:$0xff]
        %v2533 = vld [vmem:[%s2521 + $0xa8] sm:$0xff]
        %v2534 = vld [vmem:[%s2521 + $0xc0] sm:$0xff]
        %v2535 = vld [vmem:[%s2521 + $0xc8] sm:$0xff]
        %v2536 = vld [vmem:[%s2521 + $0xe0] sm:$0xff]
        %v2537 = vld [vmem:[%s2521 + $0xe8] sm:$0xff]
        %v2538 = vpack.c.bf16 %v2524, %v2522
        %v2539 = vpack.c.bf16 %v2525, %v2523
        %v2540 = vpack.c.bf16 %v2528, %v2526
        %v2541 = vpack.c.bf16 %v2529, %v2527
        %v2542 = vpack.c.bf16 %v2532, %v2530
        %v2543 = vpack.c.bf16 %v2533, %v2531
        %v2544 = vpack.c.bf16 %v2536, %v2534
        %v2545 = vpack.c.bf16 %v2537, %v2535
        %s2546 = scalar_lea.vmem %s569, 480 [#allocation12]
        %v2547 = vld [vmem:[%s2546] sm:$0xf]
        %v2548 = vld [vmem:[%s2546 + $0x4] sm:$0xf]
        %v2549 = vld [vmem:[%s2546 + $0x8] sm:$0xf]
        %v2550 = vld [vmem:[%s2546 + $0xc] sm:$0xf]
        %v2551 = vld [vmem:[%s2546 + $0x10] sm:$0xf]
        %v2552 = vld [vmem:[%s2546 + $0x14] sm:$0xf]
        %v2553 = vld [vmem:[%s2546 + $0x18] sm:$0xf]
        %v2554 = vld [vmem:[%s2546 + $0x1c] sm:$0xf]
        %v2555 = vld [vmem:[%s2546 + $0x20] sm:$0xf]
        %v2556 = vld [vmem:[%s2546 + $0x24] sm:$0xf]
        %v2557 = vld [vmem:[%s2546 + $0x28] sm:$0xf]
        %v2558 = vld [vmem:[%s2546 + $0x2c] sm:$0xf]
        %v2559 = vld [vmem:[%s2546 + $0x30] sm:$0xf]
        %v2560 = vld [vmem:[%s2546 + $0x34] sm:$0xf]
        %v2561 = vld [vmem:[%s2546 + $0x38] sm:$0xf]
        %v2562 = vld [vmem:[%s2546 + $0x3c] sm:$0xf]
        %v2563 = vld [vmem:[%s2546 + $0x40] sm:$0xf]
        %v2564 = vld [vmem:[%s2546 + $0x44] sm:$0xf]
        %v2565 = vld [vmem:[%s2546 + $0x48] sm:$0xf]
        %v2566 = vld [vmem:[%s2546 + $0x4c] sm:$0xf]
        %v2587 = vunpack.c.l.b16 %v2547
        %v2588 = vunpack.c.l.b16 %v2548
        %v2589 = vunpack.c.l.b16 %v2549
        %v2590 = vunpack.c.l.b16 %v2550
        %v2591 = vunpack.c.l.b16 %v2551
        %v2592 = vunpack.c.l.b16 %v2552
        %v2593 = vunpack.c.l.b16 %v2553
        %v2594 = vunpack.c.l.b16 %v2554
        %v2595 = vunpack.c.l.b16 %v2555
        %v2596 = vunpack.c.l.b16 %v2556
        %v2597 = vunpack.c.l.b16 %v2557
        %v2598 = vunpack.c.l.b16 %v2558
        %v2599 = vunpack.c.l.b16 %v2559
        %v2600 = vunpack.c.l.b16 %v2560
        %v2601 = vunpack.c.l.b16 %v2561
        %v2602 = vunpack.c.l.b16 %v2562
        %v2603 = vunpack.c.l.b16 %v2563
        %v2604 = vunpack.c.l.b16 %v2564
        %v2605 = vunpack.c.l.b16 %v2565
        %v2606 = vunpack.c.l.b16 %v2566
        %v2607 = vpack.c.b16 %v2588, %v2587
        %v2608 = vpack.c.b16 %v2590, %v2589
        %v2609 = vpack.c.b16 %v2592, %v2591
        %v2610 = vpack.c.b16 %v2594, %v2593
        %v2611 = vpack.c.b16 %v2596, %v2595
        %v2612 = vpack.c.b16 %v2598, %v2597
        %v2613 = vpack.c.b16 %v2600, %v2599
        %v2614 = vpack.c.b16 %v2602, %v2601
        %v2615 = vpack.c.b16 %v2604, %v2603
        %v2616 = vpack.c.b16 %v2606, %v2605
        %v2628 = vsel %vm1209, %v2539, 0
        %v2631 = vsel %vm1209, %v2541, 0
        %v2634 = vsel %vm1209, %v2543, 0
        %v2637 = vsel %vm1209, %v2545, 0
        %2639 = vmatprep.subr.bf16.mxu0 0
        %2640 = vmatpush1.bf16.msra.mxu0 %v2607
        %2641 = vmatprep.subr.bf16.mxu0 0
        %2642 = vmatpush1.bf16.msra.mxu0 %v2608
        %2643 = vmatprep.subr.bf16.mxu0 0
        %2644 = vmatpush1.bf16.msra.mxu0 %v2609
        %2645 = vmatprep.subr.bf16.mxu0 0
        %2646 = vmatpush1.bf16.msra.mxu0 %v2610
        %2647 = vmatprep.subr.bf16.mxu0 0
        %2648 = vmatpush1.bf16.msra.mxu0 %v2611
        %2649 = vmatprep.subr.bf16.mxu0 0
        %2650 = vmatpush1.bf16.msra.mxu0 %v2612
        %2651 = vmatprep.subr.bf16.mxu0 0
        %2652 = vmatpush1.bf16.msra.mxu0 %v2613
        %2653 = vmatprep.subr.bf16.mxu0 0
        %2654 = vmatpush1.bf16.msra.mxu0 %v2614
        %2655 = vmatprep.subr.bf16.mxu0 0
        %2656 = vmatpush1.bf16.msra.mxu0 %v2615
        %2657 = vmatprep.subr.bf16.mxu0 0
        %2658 = vmatpush1.bf16.msra.mxu0 %v2616
        %2659 = vmatprep.subr.bf16.mxu0 0
        %2660 = vmatpush1.bf16.msra.mxu0 0
        %2661 = vmatprep.subr.bf16.mxu0 0
        %2662 = vmatpush1.bf16.msra.mxu0 0
        %2663 = vmatprep.subr.bf16.mxu0 0
        %2664 = vmatpush1.bf16.msra.mxu0 0
        %2665 = vmatprep.subr.bf16.mxu0 0
        %2666 = vmatpush1.bf16.msra.mxu0 0
        %2667 = vmatprep.subr.bf16.mxu0 0
        %2668 = vmatpush1.bf16.msra.mxu0 0
        %2669 = vmatprep.subr.bf16.mxu0 0
        %2670 = vmatpush1.bf16.msra.mxu0 0
        %2671 = vmatprep.mubr.bf16.mxu0 %v2628
        %2672 = vmatmul.mubr.bf16.gmra.mrb[0].mxu0 %v2538
        %v2673 = vpop.f32.mrb[0].mxu0
        %v2674 = vadd.f32 0.0, %v2673
        %v2675 = vpop.f32.mrb[0].mxu0
        %v2676 = vpop.f32.mrb[0].mxu0
        %v2677 = vadd.f32 0.0, %v2676
        %v2678 = vpop.f32.mrb[0].mxu0
        %2679 = vmatprep.mubr.bf16.mxu0 %v2631
        %2680 = vmatmul.mubr.bf16.gmra.mrb[0].mxu0 %v2540
        %v2681 = vpop.f32.mrb[0].mxu0
        %v2682 = vadd.f32 0.0, %v2681
        %v2683 = vpop.f32.mrb[0].mxu0
        %v2684 = vpop.f32.mrb[0].mxu0
        %v2685 = vadd.f32 0.0, %v2684
        %v2686 = vpop.f32.mrb[0].mxu0
        %2687 = vmatprep.mubr.bf16.mxu0 %v2634
        %2688 = vmatmul.mubr.bf16.gmra.mrb[0].mxu0 %v2542
        %v2689 = vpop.f32.mrb[0].mxu0
        %v2690 = vadd.f32 0.0, %v2689
        %v2691 = vpop.f32.mrb[0].mxu0
        %v2692 = vpop.f32.mrb[0].mxu0
        %v2693 = vadd.f32 0.0, %v2692
        %v2694 = vpop.f32.mrb[0].mxu0
        %2695 = vmatprep.mubr.bf16.mxu0 %v2637
        %2696 = vmatmul.mubr.bf16.gmra.mrb[0].mxu0 %v2544
        %v2697 = vpop.f32.mrb[0].mxu0
        %v2698 = vadd.f32 0.0, %v2697
        %v2699 = vpop.f32.mrb[0].mxu0
        %v2700 = vpop.f32.mrb[0].mxu0
        %v2701 = vadd.f32 0.0, %v2700
        %v2702 = vpop.f32.mrb[0].mxu0
        %2703 = vdwg.mxu0
        %v2704 = vadd.f32 %v2513, %v2674
        %v2705 = vadd.f32 %v2514, %v2677
        %v2706 = vadd.f32 %v2515, %v2682
        %v2707 = vadd.f32 %v2516, %v2685
        %v2708 = vadd.f32 %v2517, %v2690
        %v2709 = vadd.f32 %v2518, %v2693
        %v2710 = vadd.f32 %v2519, %v2698
        %v2711 = vadd.f32 %v2520, %v2701
        %v2712 = vld [vmem:[%s2521] sm:$0xfe]
        %v2713 = vld [vmem:[%s2521 + $0x8] sm:$0xfe]
        %v2714 = vld [vmem:[%s2521 + $0x10] sm:$0x1]
        %v2715 = vld [vmem:[%s2521 + $0x18] sm:$0x1]
        %v2716 = vld [vmem:[%s2521 + $0x20] sm:$0xfe]
        %v2717 = vld [vmem:[%s2521 + $0x28] sm:$0xfe]
        %v2718 = vld [vmem:[%s2521 + $0x30] sm:$0x1]
        %v2719 = vld [vmem:[%s2521 + $0x38] sm:$0x1]
        %v2720 = vld [vmem:[%s2521 + $0x40] sm:$0xfe]
        %v2721 = vld [vmem:[%s2521 + $0x48] sm:$0xfe]
        %v2722 = vld [vmem:[%s2521 + $0x50] sm:$0x1]
        %v2723 = vld [vmem:[%s2521 + $0x58] sm:$0x1]
        %v2724 = vld [vmem:[%s2521 + $0x60] sm:$0xfe]
        %v2725 = vld [vmem:[%s2521 + $0x68] sm:$0xfe]
        %v2726 = vld [vmem:[%s2521 + $0x70] sm:$0x1]
        %v2727 = vld [vmem:[%s2521 + $0x78] sm:$0x1]
        %v2728 = vld [vmem:[%s2521 + $0x80] sm:$0xfe]
        %v2729 = vld [vmem:[%s2521 + $0x88] sm:$0xfe]
        %v2730 = vld [vmem:[%s2521 + $0x90] sm:$0x1]
        %v2731 = vld [vmem:[%s2521 + $0x98] sm:$0x1]
        %v2732 = vld [vmem:[%s2521 + $0xa0] sm:$0xfe]
        %v2733 = vld [vmem:[%s2521 + $0xa8] sm:$0xfe]
        %v2734 = vld [vmem:[%s2521 + $0xb0] sm:$0x1]
        %v2735 = vld [vmem:[%s2521 + $0xb8] sm:$0x1]
        %v2736 = vld [vmem:[%s2521 + $0xc0] sm:$0xfe]
        %v2737 = vld [vmem:[%s2521 + $0xc8] sm:$0xfe]
        %v2738 = vld [vmem:[%s2521 + $0xd0] sm:$0x1]
        %v2739 = vld [vmem:[%s2521 + $0xd8] sm:$0x1]
        %v2740 = vld [vmem:[%s2521 + $0xe0] sm:$0xfe]
        %v2741 = vld [vmem:[%s2521 + $0xe8] sm:$0xfe]
        %v2742 = vld [vmem:[%s2521 + $0xf0] sm:$0x1]
        %v2743 = vld [vmem:[%s2521 + $0xf8] sm:$0x1]
        %v2776 = vrot.slane %v2712, 1
        %v2777 = vrot.slane %v2714, 1
        %v2778 = vsel %vm1055, %v2776, %v2777
        %v2779 = vrot.slane %v2713, 1
        %v2780 = vrot.slane %v2715, 1
        %v2781 = vsel %vm1055, %v2779, %v2780
        %v2782 = vrot.slane %v2716, 1
        %v2783 = vrot.slane %v2718, 1
        %v2784 = vsel %vm1055, %v2782, %v2783
        %v2785 = vrot.slane %v2717, 1
        %v2786 = vrot.slane %v2719, 1
        %v2787 = vsel %vm1055, %v2785, %v2786
        %v2788 = vrot.slane %v2720, 1
        %v2789 = vrot.slane %v2722, 1
        %v2790 = vsel %vm1055, %v2788, %v2789
        %v2791 = vrot.slane %v2721, 1
        %v2792 = vrot.slane %v2723, 1
        %v2793 = vsel %vm1055, %v2791, %v2792
        %v2794 = vrot.slane %v2724, 1
        %v2795 = vrot.slane %v2726, 1
        %v2796 = vsel %vm1055, %v2794, %v2795
        %v2797 = vrot.slane %v2725, 1
        %v2798 = vrot.slane %v2727, 1
        %v2799 = vsel %vm1055, %v2797, %v2798
        %v2800 = vrot.slane %v2728, 1
        %v2801 = vrot.slane %v2730, 1
        %v2802 = vsel %vm1055, %v2800, %v2801
        %v2803 = vrot.slane %v2729, 1
        %v2804 = vrot.slane %v2731, 1
        %v2805 = vsel %vm1055, %v2803, %v2804
        %v2806 = vrot.slane %v2732, 1
        %v2807 = vrot.slane %v2734, 1
        %v2808 = vsel %vm1055, %v2806, %v2807
        %v2809 = vrot.slane %v2733, 1
        %v2810 = vrot.slane %v2735, 1
        %v2811 = vsel %vm1055, %v2809, %v2810
        %v2812 = vrot.slane %v2736, 1
        %v2813 = vrot.slane %v2738, 1
        %v2814 = vsel %vm1055, %v2812, %v2813
        %v2815 = vrot.slane %v2737, 1
        %v2816 = vrot.slane %v2739, 1
        %v2817 = vsel %vm1055, %v2815, %v2816
        %v2818 = vrot.slane %v2740, 1
        %v2819 = vrot.slane %v2742, 1
        %v2820 = vsel %vm1055, %v2818, %v2819
        %v2821 = vrot.slane %v2741, 1
        %v2822 = vrot.slane %v2743, 1
        %v2823 = vsel %vm1055, %v2821, %v2822
        %v2840 = vpack.c.bf16 %v2784, %v2778
        %v2841 = vpack.c.bf16 %v2787, %v2781
        %v2842 = vpack.c.bf16 %v2796, %v2790
        %v2843 = vpack.c.bf16 %v2799, %v2793
        %v2844 = vpack.c.bf16 %v2808, %v2802
        %v2845 = vpack.c.bf16 %v2811, %v2805
        %v2846 = vpack.c.bf16 %v2820, %v2814
        %v2847 = vpack.c.bf16 %v2823, %v2817
        %s2848 = scalar_lea.vmem %s569, 560 [#allocation12]
        %v2849 = vld [vmem:[%s2848] sm:$0xf]
        %v2850 = vld [vmem:[%s2848 + $0x4] sm:$0xf]
        %v2851 = vld [vmem:[%s2848 + $0x8] sm:$0xf]
        %v2852 = vld [vmem:[%s2848 + $0xc] sm:$0xf]
        %v2853 = vld [vmem:[%s2848 + $0x10] sm:$0xf]
        %v2854 = vld [vmem:[%s2848 + $0x14] sm:$0xf]
        %v2855 = vld [vmem:[%s2848 + $0x18] sm:$0xf]
        %v2856 = vld [vmem:[%s2848 + $0x1c] sm:$0xf]
        %v2857 = vld [vmem:[%s2848 + $0x20] sm:$0xf]
        %v2858 = vld [vmem:[%s2848 + $0x24] sm:$0xf]
        %v2859 = vld [vmem:[%s2848 + $0x28] sm:$0xf]
        %v2860 = vld [vmem:[%s2848 + $0x2c] sm:$0xf]
        %v2861 = vld [vmem:[%s2848 + $0x30] sm:$0xf]
        %v2862 = vld [vmem:[%s2848 + $0x34] sm:$0xf]
        %v2863 = vld [vmem:[%s2848 + $0x38] sm:$0xf]
        %v2864 = vld [vmem:[%s2848 + $0x3c] sm:$0xf]
        %v2865 = vld [vmem:[%s2848 + $0x40] sm:$0xf]
        %v2866 = vld [vmem:[%s2848 + $0x44] sm:$0xf]
        %v2867 = vld [vmem:[%s2848 + $0x48] sm:$0xf]
        %v2868 = vld [vmem:[%s2848 + $0x4c] sm:$0xf]
        %v2889 = vunpack.c.l.b16 %v2849
        %v2890 = vunpack.c.l.b16 %v2850
        %v2891 = vunpack.c.l.b16 %v2851
        %v2892 = vunpack.c.l.b16 %v2852
        %v2893 = vunpack.c.l.b16 %v2853
        %v2894 = vunpack.c.l.b16 %v2854
        %v2895 = vunpack.c.l.b16 %v2855
        %v2896 = vunpack.c.l.b16 %v2856
        %v2897 = vunpack.c.l.b16 %v2857
        %v2898 = vunpack.c.l.b16 %v2858
        %v2899 = vunpack.c.l.b16 %v2859
        %v2900 = vunpack.c.l.b16 %v2860
        %v2901 = vunpack.c.l.b16 %v2861
        %v2902 = vunpack.c.l.b16 %v2862
        %v2903 = vunpack.c.l.b16 %v2863
        %v2904 = vunpack.c.l.b16 %v2864
        %v2905 = vunpack.c.l.b16 %v2865
        %v2906 = vunpack.c.l.b16 %v2866
        %v2907 = vunpack.c.l.b16 %v2867
        %v2908 = vunpack.c.l.b16 %v2868
        %v2909 = vpack.c.b16 %v2890, %v2889
        %v2910 = vpack.c.b16 %v2892, %v2891
        %v2911 = vpack.c.b16 %v2894, %v2893
        %v2912 = vpack.c.b16 %v2896, %v2895
        %v2913 = vpack.c.b16 %v2898, %v2897
        %v2914 = vpack.c.b16 %v2900, %v2899
        %v2915 = vpack.c.b16 %v2902, %v2901
        %v2916 = vpack.c.b16 %v2904, %v2903
        %v2917 = vpack.c.b16 %v2906, %v2905
        %v2918 = vpack.c.b16 %v2908, %v2907
        %v2930 = vsel %vm1209, %v2841, 0
        %v2933 = vsel %vm1209, %v2843, 0
        %v2936 = vsel %vm1209, %v2845, 0
        %v2939 = vsel %vm1209, %v2847, 0
        %2941 = vmatprep.subr.bf16.mxu0 0
        %2942 = vmatpush1.bf16.msra.mxu0 %v2909
        %2943 = vmatprep.subr.bf16.mxu0 0
        %2944 = vmatpush1.bf16.msra.mxu0 %v2910
        %2945 = vmatprep.subr.bf16.mxu0 0
        %2946 = vmatpush1.bf16.msra.mxu0 %v2911
        %2947 = vmatprep.subr.bf16.mxu0 0
        %2948 = vmatpush1.bf16.msra.mxu0 %v2912
        %2949 = vmatprep.subr.bf16.mxu0 0
        %2950 = vmatpush1.bf16.msra.mxu0 %v2913
        %2951 = vmatprep.subr.bf16.mxu0 0
        %2952 = vmatpush1.bf16.msra.mxu0 %v2914
        %2953 = vmatprep.subr.bf16.mxu0 0
        %2954 = vmatpush1.bf16.msra.mxu0 %v2915
        %2955 = vmatprep.subr.bf16.mxu0 0
        %2956 = vmatpush1.bf16.msra.mxu0 %v2916
        %2957 = vmatprep.subr.bf16.mxu0 0
        %2958 = vmatpush1.bf16.msra.mxu0 %v2917
        %2959 = vmatprep.subr.bf16.mxu0 0
        %2960 = vmatpush1.bf16.msra.mxu0 %v2918
        %2961 = vmatprep.subr.bf16.mxu0 0
        %2962 = vmatpush1.bf16.msra.mxu0 0
        %2963 = vmatprep.subr.bf16.mxu0 0
        %2964 = vmatpush1.bf16.msra.mxu0 0
        %2965 = vmatprep.subr.bf16.mxu0 0
        %2966 = vmatpush1.bf16.msra.mxu0 0
        %2967 = vmatprep.subr.bf16.mxu0 0
        %2968 = vmatpush1.bf16.msra.mxu0 0
        %2969 = vmatprep.subr.bf16.mxu0 0
        %2970 = vmatpush1.bf16.msra.mxu0 0
        %2971 = vmatprep.subr.bf16.mxu0 0
        %2972 = vmatpush1.bf16.msra.mxu0 0
        %2973 = vmatprep.mubr.bf16.mxu0 %v2930
        %2974 = vmatmul.mubr.bf16.gmra.mrb[0].mxu0 %v2840
        %v2975 = vpop.f32.mrb[0].mxu0
        %v2976 = vadd.f32 0.0, %v2975
        %v2977 = vpop.f32.mrb[0].mxu0
        %v2978 = vpop.f32.mrb[0].mxu0
        %v2979 = vadd.f32 0.0, %v2978
        %v2980 = vpop.f32.mrb[0].mxu0
        %2981 = vmatprep.mubr.bf16.mxu0 %v2933
        %2982 = vmatmul.mubr.bf16.gmra.mrb[0].mxu0 %v2842
        %v2983 = vpop.f32.mrb[0].mxu0
        %v2984 = vadd.f32 0.0, %v2983
        %v2985 = vpop.f32.mrb[0].mxu0
        %v2986 = vpop.f32.mrb[0].mxu0
        %v2987 = vadd.f32 0.0, %v2986
        %v2988 = vpop.f32.mrb[0].mxu0
        %2989 = vmatprep.mubr.bf16.mxu0 %v2936
        %2990 = vmatmul.mubr.bf16.gmra.mrb[0].mxu0 %v2844
        %v2991 = vpop.f32.mrb[0].mxu0
        %v2992 = vadd.f32 0.0, %v2991
        %v2993 = vpop.f32.mrb[0].mxu0
        %v2994 = vpop.f32.mrb[0].mxu0
        %v2995 = vadd.f32 0.0, %v2994
        %v2996 = vpop.f32.mrb[0].mxu0
        %2997 = vmatprep.mubr.bf16.mxu0 %v2939
        %2998 = vmatmul.mubr.bf16.gmra.mrb[0].mxu0 %v2846
        %v2999 = vpop.f32.mrb[0].mxu0
        %v3000 = vadd.f32 0.0, %v2999
        %v3001 = vpop.f32.mrb[0].mxu0
        %v3002 = vpop.f32.mrb[0].mxu0
        %v3003 = vadd.f32 0.0, %v3002
        %v3004 = vpop.f32.mrb[0].mxu0
        %3005 = vdwg.mxu0
        %v3006 = vadd.f32 %v2704, %v2976
        %v3007 = vadd.f32 %v2705, %v2979
        %v3008 = vadd.f32 %v2706, %v2984
        %v3009 = vadd.f32 %v2707, %v2987
        %v3010 = vadd.f32 %v2708, %v2992
        %v3011 = vadd.f32 %v2709, %v2995
        %v3012 = vadd.f32 %v2710, %v3000
        %v3013 = vadd.f32 %v2711, %v3003
        %v3014 = vld [vmem:[%s2521] sm:$0xfc]
        %v3015 = vld [vmem:[%s2521 + $0x8] sm:$0xfc]
        %v3016 = vld [vmem:[%s2521 + $0x10] sm:$0x3]
        %v3017 = vld [vmem:[%s2521 + $0x18] sm:$0x3]
        %v3018 = vld [vmem:[%s2521 + $0x20] sm:$0xfc]
        %v3019 = vld [vmem:[%s2521 + $0x28] sm:$0xfc]
        %v3020 = vld [vmem:[%s2521 + $0x30] sm:$0x3]
        %v3021 = vld [vmem:[%s2521 + $0x38] sm:$0x3]
        %v3022 = vld [vmem:[%s2521 + $0x40] sm:$0xfc]
        %v3023 = vld [vmem:[%s2521 + $0x48] sm:$0xfc]
        %v3024 = vld [vmem:[%s2521 + $0x50] sm:$0x3]
        %v3025 = vld [vmem:[%s2521 + $0x58] sm:$0x3]
        %v3026 = vld [vmem:[%s2521 + $0x60] sm:$0xfc]
        %v3027 = vld [vmem:[%s2521 + $0x68] sm:$0xfc]
        %v3028 = vld [vmem:[%s2521 + $0x70] sm:$0x3]
        %v3029 = vld [vmem:[%s2521 + $0x78] sm:$0x3]
        %v3030 = vld [vmem:[%s2521 + $0x80] sm:$0xfc]
        %v3031 = vld [vmem:[%s2521 + $0x88] sm:$0xfc]
        %v3032 = vld [vmem:[%s2521 + $0x90] sm:$0x3]
        %v3033 = vld [vmem:[%s2521 + $0x98] sm:$0x3]
        %v3034 = vld [vmem:[%s2521 + $0xa0] sm:$0xfc]
        %v3035 = vld [vmem:[%s2521 + $0xa8] sm:$0xfc]
        %v3036 = vld [vmem:[%s2521 + $0xb0] sm:$0x3]
        %v3037 = vld [vmem:[%s2521 + $0xb8] sm:$0x3]
        %v3038 = vld [vmem:[%s2521 + $0xc0] sm:$0xfc]
        %v3039 = vld [vmem:[%s2521 + $0xc8] sm:$0xfc]
        %v3040 = vld [vmem:[%s2521 + $0xd0] sm:$0x3]
        %v3041 = vld [vmem:[%s2521 + $0xd8] sm:$0x3]
        %v3042 = vld [vmem:[%s2521 + $0xe0] sm:$0xfc]
        %v3043 = vld [vmem:[%s2521 + $0xe8] sm:$0xfc]
        %v3044 = vld [vmem:[%s2521 + $0xf0] sm:$0x3]
        %v3045 = vld [vmem:[%s2521 + $0xf8] sm:$0x3]
        %v3078 = vrot.slane %v3014, 2
        %v3079 = vrot.slane %v3016, 2
        %v3080 = vsel %vm1488, %v3078, %v3079
        %v3081 = vrot.slane %v3015, 2
        %v3082 = vrot.slane %v3017, 2
        %v3083 = vsel %vm1488, %v3081, %v3082
        %v3084 = vrot.slane %v3018, 2
        %v3085 = vrot.slane %v3020, 2
        %v3086 = vsel %vm1488, %v3084, %v3085
        %v3087 = vrot.slane %v3019, 2
        %v3088 = vrot.slane %v3021, 2
        %v3089 = vsel %vm1488, %v3087, %v3088
        %v3090 = vrot.slane %v3022, 2
        %v3091 = vrot.slane %v3024, 2
        %v3092 = vsel %vm1488, %v3090, %v3091
        %v3093 = vrot.slane %v3023, 2
        %v3094 = vrot.slane %v3025, 2
        %v3095 = vsel %vm1488, %v3093, %v3094
        %v3096 = vrot.slane %v3026, 2
        %v3097 = vrot.slane %v3028, 2
        %v3098 = vsel %vm1488, %v3096, %v3097
        %v3099 = vrot.slane %v3027, 2
        %v3100 = vrot.slane %v3029, 2
        %v3101 = vsel %vm1488, %v3099, %v3100
        %v3102 = vrot.slane %v3030, 2
        %v3103 = vrot.slane %v3032, 2
        %v3104 = vsel %vm1488, %v3102, %v3103
        %v3105 = vrot.slane %v3031, 2
        %v3106 = vrot.slane %v3033, 2
        %v3107 = vsel %vm1488, %v3105, %v3106
        %v3108 = vrot.slane %v3034, 2
        %v3109 = vrot.slane %v3036, 2
        %v3110 = vsel %vm1488, %v3108, %v3109
        %v3111 = vrot.slane %v3035, 2
        %v3112 = vrot.slane %v3037, 2
        %v3113 = vsel %vm1488, %v3111, %v3112
        %v3114 = vrot.slane %v3038, 2
        %v3115 = vrot.slane %v3040, 2
        %v3116 = vsel %vm1488, %v3114, %v3115
        %v3117 = vrot.slane %v3039, 2
        %v3118 = vrot.slane %v3041, 2
        %v3119 = vsel %vm1488, %v3117, %v3118
        %v3120 = vrot.slane %v3042, 2
        %v3121 = vrot.slane %v3044, 2
        %v3122 = vsel %vm1488, %v3120, %v3121
        %v3123 = vrot.slane %v3043, 2
        %v3124 = vrot.slane %v3045, 2
        %v3125 = vsel %vm1488, %v3123, %v3124
        %v3142 = vpack.c.bf16 %v3086, %v3080
        %v3143 = vpack.c.bf16 %v3089, %v3083
        %v3144 = vpack.c.bf16 %v3098, %v3092
        %v3145 = vpack.c.bf16 %v3101, %v3095
        %v3146 = vpack.c.bf16 %v3110, %v3104
        %v3147 = vpack.c.bf16 %v3113, %v3107
        %v3148 = vpack.c.bf16 %v3122, %v3116
        %v3149 = vpack.c.bf16 %v3125, %v3119
        %s3150 = scalar_lea.vmem %s569, 640 [#allocation12]
        %v3151 = vld [vmem:[%s3150] sm:$0xf]
        %v3152 = vld [vmem:[%s3150 + $0x4] sm:$0xf]
        %v3153 = vld [vmem:[%s3150 + $0x8] sm:$0xf]
        %v3154 = vld [vmem:[%s3150 + $0xc] sm:$0xf]
        %v3155 = vld [vmem:[%s3150 + $0x10] sm:$0xf]
        %v3156 = vld [vmem:[%s3150 + $0x14] sm:$0xf]
        %v3157 = vld [vmem:[%s3150 + $0x18] sm:$0xf]
        %v3158 = vld [vmem:[%s3150 + $0x1c] sm:$0xf]
        %v3159 = vld [vmem:[%s3150 + $0x20] sm:$0xf]
        %v3160 = vld [vmem:[%s3150 + $0x24] sm:$0xf]
        %v3161 = vld [vmem:[%s3150 + $0x28] sm:$0xf]
        %v3162 = vld [vmem:[%s3150 + $0x2c] sm:$0xf]
        %v3163 = vld [vmem:[%s3150 + $0x30] sm:$0xf]
        %v3164 = vld [vmem:[%s3150 + $0x34] sm:$0xf]
        %v3165 = vld [vmem:[%s3150 + $0x38] sm:$0xf]
        %v3166 = vld [vmem:[%s3150 + $0x3c] sm:$0xf]
        %v3167 = vld [vmem:[%s3150 + $0x40] sm:$0xf]
        %v3168 = vld [vmem:[%s3150 + $0x44] sm:$0xf]
        %v3169 = vld [vmem:[%s3150 + $0x48] sm:$0xf]
        %v3170 = vld [vmem:[%s3150 + $0x4c] sm:$0xf]
        %v3191 = vunpack.c.l.b16 %v3151
        %v3192 = vunpack.c.l.b16 %v3152
        %v3193 = vunpack.c.l.b16 %v3153
        %v3194 = vunpack.c.l.b16 %v3154
        %v3195 = vunpack.c.l.b16 %v3155
        %v3196 = vunpack.c.l.b16 %v3156
        %v3197 = vunpack.c.l.b16 %v3157
        %v3198 = vunpack.c.l.b16 %v3158
        %v3199 = vunpack.c.l.b16 %v3159
        %v3200 = vunpack.c.l.b16 %v3160
        %v3201 = vunpack.c.l.b16 %v3161
        %v3202 = vunpack.c.l.b16 %v3162
        %v3203 = vunpack.c.l.b16 %v3163
        %v3204 = vunpack.c.l.b16 %v3164
        %v3205 = vunpack.c.l.b16 %v3165
        %v3206 = vunpack.c.l.b16 %v3166
        %v3207 = vunpack.c.l.b16 %v3167
        %v3208 = vunpack.c.l.b16 %v3168
        %v3209 = vunpack.c.l.b16 %v3169
        %v3210 = vunpack.c.l.b16 %v3170
        %v3211 = vpack.c.b16 %v3192, %v3191
        %v3212 = vpack.c.b16 %v3194, %v3193
        %v3213 = vpack.c.b16 %v3196, %v3195
        %v3214 = vpack.c.b16 %v3198, %v3197
        %v3215 = vpack.c.b16 %v3200, %v3199
        %v3216 = vpack.c.b16 %v3202, %v3201
        %v3217 = vpack.c.b16 %v3204, %v3203
        %v3218 = vpack.c.b16 %v3206, %v3205
        %v3219 = vpack.c.b16 %v3208, %v3207
        %v3220 = vpack.c.b16 %v3210, %v3209
        %v3232 = vsel %vm1209, %v3143, 0
        %v3235 = vsel %vm1209, %v3145, 0
        %v3238 = vsel %vm1209, %v3147, 0
        %v3241 = vsel %vm1209, %v3149, 0
        %3243 = vmatprep.subr.bf16.mxu0 0
        %3244 = vmatpush1.bf16.msra.mxu0 %v3211
        %3245 = vmatprep.subr.bf16.mxu0 0
        %3246 = vmatpush1.bf16.msra.mxu0 %v3212
        %3247 = vmatprep.subr.bf16.mxu0 0
        %3248 = vmatpush1.bf16.msra.mxu0 %v3213
        %3249 = vmatprep.subr.bf16.mxu0 0
        %3250 = vmatpush1.bf16.msra.mxu0 %v3214
        %3251 = vmatprep.subr.bf16.mxu0 0
        %3252 = vmatpush1.bf16.msra.mxu0 %v3215
        %3253 = vmatprep.subr.bf16.mxu0 0
        %3254 = vmatpush1.bf16.msra.mxu0 %v3216
        %3255 = vmatprep.subr.bf16.mxu0 0
        %3256 = vmatpush1.bf16.msra.mxu0 %v3217
        %3257 = vmatprep.subr.bf16.mxu0 0
        %3258 = vmatpush1.bf16.msra.mxu0 %v3218
        %3259 = vmatprep.subr.bf16.mxu0 0
        %3260 = vmatpush1.bf16.msra.mxu0 %v3219
        %3261 = vmatprep.subr.bf16.mxu0 0
        %3262 = vmatpush1.bf16.msra.mxu0 %v3220
        %3263 = vmatprep.subr.bf16.mxu0 0
        %3264 = vmatpush1.bf16.msra.mxu0 0
        %3265 = vmatprep.subr.bf16.mxu0 0
        %3266 = vmatpush1.bf16.msra.mxu0 0
        %3267 = vmatprep.subr.bf16.mxu0 0
        %3268 = vmatpush1.bf16.msra.mxu0 0
        %3269 = vmatprep.subr.bf16.mxu0 0
        %3270 = vmatpush1.bf16.msra.mxu0 0
        %3271 = vmatprep.subr.bf16.mxu0 0
        %3272 = vmatpush1.bf16.msra.mxu0 0
        %3273 = vmatprep.subr.bf16.mxu0 0
        %3274 = vmatpush1.bf16.msra.mxu0 0
        %3275 = vmatprep.mubr.bf16.mxu0 %v3232
        %3276 = vmatmul.mubr.bf16.gmra.mrb[0].mxu0 %v3142
        %v3277 = vpop.f32.mrb[0].mxu0
        %v3278 = vadd.f32 0.0, %v3277
        %v3279 = vpop.f32.mrb[0].mxu0
        %v3280 = vpop.f32.mrb[0].mxu0
        %v3281 = vadd.f32 0.0, %v3280
        %v3282 = vpop.f32.mrb[0].mxu0
        %3283 = vmatprep.mubr.bf16.mxu0 %v3235
        %3284 = vmatmul.mubr.bf16.gmra.mrb[0].mxu0 %v3144
        %v3285 = vpop.f32.mrb[0].mxu0
        %v3286 = vadd.f32 0.0, %v3285
        %v3287 = vpop.f32.mrb[0].mxu0
        %v3288 = vpop.f32.mrb[0].mxu0
        %v3289 = vadd.f32 0.0, %v3288
        %v3290 = vpop.f32.mrb[0].mxu0
        %3291 = vmatprep.mubr.bf16.mxu0 %v3238
        %3292 = vmatmul.mubr.bf16.gmra.mrb[0].mxu0 %v3146
        %v3293 = vpop.f32.mrb[0].mxu0
        %v3294 = vadd.f32 0.0, %v3293
        %v3295 = vpop.f32.mrb[0].mxu0
        %v3296 = vpop.f32.mrb[0].mxu0
        %v3297 = vadd.f32 0.0, %v3296
        %v3298 = vpop.f32.mrb[0].mxu0
        %3299 = vmatprep.mubr.bf16.mxu0 %v3241
        %3300 = vmatmul.mubr.bf16.gmra.mrb[0].mxu0 %v3148
        %v3301 = vpop.f32.mrb[0].mxu0
        %v3302 = vadd.f32 0.0, %v3301
        %v3303 = vpop.f32.mrb[0].mxu0
        %v3304 = vpop.f32.mrb[0].mxu0
        %v3305 = vadd.f32 0.0, %v3304
        %v3306 = vpop.f32.mrb[0].mxu0
        %3307 = vdwg.mxu0
        %v3308 = vadd.f32 %v3006, %v3278
        %v3309 = vadd.f32 %v3007, %v3281
        %v3310 = vadd.f32 %v3008, %v3286
        %v3311 = vadd.f32 %v3009, %v3289
        %v3312 = vadd.f32 %v3010, %v3294
        %v3313 = vadd.f32 %v3011, %v3297
        %v3314 = vadd.f32 %v3012, %v3302
        %v3315 = vadd.f32 %v3013, %v3305
        %v3316 = vld [vmem:[%s577] sm:$0x1]
        %v3318 = vlaneseq
        %v3319 = vshrl.u32 %v3318, 7
        %v3320 = vsub.s32 0, %v3319
        %v3321 = vrot.slane %v3316, %v3320
        %v3323 = vmul.f32 %v3308, %v3321
        %v3324 = vmul.f32 %v3309, %v3321
        %v3325 = vmul.f32 %v3310, %v3321
        %v3326 = vmul.f32 %v3311, %v3321
        %v3327 = vmul.f32 %v3312, %v3321
        %v3328 = vmul.f32 %v3313, %v3321
        %v3329 = vmul.f32 %v3314, %v3321
        %v3330 = vmul.f32 %v3315, %v3321
        %v3331 = vld [vmem:[%s585] sm:$0x1]
        %v3333 = vlaneseq
        %v3334 = vshrl.u32 %v3333, 7
        %v3335 = vsub.s32 0, %v3334
        %v3336 = vrot.slane %v3331, %v3335
        %v3338 = vadd.f32 %v3323, %v3336
        %v3339 = vadd.f32 %v3324, %v3336
        %v3340 = vadd.f32 %v3325, %v3336
        %v3341 = vadd.f32 %v3326, %v3336
        %v3342 = vadd.f32 %v3327, %v3336
        %v3343 = vadd.f32 %v3328, %v3336
        %v3344 = vadd.f32 %v3329, %v3336
        %v3345 = vadd.f32 %v3330, %v3336
        %v3346 = vmax.f32 %v3338, 0.0
        %v3347 = vmax.f32 %v3339, 0.0
        %v3348 = vmax.f32 %v3340, 0.0
        %v3349 = vmax.f32 %v3341, 0.0
        %v3350 = vmax.f32 %v3342, 0.0
        %v3351 = vmax.f32 %v3343, 0.0
        %v3352 = vmax.f32 %v3344, 0.0
        %v3353 = vmax.f32 %v3345, 0.0
        %v3354 = vpack.c.bf16 %v3347, %v3346
        %v3355 = vpack.c.bf16 %v3349, %v3348
        %v3356 = vpack.c.bf16 %v3351, %v3350
        %v3357 = vpack.c.bf16 %v3353, %v3352
        %v3358 = vld [vmem:[%s681] sm:$0xf]
        %v3359 = vld [vmem:[%s681 + $0x4] sm:$0xf]
        %v3360 = vld [vmem:[%s681 + $0x8] sm:$0xf]
        %v3361 = vld [vmem:[%s681 + $0xc] sm:$0xf]
        %v3362 = vld [vmem:[%s681 + $0x10] sm:$0xf]
        %v3363 = vld [vmem:[%s681 + $0x14] sm:$0xf]
        %v3364 = vld [vmem:[%s681 + $0x18] sm:$0xf]
        %v3365 = vld [vmem:[%s681 + $0x1c] sm:$0xf]
        %v3366 = vld [vmem:[%s681 + $0x20] sm:$0xf]
        %v3367 = vld [vmem:[%s681 + $0x24] sm:$0xf]
        %v3368 = vld [vmem:[%s681 + $0x28] sm:$0xf]
        %v3369 = vld [vmem:[%s681 + $0x2c] sm:$0xf]
        %v3370 = vld [vmem:[%s681 + $0x30] sm:$0xf]
        %v3371 = vld [vmem:[%s681 + $0x34] sm:$0xf]
        %v3372 = vld [vmem:[%s681 + $0x38] sm:$0xf]
        %v3373 = vld [vmem:[%s681 + $0x3c] sm:$0xf]
        %v3390 = vunpack.c.l.b16 %v3358
        %v3391 = vunpack.c.l.b16 %v3359
        %v3392 = vunpack.c.l.b16 %v3360
        %v3393 = vunpack.c.l.b16 %v3361
        %v3394 = vunpack.c.l.b16 %v3362
        %v3395 = vunpack.c.l.b16 %v3363
        %v3396 = vunpack.c.l.b16 %v3364
        %v3397 = vunpack.c.l.b16 %v3365
        %v3398 = vunpack.c.l.b16 %v3366
        %v3399 = vunpack.c.l.b16 %v3367
        %v3400 = vunpack.c.l.b16 %v3368
        %v3401 = vunpack.c.l.b16 %v3369
        %v3402 = vunpack.c.l.b16 %v3370
        %v3403 = vunpack.c.l.b16 %v3371
        %v3404 = vunpack.c.l.b16 %v3372
        %v3405 = vunpack.c.l.b16 %v3373
        %v3406 = vpack.c.b16 %v3391, %v3390
        %v3407 = vpack.c.b16 %v3393, %v3392
        %v3408 = vpack.c.b16 %v3395, %v3394
        %v3409 = vpack.c.b16 %v3397, %v3396
        %v3410 = vpack.c.b16 %v3399, %v3398
        %v3411 = vpack.c.b16 %v3401, %v3400
        %v3412 = vpack.c.b16 %v3403, %v3402
        %v3413 = vpack.c.b16 %v3405, %v3404
        %3422 = vmatprep.subr.bf16.mxu0 0
        %3423 = vmatpush1.bf16.msra.mxu0 %v3406
        %3424 = vmatprep.subr.bf16.mxu0 0
        %3425 = vmatpush1.bf16.msra.mxu0 %v3407
        %3426 = vmatprep.subr.bf16.mxu0 0
        %3427 = vmatpush1.bf16.msra.mxu0 %v3408
        %3428 = vmatprep.subr.bf16.mxu0 0
        %3429 = vmatpush1.bf16.msra.mxu0 %v3409
        %3430 = vmatprep.subr.bf16.mxu0 0
        %3431 = vmatpush1.bf16.msra.mxu0 %v3410
        %3432 = vmatprep.subr.bf16.mxu0 0
        %3433 = vmatpush1.bf16.msra.mxu0 %v3411
        %3434 = vmatprep.subr.bf16.mxu0 0
        %3435 = vmatpush1.bf16.msra.mxu0 %v3412
        %3436 = vmatprep.subr.bf16.mxu0 0
        %3437 = vmatpush1.bf16.msra.mxu0 %v3413
        %3438 = vmatprep.subr.bf16.mxu0 0
        %3439 = vmatpush1.bf16.msra.mxu0 0
        %3440 = vmatprep.subr.bf16.mxu0 0
        %3441 = vmatpush1.bf16.msra.mxu0 0
        %3442 = vmatprep.subr.bf16.mxu0 0
        %3443 = vmatpush1.bf16.msra.mxu0 0
        %3444 = vmatprep.subr.bf16.mxu0 0
        %3445 = vmatpush1.bf16.msra.mxu0 0
        %3446 = vmatprep.subr.bf16.mxu0 0
        %3447 = vmatpush1.bf16.msra.mxu0 0
        %3448 = vmatprep.subr.bf16.mxu0 0
        %3449 = vmatpush1.bf16.msra.mxu0 0
        %3450 = vmatprep.subr.bf16.mxu0 0
        %3451 = vmatpush1.bf16.msra.mxu0 0
        %3452 = vmatprep.subr.bf16.mxu0 0
        %3453 = vmatpush1.bf16.msra.mxu0 0
        %3454 = vmatprep.mubr.bf16.mxu0 0
        %3455 = vmatmul.mubr.bf16.gmra.mrb[0].mxu0 %v3354
        %v3456 = vpop.f32.mrb[0].mxu0
        %v3457 = vadd.f32 0.0, %v3456
        %v3458 = vpop.f32.mrb[0].mxu0
        %v3459 = vpop.f32.mrb[0].mxu0
        %v3460 = vadd.f32 0.0, %v3459
        %v3461 = vpop.f32.mrb[0].mxu0
        %3462 = vmatprep.mubr.bf16.mxu0 0
        %3463 = vmatmul.mubr.bf16.gmra.mrb[0].mxu0 %v3355
        %v3464 = vpop.f32.mrb[0].mxu0
        %v3465 = vadd.f32 0.0, %v3464
        %v3466 = vpop.f32.mrb[0].mxu0
        %v3467 = vpop.f32.mrb[0].mxu0
        %v3468 = vadd.f32 0.0, %v3467
        %v3469 = vpop.f32.mrb[0].mxu0
        %3470 = vmatprep.mubr.bf16.mxu0 0
        %3471 = vmatmul.mubr.bf16.gmra.mrb[0].mxu0 %v3356
        %v3472 = vpop.f32.mrb[0].mxu0
        %v3473 = vadd.f32 0.0, %v3472
        %v3474 = vpop.f32.mrb[0].mxu0
        %v3475 = vpop.f32.mrb[0].mxu0
        %v3476 = vadd.f32 0.0, %v3475
        %v3477 = vpop.f32.mrb[0].mxu0
        %3478 = vmatprep.mubr.bf16.mxu0 0
        %3479 = vmatmul.mubr.bf16.gmra.mrb[0].mxu0 %v3357
        %v3480 = vpop.f32.mrb[0].mxu0
        %v3481 = vadd.f32 0.0, %v3480
        %v3482 = vpop.f32.mrb[0].mxu0
        %v3483 = vpop.f32.mrb[0].mxu0
        %v3484 = vadd.f32 0.0, %v3483
        %v3485 = vpop.f32.mrb[0].mxu0
        %3486 = vdwg.mxu0
        %v3487 = vld [vmem:[%s593] sm:$0x1]
        %v3489 = vlaneseq
        %v3490 = vshrl.u32 %v3489, 7
        %v3491 = vsub.s32 0, %v3490
        %v3492 = vrot.slane %v3487, %v3491
        %v3494 = vmul.f32 %v3457, %v3492
        %v3495 = vmul.f32 %v3460, %v3492
        %v3496 = vmul.f32 %v3465, %v3492
        %v3497 = vmul.f32 %v3468, %v3492
        %v3498 = vmul.f32 %v3473, %v3492
        %v3499 = vmul.f32 %v3476, %v3492
        %v3500 = vmul.f32 %v3481, %v3492
        %v3501 = vmul.f32 %v3484, %v3492
        %v3502 = vld [vmem:[%s601] sm:$0x1]
        %v3504 = vlaneseq
        %v3505 = vshrl.u32 %v3504, 7
        %v3506 = vsub.s32 0, %v3505
        %v3507 = vrot.slane %v3502, %v3506
        %v3509 = vadd.f32 %v3494, %v3507
        %v3510 = vadd.f32 %v3495, %v3507
        %v3511 = vadd.f32 %v3496, %v3507
        %v3512 = vadd.f32 %v3497, %v3507
        %v3513 = vadd.f32 %v3498, %v3507
        %v3514 = vadd.f32 %v3499, %v3507
        %v3515 = vadd.f32 %v3500, %v3507
        %v3516 = vadd.f32 %v3501, %v3507
        %v3517 = vadd.f32 %v3509, %v746
        %v3518 = vadd.f32 %v3510, %v747
        %v3519 = vadd.f32 %v3511, %v748
        %v3520 = vadd.f32 %v3512, %v749
        %v3521 = vadd.f32 %v3513, %v750
        %v3522 = vadd.f32 %v3514, %v751
        %v3523 = vadd.f32 %v3515, %v752
        %v3524 = vadd.f32 %v3516, %v753
        %v3525 = vmax.f32 %v3517, 0.0
        %v3526 = vmax.f32 %v3518, 0.0
        %v3527 = vmax.f32 %v3519, 0.0
        %v3528 = vmax.f32 %v3520, 0.0
        %v3529 = vmax.f32 %v3521, 0.0
        %v3530 = vmax.f32 %v3522, 0.0
        %v3531 = vmax.f32 %v3523, 0.0
        %v3532 = vmax.f32 %v3524, 0.0
        %3533 = vst.msk [vmem:[#allocation2] sm:$0xff] %vm790, %v3525
        %3534 = vst.msk [vmem:[#allocation2 + $0x8] sm:$0xff] %vm790, %v3526
        %3535 = vst.msk [vmem:[#allocation2 + $0x10] sm:$0xff] %vm790, %v3527
        %3536 = vst.msk [vmem:[#allocation2 + $0x18] sm:$0xff] %vm790, %v3528
        %3537 = vst.msk [vmem:[#allocation2 + $0x20] sm:$0xff] %vm790, %v3529
        %3538 = vst.msk [vmem:[#allocation2 + $0x28] sm:$0xff] %vm790, %v3530
        %3539 = vst.msk [vmem:[#allocation2 + $0x30] sm:$0xff] %vm790, %v3531
        %3540 = vst.msk [vmem:[#allocation2 + $0x38] sm:$0xff] %vm790, %v3532
        %p3541 = scmp.eq.s32.totalorder %s44, 2
        // Predicated region
        $region101: #{tpu_custom_call.1} parent=59 // pred_check
          %p3542 = pneg %p3541
        $region102: #{tpu_custom_call.1} parent=59 // pred_check_branch
          %3544 = sbr.rel (%p3542) target = $region104
        $region103: #{tpu_custom_call.1} parent=59 // pred_region
          %3545 = vst.msk [vmem:[%s676] sm:$0xff] %vm790, %v3525
          %3546 = vst.msk [vmem:[%s676 + $0x8] sm:$0xff] %vm790, %v3526
          %3547 = vst.msk [vmem:[%s676 + $0x10] sm:$0xff] %vm790, %v3527
          %3548 = vst.msk [vmem:[%s676 + $0x18] sm:$0xff] %vm790, %v3528
          %3549 = vst.msk [vmem:[%s676 + $0x20] sm:$0xff] %vm790, %v3529
          %3550 = vst.msk [vmem:[%s676 + $0x28] sm:$0xff] %vm790, %v3530
          %3551 = vst.msk [vmem:[%s676 + $0x30] sm:$0xff] %vm790, %v3531
          %3552 = vst.msk [vmem:[%s676 + $0x38] sm:$0xff] %vm790, %v3532
        $region104: #{tpu_custom_call.1} parent=59 // pred_fallthru
          _
        %s3553 = sand.u32 %s319, 1
        %s3554 = scalar_lea.sflag [#allocation6], %s3553
        %s3555 = sand.u32 %s319, 1
        %s3556 = smul.addr %s3555, 64
        %s3557 = scalar_lea.vmem [#allocation19], %s3556
        // Predicated region
        $region105: #{tpu_custom_call.1} parent=59 // pred_check
          %p3558 = pneg %p329
        $region106: #{tpu_custom_call.1} parent=59 // pred_check_branch
          %3560 = sbr.rel (%p3558) target = $region108
        $region107: #{tpu_custom_call.1} parent=59 // pred_region
          %s3562 = ssub.s32 1024, 1024
          %3563 = vsyncadd %s3554, %s3562
          %s3564 = smul.addr %s43, 8
          %s3565 = smul.addr %s3564, 128
          %s3566 = scalar_lea.hbm %s10, %s3565
          %s3567 = sshll.u32 %s3557, 4
          %s3568 = int_to_ptr.vmem [resolvable:$true] %s3567
          %3573 = dma.vmem_to_hbm [thread:$0]  %s3568, 1024, %s3566, %s3554, 128, 128, 8
        $region108: #{tpu_custom_call.1} parent=59 // pred_fallthru
          _
      $region60: #{tpu_custom_call.1} parent=5 // pred_fallthru
        _
      %p3574 = scmp.le.s32.totalorder 2, %s34
      // Predicated region
      $region109: #{tpu_custom_call.1} parent=5 // pred_check
        %p3575 = pneg %p3574
      $region110: #{tpu_custom_call.1} parent=5 // pred_check_branch
        %3577 = sbr.rel (%p3575) target = $region112
      $region111: #{tpu_custom_call.1} parent=5 // pred_region
        %s3578 = ssub.s32 %s34, 2
        // Predicated region
        $region113: #{tpu_custom_call.1} parent=111 // pred_check
          %p3579 = pneg %p335
        $region114: #{tpu_custom_call.1} parent=111 // pred_check_branch
          %3581 = sbr.rel (%p3579) target = $region116
        $region115: #{tpu_custom_call.1} parent=111 // pred_region
          %s3582 = sand.u32 %s320, 1
          %s3583 = scalar_lea.sflag [#allocation6], %s3582
          %s3584 = sand.u32 %s320, 1
          %s3585 = smul.addr %s3584, 64
          %s3586 = scalar_lea.vmem [#allocation19], %s3585
          %3587 = dma.done %s3583, 1024
        $region116: #{tpu_custom_call.1} parent=111 // pred_fallthru
          _
      $region112: #{tpu_custom_call.1} parent=5 // pred_fallthru
        _
    $region6: #{tpu_custom_call.1} parent=1 // loop_footer
      %s38 = sadd.s32 1, %s34
    $region7: #{tpu_custom_call.1} parent=1 // loop_footer_branch
      %33 = sbr.rel target = $region3
    $region8: #{tpu_custom_call.1} parent=1 // loop_exit
      _
    %3588 = vsyncpa [#allocation5], 1
    %s3589 = scalar_lea.sflag [#allocation5], 1
    %3590 = vsyncpa %s3589, 1
    %3591 = vsyncpa [#allocation8], 1
    %s3592 = scalar_lea.sflag [#allocation8], 1
    %3593 = vsyncpa %s3592, 1
    %3594 = vsyncpa [#allocation11], 1
    %s3595 = scalar_lea.sflag [#allocation11], 1
    %3596 = vsyncpa %s3595, 1
    %3597 = vsyncpa [#allocation14], 1
    %s3598 = scalar_lea.sflag [#allocation14], 1
    %3599 = vsyncpa %s3598, 1
    %3600 = vsyncpa [#allocation17], 1
    %s3601 = scalar_lea.sflag [#allocation17], 1
    %3602 = vsyncpa %s3601, 1
    %3603 = vsyncpa [#allocation6], 1
    %s3604 = scalar_lea.sflag [#allocation6], 1
    %3605 = vsyncpa %s3604, 1

</llo_original>
